<compile_context>
chip_gen: v6e
topology: v6e:2x2x1
jax: 0.10.0
libtpu: 0.0.40
codegen_flags: <defaults>
</compile_context>

<pallas_src>
import jax
import jax.numpy as jnp
from jax.experimental import pallas as pl
from jax.experimental.pallas import tpu as pltpu

# ---- static model dims ----
T = 8            # sequence length
F = 16           # input_size (features per timestep)
H = 32           # LSTM hidden size
HM = 32          # TCTS MLP hidden size
O = 8            # output_size

# ---- throughput config ----
B_BLK = 64       # samples processed per grid step
N_SAMPLES = 256  # total samples in the demo forward (grid of 4 steps)

# ---- static row offsets inside the packed [P_ROWS, 4H] parameter array ----
# (all section starts are multiples of 8 so sublane slices stay tile-aligned)
R_WIH = 0                      # w_ih          [F, 4H]
R_WHH = R_WIH + F              # w_hh          [H, 4H]
R_BLSTM = R_WHH + H            # b_ih + b_hh   [1, 4H]
R_W1 = R_BLSTM + 8             # w1            [T*F, 4H]   (lanes HM: zero)
R_B1 = R_W1 + T * F            # b1            [1, 4H]     (lanes HM: zero)
R_WHEADH = R_B1 + 8            # w_lo @ wf_l   [H, 4H]     (lanes O:  zero)
R_WHEADM = R_WHEADH + H        # w2  @ wf_t    [4H, 4H]    (rows HM:, lanes O: zero)
R_BHEAD = R_WHEADM + 4 * H     # folded bias   [1, 4H]     (lanes O:  zero)
P_ROWS = R_BHEAD + 8           # = 360 rows (multiple of 8)
P_LANES = 4 * H                # = 128 lanes


def ensemble_kernel(x_tm_ref, x_flat_ref, p_ref, out_ref):
    # x_tm_ref   : [T*B_BLK, F]   per-block time-major x (for the LSTM branch)
    # x_flat_ref : [B_BLK, T*F]   per-block sample-major flattened x (TCTS)
    # p_ref      : [P_ROWS, 4H]   packed parameters, resident across the grid
    # out_ref    : [B_BLK, 128]   lane-dense output slab (lanes O: are zeros)
    x_tm = x_tm_ref[...]
    x_flat = x_flat_ref[...]

    w_ih = p_ref[R_WIH:R_WIH + F, :]                      # [F, 4H]
    w_hh_b = p_ref[R_WHH:R_WHH + H, :].astype(jnp.bfloat16)   # [H, 4H] bf16
    b_lstm = p_ref[R_BLSTM:R_BLSTM + 1, :]                # [1, 4H]

    # ---- coalesced LSTM input projection: ONE matmul for all T timesteps ----
    # gx_all[t*B_BLK + b, :] = x[b, t, :] @ W_ih + (b_ih + b_hh)
    gx_all = jnp.dot(x_tm, w_ih, preferred_element_type=jnp.float32) + b_lstm

    # ---- TCTS MLP + its half of the fused head (independent of recurrence) --
    w1 = p_ref[R_W1:R_W1 + T * F, :]                      # [T*F, 4H]
    b1 = p_ref[R_B1:R_B1 + 1, :]                          # [1, 4H]
    hm = jnp.maximum(
        jnp.dot(x_flat, w1, preferred_element_type=jnp.float32) + b1, 0.0)
    w_head_m = p_ref[R_WHEADM:R_WHEADM + 4 * H, :]        # [4H, 4H]
    b_head = p_ref[R_BHEAD:R_BHEAD + 1, :]                # [1, 4H]
    hm_part = jnp.dot(hm, w_head_m,
                      preferred_element_type=jnp.float32) + b_head

    # ---- LSTM recurrence: only h @ W_hh + gate math on the serial chain -----
    h = jnp.zeros((B_BLK, H), jnp.float32)
    c = jnp.zeros((B_BLK, H), jnp.float32)
    for t in range(T):  # T is static -> fully unrolled at trace time
        gates = gx_all[t * B_BLK:(t + 1) * B_BLK, :] + jnp.dot(
            h.astype(jnp.bfloat16), w_hh_b,
            preferred_element_type=jnp.float32)
        # activations on the whole [B_BLK, 4H] vreg slab, slice afterwards
        sig = jax.nn.sigmoid(gates)
        tnh = jnp.tanh(gates)
        i_g = sig[:, 0 * H:1 * H]
        f_g = sig[:, 1 * H:2 * H]
        g_g = tnh[:, 2 * H:3 * H]
        o_g = sig[:, 3 * H:4 * H]
        c = f_g * c + i_g * g_g
        h = o_g * jnp.tanh(c)

    # ---- only the h-dependent half of the head sits on the recurrence tail --
    w_head_h = p_ref[R_WHEADH:R_WHEADH + H, :]            # [H, 4H]
    out_ref[...] = (
        jnp.dot(h, w_head_h, preferred_element_type=jnp.float32) + hm_part)


def make_raw_params(key):
    """Raw parameters in the original (per-sub-module) layout."""
    ks = jax.random.split(key, 12)
    s = 0.1
    w_ih = s * jax.random.normal(ks[0], (F, 4 * H), jnp.float32)
    w_hh = s * jax.random.normal(ks[1], (H, 4 * H), jnp.float32)
    b_ih = s * jax.random.normal(ks[2], (1, 4 * H), jnp.float32)
    b_hh = s * jax.random.normal(ks[3], (1, 4 * H), jnp.float32)
    w_lo = s * jax.random.normal(ks[4], (H, O), jnp.float32)
    b_lo = s * jax.random.normal(ks[5], (1, O), jnp.float32)
    w1 = s * jax.random.normal(ks[6], (T * F, HM), jnp.float32)
    b1 = s * jax.random.normal(ks[7], (1, HM), jnp.float32)
    w2 = s * jax.random.normal(ks[8], (HM, O), jnp.float32)
    b2 = s * jax.random.normal(ks[9], (1, O), jnp.float32)
    # nn.Linear(2*O, O): weight [O, 2*O], bias [O]
    w_fc = s * jax.random.normal(ks[10], (O, 2 * O), jnp.float32)
    b_fc = s * jax.random.normal(ks[11], (1, O), jnp.float32)
    return (w_ih, w_hh, b_ih, b_hh, w_lo, b_lo, w1, b1, w2, b2, w_fc, b_fc)


def pack_params(raw):
    """One-time parameter packing / head folding into a single resident array.

    The lstm head, tcts head and ensemble fc are folded (exact matmul
    associativity) into a split head:
        out = h @ (W_lo @ Wfc_l)  +  hm @ (W2 @ Wfc_t)  +  folded bias
    All pieces are zero-padded to 128 lanes so the kernel output is lane-dense.
    """
    (w_ih, w_hh, b_ih, b_hh, w_lo, b_lo, w1, b1, w2, b2, w_fc, b_fc) = raw
    wf_l = w_fc[:, :O].T                          # [O, O] acting on lstm_out
    wf_t = w_fc[:, O:].T                          # [O, O] acting on tcts_out
    w_head_h = w_lo @ wf_l                        # [H, O]
    w_head_m = w2 @ wf_t                          # [HM, O]
    b_head = b_lo @ wf_l + b2 @ wf_t + b_fc       # [1, O]
    b_lstm = b_ih + b_hh                          # [1, 4H]

    p = jnp.zeros((P_ROWS, P_LANES), jnp.float32)
    p = p.at[R_WIH:R_WIH + F, :].set(w_ih)
    p = p.at[R_WHH:R_WHH + H, :].set(w_hh)
    p = p.at[R_BLSTM, :].set(b_lstm[0])
    p = p.at[R_W1:R_W1 + T * F, :HM].set(w1)
    p = p.at[R_B1, :HM].set(b1[0])
    p = p.at[R_WHEADH:R_WHEADH + H, :O].set(w_head_h)
    p = p.at[R_WHEADM:R_WHEADM + HM, :O].set(w_head_m)
    p = p.at[R_BHEAD, :O].set(b_head[0])
    return p


@jax.jit
def ensemble_forward(x, packed):
    """x: [N, T, F] float32 (batch_first, qlib convention). Returns [N, O]."""
    n = x.shape[0]
    assert n % B_BLK == 0, "demo wrapper assumes N divisible by B_BLK"
    nb = n // B_BLK

    # sample-major flat layout (free reshape) for the TCTS branch
    x_flat = x.reshape(nb, B_BLK, T * F)
    # per-block time-major layout so the LSTM input projection is ONE matmul
    # (layout plumbing in the wrapper, one XLA transpose on a tiny array)
    x_tm = (x.reshape(nb, B_BLK, T, F)
             .transpose(0, 2, 1, 3)
             .reshape(nb, T * B_BLK, F))

    out_padded = pl.pallas_call(
        ensemble_kernel,
        out_shape=jax.ShapeDtypeStruct((nb, B_BLK, P_LANES), jnp.float32),
        grid_spec=pltpu.PrefetchScalarGridSpec(
            num_scalar_prefetch=0,
            grid=(nb,),
            in_specs=[
                pl.BlockSpec((None, T * B_BLK, F), lambda i: (i, 0, 0)),
                pl.BlockSpec((None, B_BLK, T * F), lambda i: (i, 0, 0)),
                # params: constant block index -> DMA'd once, resident
                pl.BlockSpec((P_ROWS, P_LANES), lambda i: (0, 0)),
            ],
            out_specs=pl.BlockSpec((None, B_BLK, P_LANES),
                                   lambda i: (i, 0, 0)),
        ),
        compiler_params=pltpu.CompilerParams(
            dimension_semantics=("parallel",),
        ),
    )(x_tm, x_flat, packed)
    return out_padded.reshape(n, P_LANES)[:, :O]


def ensemble_reference(x, raw):
    """Pure-JAX f32 reference of the original module composition."""
    (w_ih, w_hh, b_ih, b_hh, w_lo, b_lo, w1, b1, w2, b2, w_fc, b_fc) = raw
    hp = jax.lax.Precision.HIGHEST
    n = x.shape[0]
    # lstm sub-model
    h = jnp.zeros((n, H), jnp.float32)
    c = jnp.zeros((n, H), jnp.float32)
    for t in range(T):
        gates = (jnp.dot(x[:, t, :], w_ih, precision=hp)
                 + jnp.dot(h, w_hh, precision=hp) + b_ih + b_hh)
        i_g = jax.nn.sigmoid(gates[:, 0 * H:1 * H])
        f_g = jax.nn.sigmoid(gates[:, 1 * H:2 * H])
        g_g = jnp.tanh(gates[:, 2 * H:3 * H])
        o_g = jax.nn.sigmoid(gates[:, 3 * H:4 * H])
        c = f_g * c + i_g * g_g
        h = o_g * jnp.tanh(c)
    lstm_out = jnp.dot(h, w_lo, precision=hp) + b_lo
    # tcts sub-model
    hm = jnp.maximum(
        jnp.dot(x.reshape(n, T * F), w1, precision=hp) + b1, 0.0)
    tcts_out = jnp.dot(hm, w2, precision=hp) + b2
    # EnsembleModel.forward: concat(dim=1) + fc
    combined = jnp.concatenate([lstm_out, tcts_out], axis=1)   # [N, 2*O]
    return jnp.dot(combined, w_fc.T, precision=hp) + b_fc


if __name__ == "__main__":
    key = jax.random.PRNGKey(0)
    kx, kp = jax.random.split(key)
    x = jax.random.normal(kx, (N_SAMPLES, T, F), jnp.float32)

    raw = make_raw_params(kp)
    packed = pack_params(raw)          # one-time packing (not per-forward)

    out = ensemble_forward(x, packed)
    jax.block_until_ready(out)

    ref = ensemble_reference(x, raw)
    assert out.shape == (N_SAMPLES, O)
    # tolerance accounts for the bf16-operand recurrence matmul (f32 accum)
    max_err = float(jnp.max(jnp.abs(out - ref)))
    assert max_err < 2e-2, f"mismatch vs reference: max abs err {max_err}"
    print("KERNEL_OK")
</pallas_src>

<mosaic_0001>
module attributes {stable_mosaic.version = 11 : i64} {
  func.func @ensemble_kernel(%arg0: i32, %arg1: memref<1x512x16xf32, #tpu.memory_space<vmem>>, %arg2: memref<1x64x128xf32, #tpu.memory_space<vmem>>, %arg3: memref<360x128xf32, #tpu.memory_space<vmem>>, %arg4: memref<1x64x128xf32, #tpu.memory_space<vmem>>) attributes {dimension_semantics = [#tpu.dimension_semantics<parallel>], iteration_bounds = array<i64: 4>, scalar_prefetch = 0 : i64, scratch_operands = 0 : i64, tpu.core_type = #tpu.core_type<tc>, window_params = [{transform_indices = @transform_0, window_bounds = array<i64: 1, 512, 16>}, {transform_indices = @transform_1, window_bounds = array<i64: 1, 64, 128>}, {pipeline_mode = #tpu.pipeline_mode<synchronous>, transform_indices = @transform_2, window_bounds = array<i64: 360, 128>}, {transform_indices = @transform_3, window_bounds = array<i64: 1, 64, 128>}]} {
    %c0 = arith.constant 0 : index
    %c0_0 = arith.constant 0 : index
    %c0_1 = arith.constant 0 : index
    %0 = vector.load %arg1[%c0, %c0_0, %c0_1] : memref<1x512x16xf32, #tpu.memory_space<vmem>>, vector<1x512x16xf32>
    %1 = vector.shape_cast %0 : vector<1x512x16xf32> to vector<512x16xf32>
    %c0_2 = arith.constant 0 : index
    %c0_3 = arith.constant 0 : index
    %c0_4 = arith.constant 0 : index
    %2 = vector.load %arg2[%c0_2, %c0_3, %c0_4] : memref<1x64x128xf32, #tpu.memory_space<vmem>>, vector<1x64x128xf32>
    %3 = vector.shape_cast %2 : vector<1x64x128xf32> to vector<64x128xf32>
    %c0_5 = arith.constant 0 : index
    %c0_6 = arith.constant 0 : index
    %4 = vector.load %arg3[%c0_5, %c0_6] : memref<360x128xf32, #tpu.memory_space<vmem>>, vector<16x128xf32>
    %c16 = arith.constant 16 : index
    %c0_7 = arith.constant 0 : index
    %5 = vector.load %arg3[%c16, %c0_7] : memref<360x128xf32, #tpu.memory_space<vmem>>, vector<32x128xf32>
    %6 = arith.truncf %5 : vector<32x128xf32> to vector<32x128xbf16>
    %c48 = arith.constant 48 : index
    %c0_8 = arith.constant 0 : index
    %7 = vector.load %arg3[%c48, %c0_8] : memref<360x128xf32, #tpu.memory_space<vmem>>, vector<1x128xf32>
    %cst = arith.constant dense<0.000000e+00> : vector<512x128xf32>
    %8 = tpu.matmul %1, %4, %cst {dimension_numbers = #tpu.dot_dimension_numbers<[1], [0], [0], [1], [0, 0, 1, 1], [], []>} : vector<512x16xf32>, vector<16x128xf32>, vector<512x128xf32> -> vector<512x128xf32>
    %9 = vector.broadcast %7 : vector<1x128xf32> to vector<512x128xf32>
    %10 = arith.addf %8, %9 : vector<512x128xf32>
    %c56 = arith.constant 56 : index
    %c0_9 = arith.constant 0 : index
    %11 = vector.load %arg3[%c56, %c0_9] : memref<360x128xf32, #tpu.memory_space<vmem>>, vector<128x128xf32>
    %c184 = arith.constant 184 : index
    %c0_10 = arith.constant 0 : index
    %12 = vector.load %arg3[%c184, %c0_10] : memref<360x128xf32, #tpu.memory_space<vmem>>, vector<1x128xf32>
    %cst_11 = arith.constant dense<0.000000e+00> : vector<64x128xf32>
    %13 = tpu.matmul %3, %11, %cst_11 {dimension_numbers = #tpu.dot_dimension_numbers<[1], [0], [0], [1], [0, 0, 1, 1], [], []>} : vector<64x128xf32>, vector<128x128xf32>, vector<64x128xf32> -> vector<64x128xf32>
    %14 = vector.broadcast %12 : vector<1x128xf32> to vector<64x128xf32>
    %15 = arith.addf %13, %14 : vector<64x128xf32>
    %cst_12 = arith.constant 0.000000e+00 : f32
    %16 = vector.broadcast %cst_12 : f32 to vector<64x128xf32>
    %17 = arith.maximumf %15, %16 : vector<64x128xf32>
    %c224 = arith.constant 224 : index
    %c0_13 = arith.constant 0 : index
    %18 = vector.load %arg3[%c224, %c0_13] : memref<360x128xf32, #tpu.memory_space<vmem>>, vector<128x128xf32>
    %c352 = arith.constant 352 : index
    %c0_14 = arith.constant 0 : index
    %19 = vector.load %arg3[%c352, %c0_14] : memref<360x128xf32, #tpu.memory_space<vmem>>, vector<1x128xf32>
    %cst_15 = arith.constant dense<0.000000e+00> : vector<64x128xf32>
    %20 = tpu.matmul %17, %18, %cst_15 {dimension_numbers = #tpu.dot_dimension_numbers<[1], [0], [0], [1], [0, 0, 1, 1], [], []>} : vector<64x128xf32>, vector<128x128xf32>, vector<64x128xf32> -> vector<64x128xf32>
    %21 = vector.broadcast %19 : vector<1x128xf32> to vector<64x128xf32>
    %22 = arith.addf %20, %21 : vector<64x128xf32>
    %cst_16 = arith.constant 0.000000e+00 : f32
    %23 = vector.broadcast %cst_16 : f32 to vector<64x32xf32>
    %cst_17 = arith.constant 0.000000e+00 : f32
    %24 = vector.broadcast %cst_17 : f32 to vector<64x32xf32>
    %25 = vector.extract_strided_slice %10 {offsets = [0, 0], sizes = [64, 128], strides = [1, 1]} : vector<512x128xf32> to vector<64x128xf32>
    %26 = arith.truncf %23 : vector<64x32xf32> to vector<64x32xbf16>
    %cst_18 = arith.constant dense<0.000000e+00> : vector<64x128xf32>
    %27 = tpu.matmul %26, %6, %cst_18 {dimension_numbers = #tpu.dot_dimension_numbers<[1], [0], [0], [1], [0, 0, 1, 1], [], []>} : vector<64x32xbf16>, vector<32x128xbf16>, vector<64x128xf32> -> vector<64x128xf32>
    %28 = arith.addf %25, %27 : vector<64x128xf32>
    %29 = arith.negf %28 : vector<64x128xf32>
    %30 = math.exp %29 : vector<64x128xf32>
    %cst_19 = arith.constant 1.000000e+00 : f32
    %31 = vector.broadcast %cst_19 : f32 to vector<64x128xf32>
    %32 = arith.addf %31, %30 : vector<64x128xf32>
    %33 = arith.divf %31, %32 : vector<64x128xf32>
    %34 = math.tanh %28 : vector<64x128xf32>
    %35 = vector.extract_strided_slice %33 {offsets = [0, 0], sizes = [64, 32], strides = [1, 1]} : vector<64x128xf32> to vector<64x32xf32>
    %36 = vector.extract_strided_slice %33 {offsets = [0, 32], sizes = [64, 32], strides = [1, 1]} : vector<64x128xf32> to vector<64x32xf32>
    %37 = vector.extract_strided_slice %34 {offsets = [0, 64], sizes = [64, 32], strides = [1, 1]} : vector<64x128xf32> to vector<64x32xf32>
    %38 = vector.extract_strided_slice %33 {offsets = [0, 96], sizes = [64, 32], strides = [1, 1]} : vector<64x128xf32> to vector<64x32xf32>
    %39 = arith.mulf %36, %24 : vector<64x32xf32>
    %40 = arith.mulf %35, %37 : vector<64x32xf32>
    %41 = arith.addf %39, %40 : vector<64x32xf32>
    %42 = math.tanh %41 : vector<64x32xf32>
    %43 = arith.mulf %38, %42 : vector<64x32xf32>
    %44 = vector.extract_strided_slice %10 {offsets = [64, 0], sizes = [64, 128], strides = [1, 1]} : vector<512x128xf32> to vector<64x128xf32>
    %45 = arith.truncf %43 : vector<64x32xf32> to vector<64x32xbf16>
    %cst_20 = arith.constant dense<0.000000e+00> : vector<64x128xf32>
    %46 = tpu.matmul %45, %6, %cst_20 {dimension_numbers = #tpu.dot_dimension_numbers<[1], [0], [0], [1], [0, 0, 1, 1], [], []>} : vector<64x32xbf16>, vector<32x128xbf16>, vector<64x128xf32> -> vector<64x128xf32>
    %47 = arith.addf %44, %46 : vector<64x128xf32>
    %48 = arith.negf %47 : vector<64x128xf32>
    %49 = math.exp %48 : vector<64x128xf32>
    %cst_21 = arith.constant 1.000000e+00 : f32
    %50 = vector.broadcast %cst_21 : f32 to vector<64x128xf32>
    %51 = arith.addf %50, %49 : vector<64x128xf32>
    %52 = arith.divf %50, %51 : vector<64x128xf32>
    %53 = math.tanh %47 : vector<64x128xf32>
    %54 = vector.extract_strided_slice %52 {offsets = [0, 0], sizes = [64, 32], strides = [1, 1]} : vector<64x128xf32> to vector<64x32xf32>
    %55 = vector.extract_strided_slice %52 {offsets = [0, 32], sizes = [64, 32], strides = [1, 1]} : vector<64x128xf32> to vector<64x32xf32>
    %56 = vector.extract_strided_slice %53 {offsets = [0, 64], sizes = [64, 32], strides = [1, 1]} : vector<64x128xf32> to vector<64x32xf32>
    %57 = vector.extract_strided_slice %52 {offsets = [0, 96], sizes = [64, 32], strides = [1, 1]} : vector<64x128xf32> to vector<64x32xf32>
    %58 = arith.mulf %55, %41 : vector<64x32xf32>
    %59 = arith.mulf %54, %56 : vector<64x32xf32>
    %60 = arith.addf %58, %59 : vector<64x32xf32>
    %61 = math.tanh %60 : vector<64x32xf32>
    %62 = arith.mulf %57, %61 : vector<64x32xf32>
    %63 = vector.extract_strided_slice %10 {offsets = [128, 0], sizes = [64, 128], strides = [1, 1]} : vector<512x128xf32> to vector<64x128xf32>
    %64 = arith.truncf %62 : vector<64x32xf32> to vector<64x32xbf16>
    %cst_22 = arith.constant dense<0.000000e+00> : vector<64x128xf32>
    %65 = tpu.matmul %64, %6, %cst_22 {dimension_numbers = #tpu.dot_dimension_numbers<[1], [0], [0], [1], [0, 0, 1, 1], [], []>} : vector<64x32xbf16>, vector<32x128xbf16>, vector<64x128xf32> -> vector<64x128xf32>
    %66 = arith.addf %63, %65 : vector<64x128xf32>
    %67 = arith.negf %66 : vector<64x128xf32>
    %68 = math.exp %67 : vector<64x128xf32>
    %cst_23 = arith.constant 1.000000e+00 : f32
    %69 = vector.broadcast %cst_23 : f32 to vector<64x128xf32>
    %70 = arith.addf %69, %68 : vector<64x128xf32>
    %71 = arith.divf %69, %70 : vector<64x128xf32>
    %72 = math.tanh %66 : vector<64x128xf32>
    %73 = vector.extract_strided_slice %71 {offsets = [0, 0], sizes = [64, 32], strides = [1, 1]} : vector<64x128xf32> to vector<64x32xf32>
    %74 = vector.extract_strided_slice %71 {offsets = [0, 32], sizes = [64, 32], strides = [1, 1]} : vector<64x128xf32> to vector<64x32xf32>
    %75 = vector.extract_strided_slice %72 {offsets = [0, 64], sizes = [64, 32], strides = [1, 1]} : vector<64x128xf32> to vector<64x32xf32>
    %76 = vector.extract_strided_slice %71 {offsets = [0, 96], sizes = [64, 32], strides = [1, 1]} : vector<64x128xf32> to vector<64x32xf32>
    %77 = arith.mulf %74, %60 : vector<64x32xf32>
    %78 = arith.mulf %73, %75 : vector<64x32xf32>
    %79 = arith.addf %77, %78 : vector<64x32xf32>
    %80 = math.tanh %79 : vector<64x32xf32>
    %81 = arith.mulf %76, %80 : vector<64x32xf32>
    %82 = vector.extract_strided_slice %10 {offsets = [192, 0], sizes = [64, 128], strides = [1, 1]} : vector<512x128xf32> to vector<64x128xf32>
    %83 = arith.truncf %81 : vector<64x32xf32> to vector<64x32xbf16>
    %cst_24 = arith.constant dense<0.000000e+00> : vector<64x128xf32>
    %84 = tpu.matmul %83, %6, %cst_24 {dimension_numbers = #tpu.dot_dimension_numbers<[1], [0], [0], [1], [0, 0, 1, 1], [], []>} : vector<64x32xbf16>, vector<32x128xbf16>, vector<64x128xf32> -> vector<64x128xf32>
    %85 = arith.addf %82, %84 : vector<64x128xf32>
    %86 = arith.negf %85 : vector<64x128xf32>
    %87 = math.exp %86 : vector<64x128xf32>
    %cst_25 = arith.constant 1.000000e+00 : f32
    %88 = vector.broadcast %cst_25 : f32 to vector<64x128xf32>
    %89 = arith.addf %88, %87 : vector<64x128xf32>
    %90 = arith.divf %88, %89 : vector<64x128xf32>
    %91 = math.tanh %85 : vector<64x128xf32>
    %92 = vector.extract_strided_slice %90 {offsets = [0, 0], sizes = [64, 32], strides = [1, 1]} : vector<64x128xf32> to vector<64x32xf32>
    %93 = vector.extract_strided_slice %90 {offsets = [0, 32], sizes = [64, 32], strides = [1, 1]} : vector<64x128xf32> to vector<64x32xf32>
    %94 = vector.extract_strided_slice %91 {offsets = [0, 64], sizes = [64, 32], strides = [1, 1]} : vector<64x128xf32> to vector<64x32xf32>
    %95 = vector.extract_strided_slice %90 {offsets = [0, 96], sizes = [64, 32], strides = [1, 1]} : vector<64x128xf32> to vector<64x32xf32>
    %96 = arith.mulf %93, %79 : vector<64x32xf32>
    %97 = arith.mulf %92, %94 : vector<64x32xf32>
    %98 = arith.addf %96, %97 : vector<64x32xf32>
    %99 = math.tanh %98 : vector<64x32xf32>
    %100 = arith.mulf %95, %99 : vector<64x32xf32>
    %101 = vector.extract_strided_slice %10 {offsets = [256, 0], sizes = [64, 128], strides = [1, 1]} : vector<512x128xf32> to vector<64x128xf32>
    %102 = arith.truncf %100 : vector<64x32xf32> to vector<64x32xbf16>
    %cst_26 = arith.constant dense<0.000000e+00> : vector<64x128xf32>
    %103 = tpu.matmul %102, %6, %cst_26 {dimension_numbers = #tpu.dot_dimension_numbers<[1], [0], [0], [1], [0, 0, 1, 1], [], []>} : vector<64x32xbf16>, vector<32x128xbf16>, vector<64x128xf32> -> vector<64x128xf32>
    %104 = arith.addf %101, %103 : vector<64x128xf32>
    %105 = arith.negf %104 : vector<64x128xf32>
    %106 = math.exp %105 : vector<64x128xf32>
    %cst_27 = arith.constant 1.000000e+00 : f32
    %107 = vector.broadcast %cst_27 : f32 to vector<64x128xf32>
    %108 = arith.addf %107, %106 : vector<64x128xf32>
    %109 = arith.divf %107, %108 : vector<64x128xf32>
    %110 = math.tanh %104 : vector<64x128xf32>
    %111 = vector.extract_strided_slice %109 {offsets = [0, 0], sizes = [64, 32], strides = [1, 1]} : vector<64x128xf32> to vector<64x32xf32>
    %112 = vector.extract_strided_slice %109 {offsets = [0, 32], sizes = [64, 32], strides = [1, 1]} : vector<64x128xf32> to vector<64x32xf32>
    %113 = vector.extract_strided_slice %110 {offsets = [0, 64], sizes = [64, 32], strides = [1, 1]} : vector<64x128xf32> to vector<64x32xf32>
    %114 = vector.extract_strided_slice %109 {offsets = [0, 96], sizes = [64, 32], strides = [1, 1]} : vector<64x128xf32> to vector<64x32xf32>
    %115 = arith.mulf %112, %98 : vector<64x32xf32>
    %116 = arith.mulf %111, %113 : vector<64x32xf32>
    %117 = arith.addf %115, %116 : vector<64x32xf32>
    %118 = math.tanh %117 : vector<64x32xf32>
    %119 = arith.mulf %114, %118 : vector<64x32xf32>
    %120 = vector.extract_strided_slice %10 {offsets = [320, 0], sizes = [64, 128], strides = [1, 1]} : vector<512x128xf32> to vector<64x128xf32>
    %121 = arith.truncf %119 : vector<64x32xf32> to vector<64x32xbf16>
    %cst_28 = arith.constant dense<0.000000e+00> : vector<64x128xf32>
    %122 = tpu.matmul %121, %6, %cst_28 {dimension_numbers = #tpu.dot_dimension_numbers<[1], [0], [0], [1], [0, 0, 1, 1], [], []>} : vector<64x32xbf16>, vector<32x128xbf16>, vector<64x128xf32> -> vector<64x128xf32>
    %123 = arith.addf %120, %122 : vector<64x128xf32>
    %124 = arith.negf %123 : vector<64x128xf32>
    %125 = math.exp %124 : vector<64x128xf32>
    %cst_29 = arith.constant 1.000000e+00 : f32
    %126 = vector.broadcast %cst_29 : f32 to vector<64x128xf32>
    %127 = arith.addf %126, %125 : vector<64x128xf32>
    %128 = arith.divf %126, %127 : vector<64x128xf32>
    %129 = math.tanh %123 : vector<64x128xf32>
    %130 = vector.extract_strided_slice %128 {offsets = [0, 0], sizes = [64, 32], strides = [1, 1]} : vector<64x128xf32> to vector<64x32xf32>
    %131 = vector.extract_strided_slice %128 {offsets = [0, 32], sizes = [64, 32], strides = [1, 1]} : vector<64x128xf32> to vector<64x32xf32>
    %132 = vector.extract_strided_slice %129 {offsets = [0, 64], sizes = [64, 32], strides = [1, 1]} : vector<64x128xf32> to vector<64x32xf32>
    %133 = vector.extract_strided_slice %128 {offsets = [0, 96], sizes = [64, 32], strides = [1, 1]} : vector<64x128xf32> to vector<64x32xf32>
    %134 = arith.mulf %131, %117 : vector<64x32xf32>
    %135 = arith.mulf %130, %132 : vector<64x32xf32>
    %136 = arith.addf %134, %135 : vector<64x32xf32>
    %137 = math.tanh %136 : vector<64x32xf32>
    %138 = arith.mulf %133, %137 : vector<64x32xf32>
    %139 = vector.extract_strided_slice %10 {offsets = [384, 0], sizes = [64, 128], strides = [1, 1]} : vector<512x128xf32> to vector<64x128xf32>
    %140 = arith.truncf %138 : vector<64x32xf32> to vector<64x32xbf16>
    %cst_30 = arith.constant dense<0.000000e+00> : vector<64x128xf32>
    %141 = tpu.matmul %140, %6, %cst_30 {dimension_numbers = #tpu.dot_dimension_numbers<[1], [0], [0], [1], [0, 0, 1, 1], [], []>} : vector<64x32xbf16>, vector<32x128xbf16>, vector<64x128xf32> -> vector<64x128xf32>
    %142 = arith.addf %139, %141 : vector<64x128xf32>
    %143 = arith.negf %142 : vector<64x128xf32>
    %144 = math.exp %143 : vector<64x128xf32>
    %cst_31 = arith.constant 1.000000e+00 : f32
    %145 = vector.broadcast %cst_31 : f32 to vector<64x128xf32>
    %146 = arith.addf %145, %144 : vector<64x128xf32>
    %147 = arith.divf %145, %146 : vector<64x128xf32>
    %148 = math.tanh %142 : vector<64x128xf32>
    %149 = vector.extract_strided_slice %147 {offsets = [0, 0], sizes = [64, 32], strides = [1, 1]} : vector<64x128xf32> to vector<64x32xf32>
    %150 = vector.extract_strided_slice %147 {offsets = [0, 32], sizes = [64, 32], strides = [1, 1]} : vector<64x128xf32> to vector<64x32xf32>
    %151 = vector.extract_strided_slice %148 {offsets = [0, 64], sizes = [64, 32], strides = [1, 1]} : vector<64x128xf32> to vector<64x32xf32>
    %152 = vector.extract_strided_slice %147 {offsets = [0, 96], sizes = [64, 32], strides = [1, 1]} : vector<64x128xf32> to vector<64x32xf32>
    %153 = arith.mulf %150, %136 : vector<64x32xf32>
    %154 = arith.mulf %149, %151 : vector<64x32xf32>
    %155 = arith.addf %153, %154 : vector<64x32xf32>
    %156 = math.tanh %155 : vector<64x32xf32>
    %157 = arith.mulf %152, %156 : vector<64x32xf32>
    %158 = vector.extract_strided_slice %10 {offsets = [448, 0], sizes = [64, 128], strides = [1, 1]} : vector<512x128xf32> to vector<64x128xf32>
    %159 = arith.truncf %157 : vector<64x32xf32> to vector<64x32xbf16>
    %cst_32 = arith.constant dense<0.000000e+00> : vector<64x128xf32>
    %160 = tpu.matmul %159, %6, %cst_32 {dimension_numbers = #tpu.dot_dimension_numbers<[1], [0], [0], [1], [0, 0, 1, 1], [], []>} : vector<64x32xbf16>, vector<32x128xbf16>, vector<64x128xf32> -> vector<64x128xf32>
    %161 = arith.addf %158, %160 : vector<64x128xf32>
    %162 = arith.negf %161 : vector<64x128xf32>
    %163 = math.exp %162 : vector<64x128xf32>
    %cst_33 = arith.constant 1.000000e+00 : f32
    %164 = vector.broadcast %cst_33 : f32 to vector<64x128xf32>
    %165 = arith.addf %164, %163 : vector<64x128xf32>
    %166 = arith.divf %164, %165 : vector<64x128xf32>
    %167 = math.tanh %161 : vector<64x128xf32>
    %168 = vector.extract_strided_slice %166 {offsets = [0, 0], sizes = [64, 32], strides = [1, 1]} : vector<64x128xf32> to vector<64x32xf32>
    %169 = vector.extract_strided_slice %166 {offsets = [0, 32], sizes = [64, 32], strides = [1, 1]} : vector<64x128xf32> to vector<64x32xf32>
    %170 = vector.extract_strided_slice %167 {offsets = [0, 64], sizes = [64, 32], strides = [1, 1]} : vector<64x128xf32> to vector<64x32xf32>
    %171 = vector.extract_strided_slice %166 {offsets = [0, 96], sizes = [64, 32], strides = [1, 1]} : vector<64x128xf32> to vector<64x32xf32>
    %172 = arith.mulf %169, %155 : vector<64x32xf32>
    %173 = arith.mulf %168, %170 : vector<64x32xf32>
    %174 = arith.addf %172, %173 : vector<64x32xf32>
    %175 = math.tanh %174 : vector<64x32xf32>
    %176 = arith.mulf %171, %175 : vector<64x32xf32>
    %c192 = arith.constant 192 : index
    %c0_34 = arith.constant 0 : index
    %177 = vector.load %arg3[%c192, %c0_34] : memref<360x128xf32, #tpu.memory_space<vmem>>, vector<32x128xf32>
    %cst_35 = arith.constant dense<0.000000e+00> : vector<64x128xf32>
    %178 = tpu.matmul %176, %177, %cst_35 {dimension_numbers = #tpu.dot_dimension_numbers<[1], [0], [0], [1], [0, 0, 1, 1], [], []>} : vector<64x32xf32>, vector<32x128xf32>, vector<64x128xf32> -> vector<64x128xf32>
    %179 = arith.addf %178, %22 : vector<64x128xf32>
    %c0_36 = arith.constant 0 : index
    %c0_37 = arith.constant 0 : index
    %c0_38 = arith.constant 0 : index
    %180 = vector.load %arg4[%c0_36, %c0_37, %c0_38] : memref<1x64x128xf32, #tpu.memory_space<vmem>>, vector<1x64x128xf32>
    %181 = vector.shape_cast %180 : vector<1x64x128xf32> to vector<64x128xf32>
    %182 = vector.shape_cast %179 : vector<64x128xf32> to vector<1x64x128xf32>
    tpu.vector_store %arg4[%c0_36, %c0_37, %c0_38], %182 {strides = array<i32>} : memref<1x64x128xf32, #tpu.memory_space<vmem>>, vector<1x64x128xf32>,
    return
  }
  func.func @transform_0(%arg0: i32) -> (i32, i32, i32) {
    %c0_i32 = arith.constant 0 : i32
    %c0_i32_0 = arith.constant 0 : i32
    %c0_i32_1 = arith.constant 0 : i32
    return %arg0, %c0_i32, %c0_i32_0 : i32, i32, i32
  }
  func.func @transform_1(%arg0: i32) -> (i32, i32, i32) {
    %c0_i32 = arith.constant 0 : i32
    %c0_i32_0 = arith.constant 0 : i32
    %c0_i32_1 = arith.constant 0 : i32
    return %arg0, %c0_i32, %c0_i32_0 : i32, i32, i32
  }
  func.func @transform_2(%arg0: i32) -> (i32, i32) {
    %c0_i32 = arith.constant 0 : i32
    %c0_i32_0 = arith.constant 0 : i32
    %c0_i32_1 = arith.constant 0 : i32
    return %c0_i32, %c0_i32_0 : i32, i32
  }
  func.func @transform_3(%arg0: i32) -> (i32, i32, i32) {
    %c0_i32 = arith.constant 0 : i32
    %c0_i32_0 = arith.constant 0 : i32
    %c0_i32_1 = arith.constant 0 : i32
    return %arg0, %c0_i32, %c0_i32_0 : i32, i32, i32
  }
}

</mosaic_0001>

<llo_original>
// kernel: ensemble_forward.1
$region0: #{ensemble_forward.1}
  #allocation0 [shape = 'u32[]', space=smem, size = 0x4, offset = 0x4, fixed_abs, tag = 'smem constant byte address 0x4 - core index']
  #allocation1 [shape = 'u32[144,128]{1,0:T(1,128)}', space=vmem, size = 0x12000, scoped, tag = 'internal scratch']
  %s0 = inlined_call_operand.vmem [shape: f32[4,512,16], index: 0, kind: input, shape index: {}]
  %s1 = inlined_call_operand.vmem [shape: f32[4,64,128], index: 1, kind: input, shape index: {}]
  %s2 = inlined_call_operand.vmem [shape: f32[360,128], index: 2, kind: input, shape index: {}]
  %s3 = inlined_call_operand.vmem [shape: f32[4,64,128], index: 3, kind: output, shape index: {}]
  %s4 = sld [smem:[#allocation0]]
  $region45: #{ensemble_forward.1} parent=0
    _
  %s6 = ssub.s32 1, %s4
  %s7 = scalar_select 0, %s6, %s4
  loop: start=0, step=1, limit=6
  $region2: #{ensemble_forward.1} parent=0 // loop_pre_header
    _
  $region3: #{ensemble_forward.1} parent=0 // loop_header
    %s9 = sphi 0, %s13
    %p10 = scmp.ge.s32.totalorder %s9, 6
    %s19 = sphi 0, %s21
    %s22 = sphi 0, %s19
    %s23 = sphi 0, %s22
    %s39 = sphi 0, %s23
    %s45 = sphi 0, %s47
    %s48 = sphi 0, %s45
    %s49 = sphi 0, %s48
    %s65 = sphi 0, %s49
    %s69 = sphi 0, %s69
    %s71 = sphi 0, %s69
    %s72 = sphi 0, %s71
    %s86 = sphi 0, %s72
    %s92 = sphi 0, %s94
    %s95 = sphi 0, %s92
    %s96 = sphi 0, %s95
    %s112 = sphi 0, %s96
  $region4: #{ensemble_forward.1} parent=0 // loop_header_branch
    %12 = sbr.rel (%p10) target = $region8
  $region5: #{ensemble_forward.1} parent=0 // loop_body
    %s14 = ssub.s32 %s9, 1
    %s15 = ssub.s32 %s9, 2
    %s16 = sadd.s32 %s9, 1
    %s17 = ssub.s32 %s9, %s16
    %p18 = scmp.eq.s32.totalorder %s17, 0
    %s20 = sadd.s32 %s19, 1
    %s21 = scalar_select %p18, %s19, %s20
    %p24 = pneg %p18
    %p25 = scmp.eq.s32.totalorder %s9, 3
    %p26 = por %p24, %p25
    %p27 = scmp.ne.s32.totalorder %s19, %s22
    %p28 = scmp.eq.s32.totalorder %s9, 0
    %p29 = por %p27, %p28
    %p30 = scmp.ne.s32.totalorder %s19, %s22
    %p31 = scmp.eq.s32.totalorder %s14, 3
    %p32 = por %p30, %p31
    %p33 = scmp.ne.s32.totalorder %s22, %s23
    %p34 = scmp.eq.s32.totalorder %s14, 0
    %p35 = por %p33, %p34
    %p36 = scmp.ne.s32.totalorder %s22, %s23
    %p37 = scmp.eq.s32.totalorder %s15, 3
    %p38 = por %p36, %p37
    %p40 = scmp.ne.s32.totalorder %s23, %s39
    %p41 = scmp.eq.s32.totalorder %s15, 0
    %p42 = por %p40, %p41
    %s43 = ssub.s32 %s9, %s16
    %p44 = scmp.eq.s32.totalorder %s43, 0
    %s46 = sadd.s32 %s45, 1
    %s47 = scalar_select %p44, %s45, %s46
    %p50 = pneg %p44
    %p51 = scmp.eq.s32.totalorder %s9, 3
    %p52 = por %p50, %p51
    %p53 = scmp.ne.s32.totalorder %s45, %s48
    %p54 = scmp.eq.s32.totalorder %s9, 0
    %p55 = por %p53, %p54
    %p56 = scmp.ne.s32.totalorder %s45, %s48
    %p57 = scmp.eq.s32.totalorder %s14, 3
    %p58 = por %p56, %p57
    %p59 = scmp.ne.s32.totalorder %s48, %s49
    %p60 = scmp.eq.s32.totalorder %s14, 0
    %p61 = por %p59, %p60
    %p62 = scmp.ne.s32.totalorder %s48, %s49
    %p63 = scmp.eq.s32.totalorder %s15, 3
    %p64 = por %p62, %p63
    %p66 = scmp.ne.s32.totalorder %s49, %s65
    %p67 = scmp.eq.s32.totalorder %s15, 0
    %p68 = por %p66, %p67
    %s70 = sadd.s32 %s69, 1
    %p73 = scmp.eq.s32.totalorder %s9, 3
    %p74 = scmp.ne.s32.totalorder %s69, %s71
    %p75 = scmp.eq.s32.totalorder %s9, 0
    %p76 = por %p74, %p75
    %p77 = scmp.ne.s32.totalorder %s69, %s71
    %p78 = scmp.eq.s32.totalorder %s14, 3
    %p79 = por %p77, %p78
    %p80 = scmp.ne.s32.totalorder %s71, %s72
    %p81 = scmp.eq.s32.totalorder %s14, 0
    %p82 = por %p80, %p81
    %p83 = scmp.ne.s32.totalorder %s71, %s72
    %p84 = scmp.eq.s32.totalorder %s15, 3
    %p85 = por %p83, %p84
    %p87 = scmp.ne.s32.totalorder %s72, %s86
    %p88 = scmp.eq.s32.totalorder %s15, 0
    %p89 = por %p87, %p88
    %s90 = ssub.s32 %s9, %s16
    %p91 = scmp.eq.s32.totalorder %s90, 0
    %s93 = sadd.s32 %s92, 1
    %s94 = scalar_select %p91, %s92, %s93
    %p97 = pneg %p91
    %p98 = scmp.eq.s32.totalorder %s9, 3
    %p99 = por %p97, %p98
    %p100 = scmp.ne.s32.totalorder %s92, %s95
    %p101 = scmp.eq.s32.totalorder %s9, 0
    %p102 = por %p100, %p101
    %p103 = scmp.ne.s32.totalorder %s92, %s95
    %p104 = scmp.eq.s32.totalorder %s14, 3
    %p105 = por %p103, %p104
    %p106 = scmp.ne.s32.totalorder %s95, %s96
    %p107 = scmp.eq.s32.totalorder %s14, 0
    %p108 = por %p106, %p107
    %p109 = scmp.ne.s32.totalorder %s95, %s96
    %p110 = scmp.eq.s32.totalorder %s15, 3
    %p111 = por %p109, %p110
    %p113 = scmp.ne.s32.totalorder %s96, %s112
    %p114 = scmp.eq.s32.totalorder %s15, 0
    %p115 = por %p113, %p114
    %p116 = scmp.le.s32.totalorder 1, %s9
    %p117 = scmp.lt.s32.totalorder %s9, 5
    %p118 = pnand %p116, %p117
    %p119 = pneg %p118
    // Predicated region
    $region9: #{ensemble_forward.1} parent=5 // pred_check
      _
    $region10: #{ensemble_forward.1} parent=5 // pred_check_branch
      %121 = sbr.rel (%p118) target = $region12
    $region11: #{ensemble_forward.1} parent=5 // pred_region
      %s122 = ssub.s32 %s9, 1
      // Predicated region
      $region13: #{ensemble_forward.1} parent=11 // pred_check
        %p123 = pneg %p82
      $region14: #{ensemble_forward.1} parent=11 // pred_check_branch
        %125 = sbr.rel (%p123) target = $region16
      $region15: #{ensemble_forward.1} parent=11 // pred_region
        _
      $region16: #{ensemble_forward.1} parent=11 // pred_fallthru
        _
    $region12: #{ensemble_forward.1} parent=5 // pred_fallthru
      _
    %p126 = scmp.lt.s32.totalorder %s9, 4
    // Predicated region
    $region17: #{ensemble_forward.1} parent=5 // pred_check
      %p127 = pneg %p126
    $region18: #{ensemble_forward.1} parent=5 // pred_check_branch
      %129 = sbr.rel (%p127) target = $region20
    $region19: #{ensemble_forward.1} parent=5 // pred_region
      // Predicated region
      $region21: #{ensemble_forward.1} parent=19 // pred_check
        %p130 = pneg %p29
      $region22: #{ensemble_forward.1} parent=19 // pred_check_branch
        %132 = sbr.rel (%p130) target = $region24
      $region23: #{ensemble_forward.1} parent=19 // pred_region
        %p133 = scmp.lt.s32.totalorder %s9, 3
        %s134 = scalar_select %p133, %s9, 3
        %s135 = smul.addr %s134, 64
        %s136 = smul.addr %s135, 8
        %s137 = scalar_lea.vmem %s0, %s136
      $region24: #{ensemble_forward.1} parent=19 // pred_fallthru
        _
      // Predicated region
      $region25: #{ensemble_forward.1} parent=19 // pred_check
        %p138 = pneg %p55
      $region26: #{ensemble_forward.1} parent=19 // pred_check_branch
        %140 = sbr.rel (%p138) target = $region28
      $region27: #{ensemble_forward.1} parent=19 // pred_region
        %p141 = scmp.lt.s32.totalorder %s9, 3
        %s142 = scalar_select %p141, %s9, 3
        %s143 = smul.addr %s142, 8
        %s144 = smul.addr %s143, 8
        %s145 = scalar_lea.vmem %s1, %s144
      $region28: #{ensemble_forward.1} parent=19 // pred_fallthru
        _
    $region20: #{ensemble_forward.1} parent=5 // pred_fallthru
      _
    %p146 = scmp.le.s32.totalorder 1, %s9
    %p147 = scmp.lt.s32.totalorder %s9, 5
    %p148 = pnand %p146, %p147
    %p149 = pneg %p148
    // Predicated region
    $region29: #{ensemble_forward.1} parent=5 // pred_check
      _
    $region30: #{ensemble_forward.1} parent=5 // pred_check_branch
      %151 = sbr.rel (%p148) target = $region32
    $region31: #{ensemble_forward.1} parent=5 // pred_region
      %s152 = ssub.s32 %s9, 1
      %p153 = scmp.lt.s32.totalorder %s14, 3
      %s154 = scalar_select %p153, %s14, 3
      %s155 = smul.addr %s154, 64
      %s156 = smul.addr %s155, 8
      %s157 = scalar_lea.vmem %s0, %s156
      %p158 = pneg %p35
      %p159 = pneg %p32
      %p160 = scmp.lt.s32.totalorder %s14, 3
      %s161 = scalar_select %p160, %s14, 3
      %s162 = smul.addr %s161, 8
      %s163 = smul.addr %s162, 8
      %s164 = scalar_lea.vmem %s1, %s163
      %p165 = pneg %p61
      %p166 = pneg %p58
      %p167 = pneg %p82
      %p168 = pneg %p79
      %p169 = pneg %p108
      %p170 = pneg %p105
      %p171 = scmp.lt.s32.totalorder %s14, 3
      %s172 = scalar_select %p171, %s14, 3
      %s173 = smul.addr %s172, 8
      %s174 = smul.addr %s173, 8
      %s175 = scalar_lea.vmem %s3, %s174
      %p176 = scmp.lt.s32.totalorder %s14, 3
      %s177 = scalar_select %p176, %s14, 3
      %s178 = smul.addr %s177, 64
      %s179 = smul.addr %s178, 8
      %s180 = scalar_lea.vmem %s0, %s179
      %p181 = scmp.lt.s32.totalorder %s14, 3
      %s182 = scalar_select %p181, %s14, 3
      %s183 = smul.addr %s182, 8
      %s184 = smul.addr %s183, 8
      %s185 = scalar_lea.vmem %s1, %s184
      %p186 = scmp.lt.s32.totalorder %s14, 3
      %s187 = scalar_select %p186, %s14, 3
      %s188 = smul.addr %s187, 8
      %s189 = smul.addr %s188, 8
      %s190 = scalar_lea.vmem %s3, %s189
      %v192 = vld [vmem:[%s180] sm:$0xff]
      %v193 = vld [vmem:[%s180 + $0x8] sm:$0xff]
      %v194 = vld [vmem:[%s180 + $0x10] sm:$0xff]
      %v195 = vld [vmem:[%s180 + $0x18] sm:$0xff]
      %v196 = vld [vmem:[%s180 + $0x20] sm:$0xff]
      %v197 = vld [vmem:[%s180 + $0x28] sm:$0xff]
      %v198 = vld [vmem:[%s180 + $0x30] sm:$0xff]
      %v199 = vld [vmem:[%s180 + $0x38] sm:$0xff]
      %v200 = vld [vmem:[%s180 + $0x40] sm:$0xff]
      %v201 = vld [vmem:[%s180 + $0x48] sm:$0xff]
      %v202 = vld [vmem:[%s180 + $0x50] sm:$0xff]
      %v203 = vld [vmem:[%s180 + $0x58] sm:$0xff]
      %v204 = vld [vmem:[%s180 + $0x60] sm:$0xff]
      %v205 = vld [vmem:[%s180 + $0x68] sm:$0xff]
      %v206 = vld [vmem:[%s180 + $0x70] sm:$0xff]
      %v207 = vld [vmem:[%s180 + $0x78] sm:$0xff]
      %v208 = vld [vmem:[%s180 + $0x80] sm:$0xff]
      %v209 = vld [vmem:[%s180 + $0x88] sm:$0xff]
      %v210 = vld [vmem:[%s180 + $0x90] sm:$0xff]
      %v211 = vld [vmem:[%s180 + $0x98] sm:$0xff]
      %v212 = vld [vmem:[%s180 + $0xa0] sm:$0xff]
      %v213 = vld [vmem:[%s180 + $0xa8] sm:$0xff]
      %v214 = vld [vmem:[%s180 + $0xb0] sm:$0xff]
      %v215 = vld [vmem:[%s180 + $0xb8] sm:$0xff]
      %v216 = vld [vmem:[%s180 + $0xc0] sm:$0xff]
      %v217 = vld [vmem:[%s180 + $0xc8] sm:$0xff]
      %v218 = vld [vmem:[%s180 + $0xd0] sm:$0xff]
      %v219 = vld [vmem:[%s180 + $0xd8] sm:$0xff]
      %v220 = vld [vmem:[%s180 + $0xe0] sm:$0xff]
      %v221 = vld [vmem:[%s180 + $0xe8] sm:$0xff]
      %v222 = vld [vmem:[%s180 + $0xf0] sm:$0xff]
      %v223 = vld [vmem:[%s180 + $0xf8] sm:$0xff]
      %v224 = vld [vmem:[%s180 + $0x100] sm:$0xff]
      %v225 = vld [vmem:[%s180 + $0x108] sm:$0xff]
      %v226 = vld [vmem:[%s180 + $0x110] sm:$0xff]
      %v227 = vld [vmem:[%s180 + $0x118] sm:$0xff]
      %v228 = vld [vmem:[%s180 + $0x120] sm:$0xff]
      %v229 = vld [vmem:[%s180 + $0x128] sm:$0xff]
      %v230 = vld [vmem:[%s180 + $0x130] sm:$0xff]
      %v231 = vld [vmem:[%s180 + $0x138] sm:$0xff]
      %v232 = vld [vmem:[%s180 + $0x140] sm:$0xff]
      %v233 = vld [vmem:[%s180 + $0x148] sm:$0xff]
      %v234 = vld [vmem:[%s180 + $0x150] sm:$0xff]
      %v235 = vld [vmem:[%s180 + $0x158] sm:$0xff]
      %v236 = vld [vmem:[%s180 + $0x160] sm:$0xff]
      %v237 = vld [vmem:[%s180 + $0x168] sm:$0xff]
      %v238 = vld [vmem:[%s180 + $0x170] sm:$0xff]
      %v239 = vld [vmem:[%s180 + $0x178] sm:$0xff]
      %v240 = vld [vmem:[%s180 + $0x180] sm:$0xff]
      %v241 = vld [vmem:[%s180 + $0x188] sm:$0xff]
      %v242 = vld [vmem:[%s180 + $0x190] sm:$0xff]
      %v243 = vld [vmem:[%s180 + $0x198] sm:$0xff]
      %v244 = vld [vmem:[%s180 + $0x1a0] sm:$0xff]
      %v245 = vld [vmem:[%s180 + $0x1a8] sm:$0xff]
      %v246 = vld [vmem:[%s180 + $0x1b0] sm:$0xff]
      %v247 = vld [vmem:[%s180 + $0x1b8] sm:$0xff]
      %v248 = vld [vmem:[%s180 + $0x1c0] sm:$0xff]
      %v249 = vld [vmem:[%s180 + $0x1c8] sm:$0xff]
      %v250 = vld [vmem:[%s180 + $0x1d0] sm:$0xff]
      %v251 = vld [vmem:[%s180 + $0x1d8] sm:$0xff]
      %v252 = vld [vmem:[%s180 + $0x1e0] sm:$0xff]
      %v253 = vld [vmem:[%s180 + $0x1e8] sm:$0xff]
      %v254 = vld [vmem:[%s180 + $0x1f0] sm:$0xff]
      %v255 = vld [vmem:[%s180 + $0x1f8] sm:$0xff]
      %v256 = vld [vmem:[%s185] sm:$0xff]
      %v257 = vld [vmem:[%s185 + $0x8] sm:$0xff]
      %v258 = vld [vmem:[%s185 + $0x10] sm:$0xff]
      %v259 = vld [vmem:[%s185 + $0x18] sm:$0xff]
      %v260 = vld [vmem:[%s185 + $0x20] sm:$0xff]
      %v261 = vld [vmem:[%s185 + $0x28] sm:$0xff]
      %v262 = vld [vmem:[%s185 + $0x30] sm:$0xff]
      %v263 = vld [vmem:[%s185 + $0x38] sm:$0xff]
      %v264 = vld [vmem:[%s2] sm:$0xff]
      %v265 = vld [vmem:[%s2 + $0x8] sm:$0xff]
      %v266 = vld [vmem:[%s2 + $0x10] sm:$0xff]
      %v267 = vld [vmem:[%s2 + $0x18] sm:$0xff]
      %v268 = vld [vmem:[%s2 + $0x20] sm:$0xff]
      %v269 = vld [vmem:[%s2 + $0x28] sm:$0xff]
      %v270 = vpack.c.bf16 %v267, %v266
      %v271 = vpack.c.bf16 %v269, %v268
      %v272 = vld [vmem:[%s2 + $0x30] sm:$0x1]
      %v273 = vlaneseq
      %v274 = vshrl.u32 %v273, 7
      %v275 = vsub.s32 0, %v274
      %v276 = vrot.slane %v272, %v275
      %vm277 = vcmask 130048
      %v279 = vsel %vm277, %v192, 0
      %v282 = vsel %vm277, %v193, 0
      %v285 = vsel %vm277, %v194, 0
      %v288 = vsel %vm277, %v195, 0
      %v291 = vsel %vm277, %v196, 0
      %v294 = vsel %vm277, %v197, 0
      %v297 = vsel %vm277, %v198, 0
      %v300 = vsel %vm277, %v199, 0
      %v303 = vsel %vm277, %v200, 0
      %v306 = vsel %vm277, %v201, 0
      %v309 = vsel %vm277, %v202, 0
      %v312 = vsel %vm277, %v203, 0
      %v315 = vsel %vm277, %v204, 0
      %v318 = vsel %vm277, %v205, 0
      %v321 = vsel %vm277, %v206, 0
      %v324 = vsel %vm277, %v207, 0
      %v327 = vsel %vm277, %v208, 0
      %v330 = vsel %vm277, %v209, 0
      %v333 = vsel %vm277, %v210, 0
      %v336 = vsel %vm277, %v211, 0
      %v339 = vsel %vm277, %v212, 0
      %v342 = vsel %vm277, %v213, 0
      %v345 = vsel %vm277, %v214, 0
      %v348 = vsel %vm277, %v215, 0
      %v351 = vsel %vm277, %v216, 0
      %v354 = vsel %vm277, %v217, 0
      %v357 = vsel %vm277, %v218, 0
      %v360 = vsel %vm277, %v219, 0
      %v363 = vsel %vm277, %v220, 0
      %v366 = vsel %vm277, %v221, 0
      %v369 = vsel %vm277, %v222, 0
      %v372 = vsel %vm277, %v223, 0
      %v375 = vsel %vm277, %v224, 0
      %v378 = vsel %vm277, %v225, 0
      %v381 = vsel %vm277, %v226, 0
      %v384 = vsel %vm277, %v227, 0
      %v387 = vsel %vm277, %v228, 0
      %v390 = vsel %vm277, %v229, 0
      %v393 = vsel %vm277, %v230, 0
      %v396 = vsel %vm277, %v231, 0
      %v399 = vsel %vm277, %v232, 0
      %v402 = vsel %vm277, %v233, 0
      %v405 = vsel %vm277, %v234, 0
      %v408 = vsel %vm277, %v235, 0
      %v411 = vsel %vm277, %v236, 0
      %v414 = vsel %vm277, %v237, 0
      %v417 = vsel %vm277, %v238, 0
      %v420 = vsel %vm277, %v239, 0
      %v423 = vsel %vm277, %v240, 0
      %v426 = vsel %vm277, %v241, 0
      %v429 = vsel %vm277, %v242, 0
      %v432 = vsel %vm277, %v243, 0
      %v435 = vsel %vm277, %v244, 0
      %v438 = vsel %vm277, %v245, 0
      %v441 = vsel %vm277, %v246, 0
      %v444 = vsel %vm277, %v247, 0
      %v447 = vsel %vm277, %v248, 0
      %v450 = vsel %vm277, %v249, 0
      %v453 = vsel %vm277, %v250, 0
      %v456 = vsel %vm277, %v251, 0
      %v459 = vsel %vm277, %v252, 0
      %v462 = vsel %vm277, %v253, 0
      %v465 = vsel %vm277, %v254, 0
      %v468 = vsel %vm277, %v255, 0
      %470 = vmatprep.subr.mxu0 0.0
      %471 = vmatpush1.msra.mxu0 0.0
      %472 = vmatprep.subr.mxu0 0.0
      %473 = vmatpush1.msra.mxu0 0.0
      %474 = vmatprep.subr.mxu0 0.0
      %475 = vmatpush1.msra.mxu0 0.0
      %476 = vmatprep.subr.mxu0 0.0
      %477 = vmatpush1.msra.mxu0 0.0
      %478 = vmatprep.subr.mxu0 0.0
      %479 = vmatpush1.msra.mxu0 0.0
      %480 = vmatprep.subr.mxu0 0.0
      %481 = vmatpush1.msra.mxu0 0.0
      %482 = vmatprep.subr.mxu0 0.0
      %483 = vmatpush1.msra.mxu0 0.0
      %484 = vmatprep.subr.mxu0 0.0
      %485 = vmatpush1.msra.mxu0 0.0
      %486 = vmatprep.subr.mxu0 0.0
      %487 = vmatpush1.msra.mxu0 0.0
      %488 = vmatprep.subr.mxu0 0.0
      %489 = vmatpush1.msra.mxu0 0.0
      %490 = vmatprep.subr.mxu0 0.0
      %491 = vmatpush1.msra.mxu0 0.0
      %492 = vmatprep.subr.mxu0 0.0
      %493 = vmatpush1.msra.mxu0 0.0
      %494 = vmatprep.subr.mxu0 0.0
      %495 = vmatpush1.msra.mxu0 0.0
      %496 = vmatprep.subr.mxu0 0.0
      %497 = vmatpush1.msra.mxu0 0.0
      %498 = vmatprep.subr.mxu0 0.0
      %499 = vmatpush1.msra.mxu0 %v265
      %500 = vmatprep.subr.mxu0 0.0
      %501 = vmatpush1.msra.mxu0 %v264
      %502 = vmatprep.subr.mxu0 0.0
      %503 = vmatpush2.msra.mxu0 0.0
      %504 = vmatprep.subr.mxu0 0.0
      %505 = vmatpush2.msra.mxu0 0.0
      %506 = vmatprep.subr.mxu0 0.0
      %507 = vmatpush2.msra.mxu0 0.0
      %508 = vmatprep.subr.mxu0 0.0
      %509 = vmatpush2.msra.mxu0 0.0
      %510 = vmatprep.subr.mxu0 0.0
      %511 = vmatpush2.msra.mxu0 0.0
      %512 = vmatprep.subr.mxu0 0.0
      %513 = vmatpush2.msra.mxu0 0.0
      %514 = vmatprep.subr.mxu0 0.0
      %515 = vmatpush2.msra.mxu0 0.0
      %516 = vmatprep.subr.mxu0 0.0
      %517 = vmatpush2.msra.mxu0 0.0
      %518 = vmatprep.subr.mxu0 0.0
      %519 = vmatpush2.msra.mxu0 0.0
      %520 = vmatprep.subr.mxu0 0.0
      %521 = vmatpush2.msra.mxu0 0.0
      %522 = vmatprep.subr.mxu0 0.0
      %523 = vmatpush2.msra.mxu0 0.0
      %524 = vmatprep.subr.mxu0 0.0
      %525 = vmatpush2.msra.mxu0 0.0
      %526 = vmatprep.subr.mxu0 0.0
      %527 = vmatpush2.msra.mxu0 0.0
      %528 = vmatprep.subr.mxu0 0.0
      %529 = vmatpush2.msra.mxu0 0.0
      %530 = vmatprep.subr.mxu0 0.0
      %531 = vmatpush2.msra.mxu0 0.0
      %532 = vmatprep.subr.mxu0 0.0
      %533 = vmatpush2.msra.mxu0 0.0
      %534 = vmatprep.mubr.f32.mxu0 0.0
      %535 = vmatmul.mubr.f32.gmra.mxu0 %v279
      %v536 = vpop.f32.mrf.mxu0
      %v537 = vadd.f32 %v276, %v536
      %v538 = vpop.f32.mrf.mxu0
      %539 = vmatprep.mubr.f32.mxu0 0.0
      %540 = vmatmul.mubr.f32.gmra.mxu0 %v282
      %v541 = vpop.f32.mrf.mxu0
      %v542 = vadd.f32 %v276, %v541
      %v543 = vpop.f32.mrf.mxu0
      %544 = vmatprep.mubr.f32.mxu0 0.0
      %545 = vmatmul.mubr.f32.gmra.mxu0 %v285
      %v546 = vpop.f32.mrf.mxu0
      %v547 = vadd.f32 %v276, %v546
      %v548 = vpop.f32.mrf.mxu0
      %549 = vmatprep.mubr.f32.mxu0 0.0
      %550 = vmatmul.mubr.f32.gmra.mxu0 %v288
      %v551 = vpop.f32.mrf.mxu0
      %v552 = vadd.f32 %v276, %v551
      %v553 = vpop.f32.mrf.mxu0
      %554 = vmatprep.mubr.f32.mxu0 0.0
      %555 = vmatmul.mubr.f32.gmra.mxu0 %v291
      %v556 = vpop.f32.mrf.mxu0
      %v557 = vadd.f32 %v276, %v556
      %v558 = vpop.f32.mrf.mxu0
      %559 = vmatprep.mubr.f32.mxu0 0.0
      %560 = vmatmul.mubr.f32.gmra.mxu0 %v294
      %v561 = vpop.f32.mrf.mxu0
      %v562 = vadd.f32 %v276, %v561
      %v563 = vpop.f32.mrf.mxu0
      %564 = vmatprep.mubr.f32.mxu0 0.0
      %565 = vmatmul.mubr.f32.gmra.mxu0 %v297
      %v566 = vpop.f32.mrf.mxu0
      %v567 = vadd.f32 %v276, %v566
      %v568 = vpop.f32.mrf.mxu0
      %569 = vmatprep.mubr.f32.mxu0 0.0
      %570 = vmatmul.mubr.f32.gmra.mxu0 %v300
      %v571 = vpop.f32.mrf.mxu0
      %v572 = vadd.f32 %v276, %v571
      %v573 = vpop.f32.mrf.mxu0
      %574 = vmatprep.mubr.f32.mxu0 0.0
      %575 = vmatmul.mubr.f32.gmra.mxu0 %v303
      %v576 = vpop.f32.mrf.mxu0
      %v577 = vadd.f32 %v276, %v576
      %v578 = vpop.f32.mrf.mxu0
      %579 = vmatprep.mubr.f32.mxu0 0.0
      %580 = vmatmul.mubr.f32.gmra.mxu0 %v306
      %v581 = vpop.f32.mrf.mxu0
      %v582 = vadd.f32 %v276, %v581
      %v583 = vpop.f32.mrf.mxu0
      %584 = vmatprep.mubr.f32.mxu0 0.0
      %585 = vmatmul.mubr.f32.gmra.mxu0 %v309
      %v586 = vpop.f32.mrf.mxu0
      %v587 = vadd.f32 %v276, %v586
      %v588 = vpop.f32.mrf.mxu0
      %589 = vmatprep.mubr.f32.mxu0 0.0
      %590 = vmatmul.mubr.f32.gmra.mxu0 %v312
      %v591 = vpop.f32.mrf.mxu0
      %v592 = vadd.f32 %v276, %v591
      %v593 = vpop.f32.mrf.mxu0
      %594 = vmatprep.mubr.f32.mxu0 0.0
      %595 = vmatmul.mubr.f32.gmra.mxu0 %v315
      %v596 = vpop.f32.mrf.mxu0
      %v597 = vadd.f32 %v276, %v596
      %v598 = vpop.f32.mrf.mxu0
      %599 = vmatprep.mubr.f32.mxu0 0.0
      %600 = vmatmul.mubr.f32.gmra.mxu0 %v318
      %v601 = vpop.f32.mrf.mxu0
      %v602 = vadd.f32 %v276, %v601
      %v603 = vpop.f32.mrf.mxu0
      %604 = vmatprep.mubr.f32.mxu0 0.0
      %605 = vmatmul.mubr.f32.gmra.mxu0 %v321
      %v606 = vpop.f32.mrf.mxu0
      %v607 = vadd.f32 %v276, %v606
      %v608 = vpop.f32.mrf.mxu0
      %609 = vmatprep.mubr.f32.mxu0 0.0
      %610 = vmatmul.mubr.f32.gmra.mxu0 %v324
      %v611 = vpop.f32.mrf.mxu0
      %v612 = vadd.f32 %v276, %v611
      %v613 = vpop.f32.mrf.mxu0
      %614 = vmatprep.mubr.f32.mxu0 0.0
      %615 = vmatmul.mubr.f32.gmra.mxu0 %v327
      %v616 = vpop.f32.mrf.mxu0
      %v617 = vadd.f32 %v276, %v616
      %v618 = vpop.f32.mrf.mxu0
      %619 = vmatprep.mubr.f32.mxu0 0.0
      %620 = vmatmul.mubr.f32.gmra.mxu0 %v330
      %v621 = vpop.f32.mrf.mxu0
      %v622 = vadd.f32 %v276, %v621
      %v623 = vpop.f32.mrf.mxu0
      %624 = vmatprep.mubr.f32.mxu0 0.0
      %625 = vmatmul.mubr.f32.gmra.mxu0 %v333
      %v626 = vpop.f32.mrf.mxu0
      %v627 = vadd.f32 %v276, %v626
      %v628 = vpop.f32.mrf.mxu0
      %629 = vmatprep.mubr.f32.mxu0 0.0
      %630 = vmatmul.mubr.f32.gmra.mxu0 %v336
      %v631 = vpop.f32.mrf.mxu0
      %v632 = vadd.f32 %v276, %v631
      %v633 = vpop.f32.mrf.mxu0
      %634 = vmatprep.mubr.f32.mxu0 0.0
      %635 = vmatmul.mubr.f32.gmra.mxu0 %v339
      %v636 = vpop.f32.mrf.mxu0
      %v637 = vadd.f32 %v276, %v636
      %v638 = vpop.f32.mrf.mxu0
      %639 = vmatprep.mubr.f32.mxu0 0.0
      %640 = vmatmul.mubr.f32.gmra.mxu0 %v342
      %v641 = vpop.f32.mrf.mxu0
      %v642 = vadd.f32 %v276, %v641
      %v643 = vpop.f32.mrf.mxu0
      %644 = vmatprep.mubr.f32.mxu0 0.0
      %645 = vmatmul.mubr.f32.gmra.mxu0 %v345
      %v646 = vpop.f32.mrf.mxu0
      %v647 = vadd.f32 %v276, %v646
      %v648 = vpop.f32.mrf.mxu0
      %649 = vmatprep.mubr.f32.mxu0 0.0
      %650 = vmatmul.mubr.f32.gmra.mxu0 %v348
      %v651 = vpop.f32.mrf.mxu0
      %v652 = vadd.f32 %v276, %v651
      %v653 = vpop.f32.mrf.mxu0
      %654 = vmatprep.mubr.f32.mxu0 0.0
      %655 = vmatmul.mubr.f32.gmra.mxu0 %v351
      %v656 = vpop.f32.mrf.mxu0
      %v657 = vadd.f32 %v276, %v656
      %v658 = vpop.f32.mrf.mxu0
      %659 = vmatprep.mubr.f32.mxu0 0.0
      %660 = vmatmul.mubr.f32.gmra.mxu0 %v354
      %v661 = vpop.f32.mrf.mxu0
      %v662 = vadd.f32 %v276, %v661
      %v663 = vpop.f32.mrf.mxu0
      %664 = vmatprep.mubr.f32.mxu0 0.0
      %665 = vmatmul.mubr.f32.gmra.mxu0 %v357
      %v666 = vpop.f32.mrf.mxu0
      %v667 = vadd.f32 %v276, %v666
      %v668 = vpop.f32.mrf.mxu0
      %669 = vmatprep.mubr.f32.mxu0 0.0
      %670 = vmatmul.mubr.f32.gmra.mxu0 %v360
      %v671 = vpop.f32.mrf.mxu0
      %v672 = vadd.f32 %v276, %v671
      %v673 = vpop.f32.mrf.mxu0
      %674 = vmatprep.mubr.f32.mxu0 0.0
      %675 = vmatmul.mubr.f32.gmra.mxu0 %v363
      %v676 = vpop.f32.mrf.mxu0
      %v677 = vadd.f32 %v276, %v676
      %v678 = vpop.f32.mrf.mxu0
      %679 = vmatprep.mubr.f32.mxu0 0.0
      %680 = vmatmul.mubr.f32.gmra.mxu0 %v366
      %v681 = vpop.f32.mrf.mxu0
      %v682 = vadd.f32 %v276, %v681
      %v683 = vpop.f32.mrf.mxu0
      %684 = vmatprep.mubr.f32.mxu0 0.0
      %685 = vmatmul.mubr.f32.gmra.mxu0 %v369
      %v686 = vpop.f32.mrf.mxu0
      %v687 = vadd.f32 %v276, %v686
      %v688 = vpop.f32.mrf.mxu0
      %689 = vmatprep.mubr.f32.mxu0 0.0
      %690 = vmatmul.mubr.f32.gmra.mxu0 %v372
      %v691 = vpop.f32.mrf.mxu0
      %v692 = vadd.f32 %v276, %v691
      %v693 = vpop.f32.mrf.mxu0
      %694 = vmatprep.mubr.f32.mxu0 0.0
      %695 = vmatmul.mubr.f32.gmra.mxu0 %v375
      %v696 = vpop.f32.mrf.mxu0
      %v697 = vadd.f32 %v276, %v696
      %v698 = vpop.f32.mrf.mxu0
      %699 = vmatprep.mubr.f32.mxu0 0.0
      %700 = vmatmul.mubr.f32.gmra.mxu0 %v378
      %v701 = vpop.f32.mrf.mxu0
      %v702 = vadd.f32 %v276, %v701
      %v703 = vpop.f32.mrf.mxu0
      %704 = vmatprep.mubr.f32.mxu0 0.0
      %705 = vmatmul.mubr.f32.gmra.mxu0 %v381
      %v706 = vpop.f32.mrf.mxu0
      %v707 = vadd.f32 %v276, %v706
      %v708 = vpop.f32.mrf.mxu0
      %709 = vmatprep.mubr.f32.mxu0 0.0
      %710 = vmatmul.mubr.f32.gmra.mxu0 %v384
      %v711 = vpop.f32.mrf.mxu0
      %v712 = vadd.f32 %v276, %v711
      %v713 = vpop.f32.mrf.mxu0
      %714 = vmatprep.mubr.f32.mxu0 0.0
      %715 = vmatmul.mubr.f32.gmra.mxu0 %v387
      %v716 = vpop.f32.mrf.mxu0
      %v717 = vadd.f32 %v276, %v716
      %v718 = vpop.f32.mrf.mxu0
      %719 = vmatprep.mubr.f32.mxu0 0.0
      %720 = vmatmul.mubr.f32.gmra.mxu0 %v390
      %v721 = vpop.f32.mrf.mxu0
      %v722 = vadd.f32 %v276, %v721
      %v723 = vpop.f32.mrf.mxu0
      %724 = vmatprep.mubr.f32.mxu0 0.0
      %725 = vmatmul.mubr.f32.gmra.mxu0 %v393
      %v726 = vpop.f32.mrf.mxu0
      %v727 = vadd.f32 %v276, %v726
      %v728 = vpop.f32.mrf.mxu0
      %729 = vmatprep.mubr.f32.mxu0 0.0
      %730 = vmatmul.mubr.f32.gmra.mxu0 %v396
      %v731 = vpop.f32.mrf.mxu0
      %v732 = vadd.f32 %v276, %v731
      %v733 = vpop.f32.mrf.mxu0
      %734 = vmatprep.mubr.f32.mxu0 0.0
      %735 = vmatmul.mubr.f32.gmra.mxu0 %v399
      %v736 = vpop.f32.mrf.mxu0
      %v737 = vadd.f32 %v276, %v736
      %v738 = vpop.f32.mrf.mxu0
      %739 = vmatprep.mubr.f32.mxu0 0.0
      %740 = vmatmul.mubr.f32.gmra.mxu0 %v402
      %v741 = vpop.f32.mrf.mxu0
      %v742 = vadd.f32 %v276, %v741
      %v743 = vpop.f32.mrf.mxu0
      %744 = vmatprep.mubr.f32.mxu0 0.0
      %745 = vmatmul.mubr.f32.gmra.mxu0 %v405
      %v746 = vpop.f32.mrf.mxu0
      %v747 = vadd.f32 %v276, %v746
      %v748 = vpop.f32.mrf.mxu0
      %749 = vmatprep.mubr.f32.mxu0 0.0
      %750 = vmatmul.mubr.f32.gmra.mxu0 %v408
      %v751 = vpop.f32.mrf.mxu0
      %v752 = vadd.f32 %v276, %v751
      %v753 = vpop.f32.mrf.mxu0
      %754 = vmatprep.mubr.f32.mxu0 0.0
      %755 = vmatmul.mubr.f32.gmra.mxu0 %v411
      %v756 = vpop.f32.mrf.mxu0
      %v757 = vadd.f32 %v276, %v756
      %v758 = vpop.f32.mrf.mxu0
      %759 = vmatprep.mubr.f32.mxu0 0.0
      %760 = vmatmul.mubr.f32.gmra.mxu0 %v414
      %v761 = vpop.f32.mrf.mxu0
      %v762 = vadd.f32 %v276, %v761
      %v763 = vpop.f32.mrf.mxu0
      %764 = vmatprep.mubr.f32.mxu0 0.0
      %765 = vmatmul.mubr.f32.gmra.mxu0 %v417
      %v766 = vpop.f32.mrf.mxu0
      %v767 = vadd.f32 %v276, %v766
      %v768 = vpop.f32.mrf.mxu0
      %769 = vmatprep.mubr.f32.mxu0 0.0
      %770 = vmatmul.mubr.f32.gmra.mxu0 %v420
      %v771 = vpop.f32.mrf.mxu0
      %v772 = vadd.f32 %v276, %v771
      %v773 = vpop.f32.mrf.mxu0
      %774 = vmatprep.mubr.f32.mxu0 0.0
      %775 = vmatmul.mubr.f32.gmra.mxu0 %v423
      %v776 = vpop.f32.mrf.mxu0
      %v777 = vadd.f32 %v276, %v776
      %v778 = vpop.f32.mrf.mxu0
      %779 = vmatprep.mubr.f32.mxu0 0.0
      %780 = vmatmul.mubr.f32.gmra.mxu0 %v426
      %v781 = vpop.f32.mrf.mxu0
      %v782 = vadd.f32 %v276, %v781
      %v783 = vpop.f32.mrf.mxu0
      %784 = vmatprep.mubr.f32.mxu0 0.0
      %785 = vmatmul.mubr.f32.gmra.mxu0 %v429
      %v786 = vpop.f32.mrf.mxu0
      %v787 = vadd.f32 %v276, %v786
      %v788 = vpop.f32.mrf.mxu0
      %789 = vmatprep.mubr.f32.mxu0 0.0
      %790 = vmatmul.mubr.f32.gmra.mxu0 %v432
      %v791 = vpop.f32.mrf.mxu0
      %v792 = vadd.f32 %v276, %v791
      %v793 = vpop.f32.mrf.mxu0
      %794 = vmatprep.mubr.f32.mxu0 0.0
      %795 = vmatmul.mubr.f32.gmra.mxu0 %v435
      %v796 = vpop.f32.mrf.mxu0
      %v797 = vadd.f32 %v276, %v796
      %v798 = vpop.f32.mrf.mxu0
      %799 = vmatprep.mubr.f32.mxu0 0.0
      %800 = vmatmul.mubr.f32.gmra.mxu0 %v438
      %v801 = vpop.f32.mrf.mxu0
      %v802 = vadd.f32 %v276, %v801
      %v803 = vpop.f32.mrf.mxu0
      %804 = vmatprep.mubr.f32.mxu0 0.0
      %805 = vmatmul.mubr.f32.gmra.mxu0 %v441
      %v806 = vpop.f32.mrf.mxu0
      %v807 = vadd.f32 %v276, %v806
      %v808 = vpop.f32.mrf.mxu0
      %809 = vmatprep.mubr.f32.mxu0 0.0
      %810 = vmatmul.mubr.f32.gmra.mxu0 %v444
      %v811 = vpop.f32.mrf.mxu0
      %v812 = vadd.f32 %v276, %v811
      %v813 = vpop.f32.mrf.mxu0
      %814 = vmatprep.mubr.f32.mxu0 0.0
      %815 = vmatmul.mubr.f32.gmra.mxu0 %v447
      %v816 = vpop.f32.mrf.mxu0
      %v817 = vadd.f32 %v276, %v816
      %v818 = vpop.f32.mrf.mxu0
      %819 = vmatprep.mubr.f32.mxu0 0.0
      %820 = vmatmul.mubr.f32.gmra.mxu0 %v450
      %v821 = vpop.f32.mrf.mxu0
      %v822 = vadd.f32 %v276, %v821
      %v823 = vpop.f32.mrf.mxu0
      %824 = vmatprep.mubr.f32.mxu0 0.0
      %825 = vmatmul.mubr.f32.gmra.mxu0 %v453
      %v826 = vpop.f32.mrf.mxu0
      %v827 = vadd.f32 %v276, %v826
      %v828 = vpop.f32.mrf.mxu0
      %829 = vmatprep.mubr.f32.mxu0 0.0
      %830 = vmatmul.mubr.f32.gmra.mxu0 %v456
      %v831 = vpop.f32.mrf.mxu0
      %v832 = vadd.f32 %v276, %v831
      %v833 = vpop.f32.mrf.mxu0
      %834 = vmatprep.mubr.f32.mxu0 0.0
      %835 = vmatmul.mubr.f32.gmra.mxu0 %v459
      %v836 = vpop.f32.mrf.mxu0
      %v837 = vadd.f32 %v276, %v836
      %v838 = vpop.f32.mrf.mxu0
      %839 = vmatprep.mubr.f32.mxu0 0.0
      %840 = vmatmul.mubr.f32.gmra.mxu0 %v462
      %v841 = vpop.f32.mrf.mxu0
      %v842 = vadd.f32 %v276, %v841
      %v843 = vpop.f32.mrf.mxu0
      %844 = vmatprep.mubr.f32.mxu0 0.0
      %845 = vmatmul.mubr.f32.gmra.mxu0 %v465
      %v846 = vpop.f32.mrf.mxu0
      %v847 = vadd.f32 %v276, %v846
      %v848 = vpop.f32.mrf.mxu0
      %849 = vmatprep.mubr.f32.mxu0 0.0
      %850 = vmatmul.mubr.f32.gmra.mxu0 %v468
      %v851 = vpop.f32.mrf.mxu0
      %v852 = vadd.f32 %v276, %v851
      %v853 = vpop.f32.mrf.mxu0
      %854 = vdwg.mxu0
      %v855 = vld [vmem:[%s2 + $0x38] sm:$0xff]
      %v856 = vld [vmem:[%s2 + $0x40] sm:$0xff]
      %v857 = vld [vmem:[%s2 + $0x48] sm:$0xff]
      %v858 = vld [vmem:[%s2 + $0x50] sm:$0xff]
      %v859 = vld [vmem:[%s2 + $0x58] sm:$0xff]
      %v860 = vld [vmem:[%s2 + $0x60] sm:$0xff]
      %v861 = vld [vmem:[%s2 + $0x68] sm:$0xff]
      %v862 = vld [vmem:[%s2 + $0x70] sm:$0xff]
      %v863 = vld [vmem:[%s2 + $0x78] sm:$0xff]
      %v864 = vld [vmem:[%s2 + $0x80] sm:$0xff]
      %v865 = vld [vmem:[%s2 + $0x88] sm:$0xff]
      %v866 = vld [vmem:[%s2 + $0x90] sm:$0xff]
      %v867 = vld [vmem:[%s2 + $0x98] sm:$0xff]
      %v868 = vld [vmem:[%s2 + $0xa0] sm:$0xff]
      %v869 = vld [vmem:[%s2 + $0xa8] sm:$0xff]
      %v870 = vld [vmem:[%s2 + $0xb0] sm:$0xff]
      %v871 = vld [vmem:[%s2 + $0xb8] sm:$0x1]
      %v872 = vlaneseq
      %v873 = vshrl.u32 %v872, 7
      %v874 = vsub.s32 0, %v873
      %v875 = vrot.slane %v871, %v874
      %876 = vmatprep.subr.mxu0 0.0
      %877 = vmatpush1.msra.mxu0 %v870
      %878 = vmatprep.subr.mxu0 0.0
      %879 = vmatpush1.msra.mxu0 %v869
      %880 = vmatprep.subr.mxu0 0.0
      %881 = vmatpush1.msra.mxu0 %v868
      %882 = vmatprep.subr.mxu0 0.0
      %883 = vmatpush1.msra.mxu0 %v867
      %884 = vmatprep.subr.mxu0 0.0
      %885 = vmatpush1.msra.mxu0 %v866
      %886 = vmatprep.subr.mxu0 0.0
      %887 = vmatpush1.msra.mxu0 %v865
      %888 = vmatprep.subr.mxu0 0.0
      %889 = vmatpush1.msra.mxu0 %v864
      %890 = vmatprep.subr.mxu0 0.0
      %891 = vmatpush1.msra.mxu0 %v863
      %892 = vmatprep.subr.mxu0 0.0
      %893 = vmatpush1.msra.mxu0 %v862
      %894 = vmatprep.subr.mxu0 0.0
      %895 = vmatpush1.msra.mxu0 %v861
      %896 = vmatprep.subr.mxu0 0.0
      %897 = vmatpush1.msra.mxu0 %v860
      %898 = vmatprep.subr.mxu0 0.0
      %899 = vmatpush1.msra.mxu0 %v859
      %900 = vmatprep.subr.mxu0 0.0
      %901 = vmatpush1.msra.mxu0 %v858
      %902 = vmatprep.subr.mxu0 0.0
      %903 = vmatpush1.msra.mxu0 %v857
      %904 = vmatprep.subr.mxu0 0.0
      %905 = vmatpush1.msra.mxu0 %v856
      %906 = vmatprep.subr.mxu0 0.0
      %907 = vmatpush1.msra.mxu0 %v855
      %908 = vmatprep.subr.mxu0 0.0
      %909 = vmatpush2.msra.mxu0 0.0
      %910 = vmatprep.subr.mxu0 0.0
      %911 = vmatpush2.msra.mxu0 0.0
      %912 = vmatprep.subr.mxu0 0.0
      %913 = vmatpush2.msra.mxu0 0.0
      %914 = vmatprep.subr.mxu0 0.0
      %915 = vmatpush2.msra.mxu0 0.0
      %916 = vmatprep.subr.mxu0 0.0
      %917 = vmatpush2.msra.mxu0 0.0
      %918 = vmatprep.subr.mxu0 0.0
      %919 = vmatpush2.msra.mxu0 0.0
      %920 = vmatprep.subr.mxu0 0.0
      %921 = vmatpush2.msra.mxu0 0.0
      %922 = vmatprep.subr.mxu0 0.0
      %923 = vmatpush2.msra.mxu0 0.0
      %924 = vmatprep.subr.mxu0 0.0
      %925 = vmatpush2.msra.mxu0 0.0
      %926 = vmatprep.subr.mxu0 0.0
      %927 = vmatpush2.msra.mxu0 0.0
      %928 = vmatprep.subr.mxu0 0.0
      %929 = vmatpush2.msra.mxu0 0.0
      %930 = vmatprep.subr.mxu0 0.0
      %931 = vmatpush2.msra.mxu0 0.0
      %932 = vmatprep.subr.mxu0 0.0
      %933 = vmatpush2.msra.mxu0 0.0
      %934 = vmatprep.subr.mxu0 0.0
      %935 = vmatpush2.msra.mxu0 0.0
      %936 = vmatprep.subr.mxu0 0.0
      %937 = vmatpush2.msra.mxu0 0.0
      %938 = vmatprep.subr.mxu0 0.0
      %939 = vmatpush2.msra.mxu0 0.0
      %940 = vmatprep.mubr.f32.mxu0 0.0
      %941 = vmatmul.mubr.f32.gmra.mxu0 %v256
      %v942 = vpop.f32.mrf.mxu0
      %v943 = vadd.f32 %v875, %v942
      %v944 = vpop.f32.mrf.mxu0
      %945 = vmatprep.mubr.f32.mxu0 0.0
      %946 = vmatmul.mubr.f32.gmra.mxu0 %v257
      %v947 = vpop.f32.mrf.mxu0
      %v948 = vadd.f32 %v875, %v947
      %v949 = vpop.f32.mrf.mxu0
      %950 = vmatprep.mubr.f32.mxu0 0.0
      %951 = vmatmul.mubr.f32.gmra.mxu0 %v258
      %v952 = vpop.f32.mrf.mxu0
      %v953 = vadd.f32 %v875, %v952
      %v954 = vpop.f32.mrf.mxu0
      %955 = vmatprep.mubr.f32.mxu0 0.0
      %956 = vmatmul.mubr.f32.gmra.mxu0 %v259
      %v957 = vpop.f32.mrf.mxu0
      %v958 = vadd.f32 %v875, %v957
      %v959 = vpop.f32.mrf.mxu0
      %960 = vmatprep.mubr.f32.mxu0 0.0
      %961 = vmatmul.mubr.f32.gmra.mxu0 %v260
      %v962 = vpop.f32.mrf.mxu0
      %v963 = vadd.f32 %v875, %v962
      %v964 = vpop.f32.mrf.mxu0
      %965 = vmatprep.mubr.f32.mxu0 0.0
      %966 = vmatmul.mubr.f32.gmra.mxu0 %v261
      %v967 = vpop.f32.mrf.mxu0
      %v968 = vadd.f32 %v875, %v967
      %v969 = vpop.f32.mrf.mxu0
      %970 = vmatprep.mubr.f32.mxu0 0.0
      %971 = vmatmul.mubr.f32.gmra.mxu0 %v262
      %v972 = vpop.f32.mrf.mxu0
      %v973 = vadd.f32 %v875, %v972
      %v974 = vpop.f32.mrf.mxu0
      %975 = vmatprep.mubr.f32.mxu0 0.0
      %976 = vmatmul.mubr.f32.gmra.mxu0 %v263
      %v977 = vpop.f32.mrf.mxu0
      %v978 = vadd.f32 %v875, %v977
      %v979 = vpop.f32.mrf.mxu0
      %980 = vdwg.mxu0
      %v981 = vmax.f32 %v943, 0.0
      %v982 = vmax.f32 %v948, 0.0
      %v983 = vmax.f32 %v953, 0.0
      %v984 = vmax.f32 %v958, 0.0
      %v985 = vmax.f32 %v963, 0.0
      %v986 = vmax.f32 %v968, 0.0
      %v987 = vmax.f32 %v973, 0.0
      %v988 = vmax.f32 %v978, 0.0
      %v989 = vld [vmem:[%s2 + $0xe0] sm:$0xff]
      %v990 = vld [vmem:[%s2 + $0xe8] sm:$0xff]
      %v991 = vld [vmem:[%s2 + $0xf0] sm:$0xff]
      %v992 = vld [vmem:[%s2 + $0xf8] sm:$0xff]
      %v993 = vld [vmem:[%s2 + $0x100] sm:$0xff]
      %v994 = vld [vmem:[%s2 + $0x108] sm:$0xff]
      %v995 = vld [vmem:[%s2 + $0x110] sm:$0xff]
      %v996 = vld [vmem:[%s2 + $0x118] sm:$0xff]
      %v997 = vld [vmem:[%s2 + $0x120] sm:$0xff]
      %v998 = vld [vmem:[%s2 + $0x128] sm:$0xff]
      %v999 = vld [vmem:[%s2 + $0x130] sm:$0xff]
      %v1000 = vld [vmem:[%s2 + $0x138] sm:$0xff]
      %v1001 = vld [vmem:[%s2 + $0x140] sm:$0xff]
      %v1002 = vld [vmem:[%s2 + $0x148] sm:$0xff]
      %v1003 = vld [vmem:[%s2 + $0x150] sm:$0xff]
      %v1004 = vld [vmem:[%s2 + $0x158] sm:$0xff]
      %v1005 = vld [vmem:[%s2 + $0x160] sm:$0x1]
      %v1006 = vlaneseq
      %v1007 = vshrl.u32 %v1006, 7
      %v1008 = vsub.s32 0, %v1007
      %v1009 = vrot.slane %v1005, %v1008
      %1010 = vmatprep.subr.mxu0 0.0
      %1011 = vmatpush1.msra.mxu0 %v1004
      %1012 = vmatprep.subr.mxu0 0.0
      %1013 = vmatpush1.msra.mxu0 %v1003
      %1014 = vmatprep.subr.mxu0 0.0
      %1015 = vmatpush1.msra.mxu0 %v1002
      %1016 = vmatprep.subr.mxu0 0.0
      %1017 = vmatpush1.msra.mxu0 %v1001
      %1018 = vmatprep.subr.mxu0 0.0
      %1019 = vmatpush1.msra.mxu0 %v1000
      %1020 = vmatprep.subr.mxu0 0.0
      %1021 = vmatpush1.msra.mxu0 %v999
      %1022 = vmatprep.subr.mxu0 0.0
      %1023 = vmatpush1.msra.mxu0 %v998
      %1024 = vmatprep.subr.mxu0 0.0
      %1025 = vmatpush1.msra.mxu0 %v997
      %1026 = vmatprep.subr.mxu0 0.0
      %1027 = vmatpush1.msra.mxu0 %v996
      %1028 = vmatprep.subr.mxu0 0.0
      %1029 = vmatpush1.msra.mxu0 %v995
      %1030 = vmatprep.subr.mxu0 0.0
      %1031 = vmatpush1.msra.mxu0 %v994
      %1032 = vmatprep.subr.mxu0 0.0
      %1033 = vmatpush1.msra.mxu0 %v993
      %1034 = vmatprep.subr.mxu0 0.0
      %1035 = vmatpush1.msra.mxu0 %v992
      %1036 = vmatprep.subr.mxu0 0.0
      %1037 = vmatpush1.msra.mxu0 %v991
      %1038 = vmatprep.subr.mxu0 0.0
      %1039 = vmatpush1.msra.mxu0 %v990
      %1040 = vmatprep.subr.mxu0 0.0
      %1041 = vmatpush1.msra.mxu0 %v989
      %1042 = vmatprep.subr.mxu0 0.0
      %1043 = vmatpush2.msra.mxu0 0.0
      %1044 = vmatprep.subr.mxu0 0.0
      %1045 = vmatpush2.msra.mxu0 0.0
      %1046 = vmatprep.subr.mxu0 0.0
      %1047 = vmatpush2.msra.mxu0 0.0
      %1048 = vmatprep.subr.mxu0 0.0
      %1049 = vmatpush2.msra.mxu0 0.0
      %1050 = vmatprep.subr.mxu0 0.0
      %1051 = vmatpush2.msra.mxu0 0.0
      %1052 = vmatprep.subr.mxu0 0.0
      %1053 = vmatpush2.msra.mxu0 0.0
      %1054 = vmatprep.subr.mxu0 0.0
      %1055 = vmatpush2.msra.mxu0 0.0
      %1056 = vmatprep.subr.mxu0 0.0
      %1057 = vmatpush2.msra.mxu0 0.0
      %1058 = vmatprep.subr.mxu0 0.0
      %1059 = vmatpush2.msra.mxu0 0.0
      %1060 = vmatprep.subr.mxu0 0.0
      %1061 = vmatpush2.msra.mxu0 0.0
      %1062 = vmatprep.subr.mxu0 0.0
      %1063 = vmatpush2.msra.mxu0 0.0
      %1064 = vmatprep.subr.mxu0 0.0
      %1065 = vmatpush2.msra.mxu0 0.0
      %1066 = vmatprep.subr.mxu0 0.0
      %1067 = vmatpush2.msra.mxu0 0.0
      %1068 = vmatprep.subr.mxu0 0.0
      %1069 = vmatpush2.msra.mxu0 0.0
      %1070 = vmatprep.subr.mxu0 0.0
      %1071 = vmatpush2.msra.mxu0 0.0
      %1072 = vmatprep.subr.mxu0 0.0
      %1073 = vmatpush2.msra.mxu0 0.0
      %1074 = vmatprep.mubr.f32.mxu0 0.0
      %1075 = vmatmul.mubr.f32.gmra.mxu0 %v981
      %v1076 = vpop.f32.mrf.mxu0
      %v1077 = vadd.f32 %v1009, %v1076
      %v1078 = vpop.f32.mrf.mxu0
      %1079 = vmatprep.mubr.f32.mxu0 0.0
      %1080 = vmatmul.mubr.f32.gmra.mxu0 %v982
      %v1081 = vpop.f32.mrf.mxu0
      %v1082 = vadd.f32 %v1009, %v1081
      %v1083 = vpop.f32.mrf.mxu0
      %1084 = vmatprep.mubr.f32.mxu0 0.0
      %1085 = vmatmul.mubr.f32.gmra.mxu0 %v983
      %v1086 = vpop.f32.mrf.mxu0
      %v1087 = vadd.f32 %v1009, %v1086
      %v1088 = vpop.f32.mrf.mxu0
      %1089 = vmatprep.mubr.f32.mxu0 0.0
      %1090 = vmatmul.mubr.f32.gmra.mxu0 %v984
      %v1091 = vpop.f32.mrf.mxu0
      %v1092 = vadd.f32 %v1009, %v1091
      %v1093 = vpop.f32.mrf.mxu0
      %1094 = vmatprep.mubr.f32.mxu0 0.0
      %1095 = vmatmul.mubr.f32.gmra.mxu0 %v985
      %v1096 = vpop.f32.mrf.mxu0
      %v1097 = vadd.f32 %v1009, %v1096
      %v1098 = vpop.f32.mrf.mxu0
      %1099 = vmatprep.mubr.f32.mxu0 0.0
      %1100 = vmatmul.mubr.f32.gmra.mxu0 %v986
      %v1101 = vpop.f32.mrf.mxu0
      %v1102 = vadd.f32 %v1009, %v1101
      %v1103 = vpop.f32.mrf.mxu0
      %1104 = vmatprep.mubr.f32.mxu0 0.0
      %1105 = vmatmul.mubr.f32.gmra.mxu0 %v987
      %v1106 = vpop.f32.mrf.mxu0
      %v1107 = vadd.f32 %v1009, %v1106
      %v1108 = vpop.f32.mrf.mxu0
      %1109 = vmatprep.mubr.f32.mxu0 0.0
      %1110 = vmatmul.mubr.f32.gmra.mxu0 %v988
      %v1111 = vpop.f32.mrf.mxu0
      %v1112 = vadd.f32 %v1009, %v1111
      %v1113 = vpop.f32.mrf.mxu0
      %1114 = vdwg.mxu0
      %vm1115 = vcmask 261120
      %v1117 = vsel %vm1115, 0, 0
      %1119 = vmatprep.subr.bf16.mxu0 0
      %1120 = vmatpush1.bf16.msra.mxu0 0
      %1121 = vmatprep.subr.bf16.mxu0 0
      %1122 = vmatpush1.bf16.msra.mxu0 0
      %1123 = vmatprep.subr.bf16.mxu0 0
      %1124 = vmatpush1.bf16.msra.mxu0 0
      %1125 = vmatprep.subr.bf16.mxu0 0
      %1126 = vmatpush1.bf16.msra.mxu0 0
      %1127 = vmatprep.subr.bf16.mxu0 0
      %1128 = vmatpush1.bf16.msra.mxu0 0
      %1129 = vmatprep.subr.bf16.mxu0 0
      %1130 = vmatpush1.bf16.msra.mxu0 0
      %1131 = vmatprep.subr.bf16.mxu0 0
      %1132 = vmatpush1.bf16.msra.mxu0 %v271
      %1133 = vmatprep.subr.bf16.mxu0 0
      %1134 = vmatpush1.bf16.msra.mxu0 %v270
      %1135 = vmatprep.subr.bf16.mxu0 0
      %1136 = vmatpush2.bf16.msra.mxu0 0
      %1137 = vmatprep.subr.bf16.mxu0 0
      %1138 = vmatpush2.bf16.msra.mxu0 0
      %1139 = vmatprep.subr.bf16.mxu0 0
      %1140 = vmatpush2.bf16.msra.mxu0 0
      %1141 = vmatprep.subr.bf16.mxu0 0
      %1142 = vmatpush2.bf16.msra.mxu0 0
      %1143 = vmatprep.subr.bf16.mxu0 0
      %1144 = vmatpush2.bf16.msra.mxu0 0
      %1145 = vmatprep.subr.bf16.mxu0 0
      %1146 = vmatpush2.bf16.msra.mxu0 0
      %1147 = vmatprep.subr.bf16.mxu0 0
      %1148 = vmatpush2.bf16.msra.mxu0 0
      %1149 = vmatprep.subr.bf16.mxu0 0
      %1150 = vmatpush2.bf16.msra.mxu0 0
      %1151 = vmatprep.mubr.bf16.mxu0 0
      %1152 = vmatmul.mubr.bf16.gmra.mxu0 %v1117
      %v1153 = vpop.f32.mrf.mxu0
      %v1154 = vadd.f32 0.0, %v1153
      %v1155 = vpop.f32.mrf.mxu0
      %v1156 = vpop.f32.mrf.mxu0
      %v1157 = vadd.f32 0.0, %v1156
      %v1158 = vpop.f32.mrf.mxu0
      %1159 = vmatprep.mubr.bf16.mxu0 0
      %1160 = vmatmul.mubr.bf16.gmra.mxu0 %v1117
      %v1161 = vpop.f32.mrf.mxu0
      %v1162 = vadd.f32 0.0, %v1161
      %v1163 = vpop.f32.mrf.mxu0
      %v1164 = vpop.f32.mrf.mxu0
      %v1165 = vadd.f32 0.0, %v1164
      %v1166 = vpop.f32.mrf.mxu0
      %1167 = vmatprep.mubr.bf16.mxu0 0
      %1168 = vmatmul.mubr.bf16.gmra.mxu0 %v1117
      %v1169 = vpop.f32.mrf.mxu0
      %v1170 = vadd.f32 0.0, %v1169
      %v1171 = vpop.f32.mrf.mxu0
      %v1172 = vpop.f32.mrf.mxu0
      %v1173 = vadd.f32 0.0, %v1172
      %v1174 = vpop.f32.mrf.mxu0
      %1175 = vmatprep.mubr.bf16.mxu0 0
      %1176 = vmatmul.mubr.bf16.gmra.mxu0 %v1117
      %v1177 = vpop.f32.mrf.mxu0
      %v1178 = vadd.f32 0.0, %v1177
      %v1179 = vpop.f32.mrf.mxu0
      %v1180 = vpop.f32.mrf.mxu0
      %v1181 = vadd.f32 0.0, %v1180
      %v1182 = vpop.f32.mrf.mxu0
      %1183 = vdwg.mxu0
      %v1184 = vadd.f32 %v537, %v1154
      %v1185 = vadd.f32 %v542, %v1157
      %v1186 = vadd.f32 %v547, %v1162
      %v1187 = vadd.f32 %v552, %v1165
      %v1188 = vadd.f32 %v557, %v1170
      %v1189 = vadd.f32 %v562, %v1173
      %v1190 = vadd.f32 %v567, %v1178
      %v1191 = vadd.f32 %v572, %v1181
      %v1192 = vxor.u32 %v1184, 2147483648
      %v1193 = vxor.u32 %v1185, 2147483648
      %v1194 = vxor.u32 %v1186, 2147483648
      %v1195 = vxor.u32 %v1187, 2147483648
      %v1196 = vxor.u32 %v1188, 2147483648
      %v1197 = vxor.u32 %v1189, 2147483648
      %v1198 = vxor.u32 %v1190, 2147483648
      %v1199 = vxor.u32 %v1191, 2147483648
      %v1200 = vmul.f32 %v1192, 1.442695
      %v1201 = vpow.pop %v1200
      %v1202 = vmul.f32 %v1193, 1.442695
      %v1203 = vpow.pop %v1202
      %v1204 = vmul.f32 %v1194, 1.442695
      %v1205 = vpow.pop %v1204
      %v1206 = vmul.f32 %v1195, 1.442695
      %v1207 = vpow.pop %v1206
      %v1208 = vmul.f32 %v1196, 1.442695
      %v1209 = vpow.pop %v1208
      %v1210 = vmul.f32 %v1197, 1.442695
      %v1211 = vpow.pop %v1210
      %v1212 = vmul.f32 %v1198, 1.442695
      %v1213 = vpow.pop %v1212
      %v1214 = vmul.f32 %v1199, 1.442695
      %v1215 = vpow.pop %v1214
      %v1216 = vadd.f32 %v1201, 1.0
      %v1217 = vadd.f32 %v1203, 1.0
      %v1218 = vadd.f32 %v1205, 1.0
      %v1219 = vadd.f32 %v1207, 1.0
      %v1220 = vadd.f32 %v1209, 1.0
      %v1221 = vadd.f32 %v1211, 1.0
      %v1222 = vadd.f32 %v1213, 1.0
      %v1223 = vadd.f32 %v1215, 1.0
      %v1224 = vrcp.pop %v1216
      %v1225 = vmul.f32 1.0, %v1224
      %v1226 = vrcp.pop %v1217
      %v1227 = vmul.f32 1.0, %v1226
      %v1228 = vrcp.pop %v1218
      %v1229 = vmul.f32 1.0, %v1228
      %v1230 = vrcp.pop %v1219
      %v1231 = vmul.f32 1.0, %v1230
      %v1232 = vrcp.pop %v1220
      %v1233 = vmul.f32 1.0, %v1232
      %v1234 = vrcp.pop %v1221
      %v1235 = vmul.f32 1.0, %v1234
      %v1236 = vrcp.pop %v1222
      %v1237 = vmul.f32 1.0, %v1236
      %v1238 = vrcp.pop %v1223
      %v1239 = vmul.f32 1.0, %v1238
      %v1240 = vtanh.pop %v1184
      %v1241 = vtanh.pop %v1185
      %v1242 = vtanh.pop %v1186
      %v1243 = vtanh.pop %v1187
      %v1244 = vtanh.pop %v1188
      %v1245 = vtanh.pop %v1189
      %v1246 = vtanh.pop %v1190
      %v1247 = vtanh.pop %v1191
      %v1248 = vmul.f32 %v1225, 0.0
      %v1249 = vmul.f32 %v1227, 0.0
      %v1250 = vmul.f32 %v1229, 0.0
      %v1251 = vmul.f32 %v1231, 0.0
      %v1252 = vmul.f32 %v1233, 0.0
      %v1253 = vmul.f32 %v1235, 0.0
      %v1254 = vmul.f32 %v1237, 0.0
      %v1255 = vmul.f32 %v1239, 0.0
      %1264 = vrot.lane.b32.xlu0 %v1240, 64
      %v1265 = vpop.permute.xlu0 %1264
      %1266 = vrot.lane.b32.xlu0 %v1241, 64
      %v1267 = vpop.permute.xlu0 %1266
      %1268 = vrot.lane.b32.xlu0 %v1242, 64
      %v1269 = vpop.permute.xlu0 %1268
      %1270 = vrot.lane.b32.xlu0 %v1243, 64
      %v1271 = vpop.permute.xlu0 %1270
      %1272 = vrot.lane.b32.xlu0 %v1244, 64
      %v1273 = vpop.permute.xlu0 %1272
      %1274 = vrot.lane.b32.xlu0 %v1245, 64
      %v1275 = vpop.permute.xlu0 %1274
      %1276 = vrot.lane.b32.xlu0 %v1246, 64
      %v1277 = vpop.permute.xlu0 %1276
      %1278 = vrot.lane.b32.xlu0 %v1247, 64
      %v1279 = vpop.permute.xlu0 %1278
      %v1288 = vmul.f32 %v1225, %v1265
      %v1289 = vmul.f32 %v1227, %v1267
      %v1290 = vmul.f32 %v1229, %v1269
      %v1291 = vmul.f32 %v1231, %v1271
      %v1292 = vmul.f32 %v1233, %v1273
      %v1293 = vmul.f32 %v1235, %v1275
      %v1294 = vmul.f32 %v1237, %v1277
      %v1295 = vmul.f32 %v1239, %v1279
      %1304 = vrot.lane.b32.xlu0 %v1288, 32
      %v1305 = vpop.permute.xlu0 %1304
      %1306 = vrot.lane.b32.xlu0 %v1289, 32
      %v1307 = vpop.permute.xlu0 %1306
      %1308 = vrot.lane.b32.xlu0 %v1290, 32
      %v1309 = vpop.permute.xlu0 %1308
      %1310 = vrot.lane.b32.xlu0 %v1291, 32
      %v1311 = vpop.permute.xlu0 %1310
      %1312 = vrot.lane.b32.xlu0 %v1292, 32
      %v1313 = vpop.permute.xlu0 %1312
      %1314 = vrot.lane.b32.xlu0 %v1293, 32
      %v1315 = vpop.permute.xlu0 %1314
      %1316 = vrot.lane.b32.xlu0 %v1294, 32
      %v1317 = vpop.permute.xlu0 %1316
      %1318 = vrot.lane.b32.xlu0 %v1295, 32
      %v1319 = vpop.permute.xlu0 %1318
      %v1328 = vadd.f32 %v1248, %v1305
      %v1329 = vadd.f32 %v1249, %v1307
      %v1330 = vadd.f32 %v1250, %v1309
      %v1331 = vadd.f32 %v1251, %v1311
      %v1332 = vadd.f32 %v1252, %v1313
      %v1333 = vadd.f32 %v1253, %v1315
      %v1334 = vadd.f32 %v1254, %v1317
      %v1335 = vadd.f32 %v1255, %v1319
      %v1336 = vtanh.pop %v1328
      %v1337 = vtanh.pop %v1329
      %v1338 = vtanh.pop %v1330
      %v1339 = vtanh.pop %v1331
      %v1340 = vtanh.pop %v1332
      %v1341 = vtanh.pop %v1333
      %v1342 = vtanh.pop %v1334
      %v1343 = vtanh.pop %v1335
      %1352 = vrot.lane.b32.xlu0 %v1336, 64
      %v1353 = vpop.permute.xlu0 %1352
      %1354 = vrot.lane.b32.xlu0 %v1337, 64
      %v1355 = vpop.permute.xlu0 %1354
      %1356 = vrot.lane.b32.xlu0 %v1338, 64
      %v1357 = vpop.permute.xlu0 %1356
      %1358 = vrot.lane.b32.xlu0 %v1339, 64
      %v1359 = vpop.permute.xlu0 %1358
      %1360 = vrot.lane.b32.xlu0 %v1340, 64
      %v1361 = vpop.permute.xlu0 %1360
      %1362 = vrot.lane.b32.xlu0 %v1341, 64
      %v1363 = vpop.permute.xlu0 %1362
      %1364 = vrot.lane.b32.xlu0 %v1342, 64
      %v1365 = vpop.permute.xlu0 %1364
      %1366 = vrot.lane.b32.xlu0 %v1343, 64
      %v1367 = vpop.permute.xlu0 %1366
      %v1376 = vmul.f32 %v1225, %v1353
      %v1377 = vmul.f32 %v1227, %v1355
      %v1378 = vmul.f32 %v1229, %v1357
      %v1379 = vmul.f32 %v1231, %v1359
      %v1380 = vmul.f32 %v1233, %v1361
      %v1381 = vmul.f32 %v1235, %v1363
      %v1382 = vmul.f32 %v1237, %v1365
      %v1383 = vmul.f32 %v1239, %v1367
      %v1384 = vpack.c.bf16 %v1377, %v1376
      %v1385 = vpack.c.bf16 %v1379, %v1378
      %v1386 = vpack.c.bf16 %v1381, %v1380
      %v1387 = vpack.c.bf16 %v1383, %v1382
      %1392 = vrot.lane.b32.xlu0 %v1384, 32
      %v1393 = vpop.permute.xlu0 %1392
      %1394 = vrot.lane.b32.xlu0 %v1385, 32
      %v1395 = vpop.permute.xlu0 %1394
      %1396 = vrot.lane.b32.xlu0 %v1386, 32
      %v1397 = vpop.permute.xlu0 %1396
      %1398 = vrot.lane.b32.xlu0 %v1387, 32
      %v1399 = vpop.permute.xlu0 %1398
      %v1401 = vsel %vm1115, %v1393, 0
      %v1404 = vsel %vm1115, %v1395, 0
      %v1407 = vsel %vm1115, %v1397, 0
      %v1410 = vsel %vm1115, %v1399, 0
      %1412 = vmatprep.subr.bf16.mxu0 0
      %1413 = vmatpush1.bf16.msra.mxu0 0
      %1414 = vmatprep.subr.bf16.mxu0 0
      %1415 = vmatpush1.bf16.msra.mxu0 0
      %1416 = vmatprep.subr.bf16.mxu0 0
      %1417 = vmatpush1.bf16.msra.mxu0 0
      %1418 = vmatprep.subr.bf16.mxu0 0
      %1419 = vmatpush1.bf16.msra.mxu0 0
      %1420 = vmatprep.subr.bf16.mxu0 0
      %1421 = vmatpush1.bf16.msra.mxu0 0
      %1422 = vmatprep.subr.bf16.mxu0 0
      %1423 = vmatpush1.bf16.msra.mxu0 0
      %1424 = vmatprep.subr.bf16.mxu0 0
      %1425 = vmatpush1.bf16.msra.mxu0 %v271
      %1426 = vmatprep.subr.bf16.mxu0 0
      %1427 = vmatpush1.bf16.msra.mxu0 %v270
      %1428 = vmatprep.subr.bf16.mxu0 0
      %1429 = vmatpush2.bf16.msra.mxu0 0
      %1430 = vmatprep.subr.bf16.mxu0 0
      %1431 = vmatpush2.bf16.msra.mxu0 0
      %1432 = vmatprep.subr.bf16.mxu0 0
      %1433 = vmatpush2.bf16.msra.mxu0 0
      %1434 = vmatprep.subr.bf16.mxu0 0
      %1435 = vmatpush2.bf16.msra.mxu0 0
      %1436 = vmatprep.subr.bf16.mxu0 0
      %1437 = vmatpush2.bf16.msra.mxu0 0
      %1438 = vmatprep.subr.bf16.mxu0 0
      %1439 = vmatpush2.bf16.msra.mxu0 0
      %1440 = vmatprep.subr.bf16.mxu0 0
      %1441 = vmatpush2.bf16.msra.mxu0 0
      %1442 = vmatprep.subr.bf16.mxu0 0
      %1443 = vmatpush2.bf16.msra.mxu0 0
      %1444 = vmatprep.mubr.bf16.mxu0 0
      %1445 = vmatmul.mubr.bf16.gmra.mxu0 %v1401
      %v1446 = vpop.f32.mrf.mxu0
      %v1447 = vadd.f32 0.0, %v1446
      %v1448 = vpop.f32.mrf.mxu0
      %v1449 = vpop.f32.mrf.mxu0
      %v1450 = vadd.f32 0.0, %v1449
      %v1451 = vpop.f32.mrf.mxu0
      %1452 = vmatprep.mubr.bf16.mxu0 0
      %1453 = vmatmul.mubr.bf16.gmra.mxu0 %v1404
      %v1454 = vpop.f32.mrf.mxu0
      %v1455 = vadd.f32 0.0, %v1454
      %v1456 = vpop.f32.mrf.mxu0
      %v1457 = vpop.f32.mrf.mxu0
      %v1458 = vadd.f32 0.0, %v1457
      %v1459 = vpop.f32.mrf.mxu0
      %1460 = vmatprep.mubr.bf16.mxu0 0
      %1461 = vmatmul.mubr.bf16.gmra.mxu0 %v1407
      %v1462 = vpop.f32.mrf.mxu0
      %v1463 = vadd.f32 0.0, %v1462
      %v1464 = vpop.f32.mrf.mxu0
      %v1465 = vpop.f32.mrf.mxu0
      %v1466 = vadd.f32 0.0, %v1465
      %v1467 = vpop.f32.mrf.mxu0
      %1468 = vmatprep.mubr.bf16.mxu0 0
      %1469 = vmatmul.mubr.bf16.gmra.mxu0 %v1410
      %v1470 = vpop.f32.mrf.mxu0
      %v1471 = vadd.f32 0.0, %v1470
      %v1472 = vpop.f32.mrf.mxu0
      %v1473 = vpop.f32.mrf.mxu0
      %v1474 = vadd.f32 0.0, %v1473
      %v1475 = vpop.f32.mrf.mxu0
      %1476 = vdwg.mxu0
      %v1477 = vadd.f32 %v577, %v1447
      %v1478 = vadd.f32 %v582, %v1450
      %v1479 = vadd.f32 %v587, %v1455
      %v1480 = vadd.f32 %v592, %v1458
      %v1481 = vadd.f32 %v597, %v1463
      %v1482 = vadd.f32 %v602, %v1466
      %v1483 = vadd.f32 %v607, %v1471
      %v1484 = vadd.f32 %v612, %v1474
      %v1485 = vxor.u32 %v1477, 2147483648
      %v1486 = vxor.u32 %v1478, 2147483648
      %v1487 = vxor.u32 %v1479, 2147483648
      %v1488 = vxor.u32 %v1480, 2147483648
      %v1489 = vxor.u32 %v1481, 2147483648
      %v1490 = vxor.u32 %v1482, 2147483648
      %v1491 = vxor.u32 %v1483, 2147483648
      %v1492 = vxor.u32 %v1484, 2147483648
      %v1493 = vmul.f32 %v1485, 1.442695
      %v1494 = vpow.pop %v1493
      %v1495 = vmul.f32 %v1486, 1.442695
      %v1496 = vpow.pop %v1495
      %v1497 = vmul.f32 %v1487, 1.442695
      %v1498 = vpow.pop %v1497
      %v1499 = vmul.f32 %v1488, 1.442695
      %v1500 = vpow.pop %v1499
      %v1501 = vmul.f32 %v1489, 1.442695
      %v1502 = vpow.pop %v1501
      %v1503 = vmul.f32 %v1490, 1.442695
      %v1504 = vpow.pop %v1503
      %v1505 = vmul.f32 %v1491, 1.442695
      %v1506 = vpow.pop %v1505
      %v1507 = vmul.f32 %v1492, 1.442695
      %v1508 = vpow.pop %v1507
      %v1509 = vadd.f32 %v1494, 1.0
      %v1510 = vadd.f32 %v1496, 1.0
      %v1511 = vadd.f32 %v1498, 1.0
      %v1512 = vadd.f32 %v1500, 1.0
      %v1513 = vadd.f32 %v1502, 1.0
      %v1514 = vadd.f32 %v1504, 1.0
      %v1515 = vadd.f32 %v1506, 1.0
      %v1516 = vadd.f32 %v1508, 1.0
      %v1517 = vrcp.pop %v1509
      %v1518 = vmul.f32 1.0, %v1517
      %v1519 = vrcp.pop %v1510
      %v1520 = vmul.f32 1.0, %v1519
      %v1521 = vrcp.pop %v1511
      %v1522 = vmul.f32 1.0, %v1521
      %v1523 = vrcp.pop %v1512
      %v1524 = vmul.f32 1.0, %v1523
      %v1525 = vrcp.pop %v1513
      %v1526 = vmul.f32 1.0, %v1525
      %v1527 = vrcp.pop %v1514
      %v1528 = vmul.f32 1.0, %v1527
      %v1529 = vrcp.pop %v1515
      %v1530 = vmul.f32 1.0, %v1529
      %v1531 = vrcp.pop %v1516
      %v1532 = vmul.f32 1.0, %v1531
      %v1533 = vtanh.pop %v1477
      %v1534 = vtanh.pop %v1478
      %v1535 = vtanh.pop %v1479
      %v1536 = vtanh.pop %v1480
      %v1537 = vtanh.pop %v1481
      %v1538 = vtanh.pop %v1482
      %v1539 = vtanh.pop %v1483
      %v1540 = vtanh.pop %v1484
      %v1541 = vmul.f32 %v1518, %v1328
      %v1542 = vmul.f32 %v1520, %v1329
      %v1543 = vmul.f32 %v1522, %v1330
      %v1544 = vmul.f32 %v1524, %v1331
      %v1545 = vmul.f32 %v1526, %v1332
      %v1546 = vmul.f32 %v1528, %v1333
      %v1547 = vmul.f32 %v1530, %v1334
      %v1548 = vmul.f32 %v1532, %v1335
      %1557 = vrot.lane.b32.xlu0 %v1533, 64
      %v1558 = vpop.permute.xlu0 %1557
      %1559 = vrot.lane.b32.xlu0 %v1534, 64
      %v1560 = vpop.permute.xlu0 %1559
      %1561 = vrot.lane.b32.xlu0 %v1535, 64
      %v1562 = vpop.permute.xlu0 %1561
      %1563 = vrot.lane.b32.xlu0 %v1536, 64
      %v1564 = vpop.permute.xlu0 %1563
      %1565 = vrot.lane.b32.xlu0 %v1537, 64
      %v1566 = vpop.permute.xlu0 %1565
      %1567 = vrot.lane.b32.xlu0 %v1538, 64
      %v1568 = vpop.permute.xlu0 %1567
      %1569 = vrot.lane.b32.xlu0 %v1539, 64
      %v1570 = vpop.permute.xlu0 %1569
      %1571 = vrot.lane.b32.xlu0 %v1540, 64
      %v1572 = vpop.permute.xlu0 %1571
      %v1581 = vmul.f32 %v1518, %v1558
      %v1582 = vmul.f32 %v1520, %v1560
      %v1583 = vmul.f32 %v1522, %v1562
      %v1584 = vmul.f32 %v1524, %v1564
      %v1585 = vmul.f32 %v1526, %v1566
      %v1586 = vmul.f32 %v1528, %v1568
      %v1587 = vmul.f32 %v1530, %v1570
      %v1588 = vmul.f32 %v1532, %v1572
      %1597 = vrot.lane.b32.xlu0 %v1581, 32
      %v1598 = vpop.permute.xlu0 %1597
      %1599 = vrot.lane.b32.xlu0 %v1582, 32
      %v1600 = vpop.permute.xlu0 %1599
      %1601 = vrot.lane.b32.xlu0 %v1583, 32
      %v1602 = vpop.permute.xlu0 %1601
      %1603 = vrot.lane.b32.xlu0 %v1584, 32
      %v1604 = vpop.permute.xlu0 %1603
      %1605 = vrot.lane.b32.xlu0 %v1585, 32
      %v1606 = vpop.permute.xlu0 %1605
      %1607 = vrot.lane.b32.xlu0 %v1586, 32
      %v1608 = vpop.permute.xlu0 %1607
      %1609 = vrot.lane.b32.xlu0 %v1587, 32
      %v1610 = vpop.permute.xlu0 %1609
      %1611 = vrot.lane.b32.xlu0 %v1588, 32
      %v1612 = vpop.permute.xlu0 %1611
      %v1621 = vadd.f32 %v1541, %v1598
      %v1622 = vadd.f32 %v1542, %v1600
      %v1623 = vadd.f32 %v1543, %v1602
      %v1624 = vadd.f32 %v1544, %v1604
      %v1625 = vadd.f32 %v1545, %v1606
      %v1626 = vadd.f32 %v1546, %v1608
      %v1627 = vadd.f32 %v1547, %v1610
      %v1628 = vadd.f32 %v1548, %v1612
      %v1629 = vtanh.pop %v1621
      %v1630 = vtanh.pop %v1622
      %v1631 = vtanh.pop %v1623
      %v1632 = vtanh.pop %v1624
      %v1633 = vtanh.pop %v1625
      %v1634 = vtanh.pop %v1626
      %v1635 = vtanh.pop %v1627
      %v1636 = vtanh.pop %v1628
      %1645 = vrot.lane.b32.xlu0 %v1629, 64
      %v1646 = vpop.permute.xlu0 %1645
      %1647 = vrot.lane.b32.xlu0 %v1630, 64
      %v1648 = vpop.permute.xlu0 %1647
      %1649 = vrot.lane.b32.xlu0 %v1631, 64
      %v1650 = vpop.permute.xlu0 %1649
      %1651 = vrot.lane.b32.xlu0 %v1632, 64
      %v1652 = vpop.permute.xlu0 %1651
      %1653 = vrot.lane.b32.xlu0 %v1633, 64
      %v1654 = vpop.permute.xlu0 %1653
      %1655 = vrot.lane.b32.xlu0 %v1634, 64
      %v1656 = vpop.permute.xlu0 %1655
      %1657 = vrot.lane.b32.xlu0 %v1635, 64
      %v1658 = vpop.permute.xlu0 %1657
      %1659 = vrot.lane.b32.xlu0 %v1636, 64
      %v1660 = vpop.permute.xlu0 %1659
      %v1669 = vmul.f32 %v1518, %v1646
      %v1670 = vmul.f32 %v1520, %v1648
      %v1671 = vmul.f32 %v1522, %v1650
      %v1672 = vmul.f32 %v1524, %v1652
      %v1673 = vmul.f32 %v1526, %v1654
      %v1674 = vmul.f32 %v1528, %v1656
      %v1675 = vmul.f32 %v1530, %v1658
      %v1676 = vmul.f32 %v1532, %v1660
      %v1677 = vpack.c.bf16 %v1670, %v1669
      %v1678 = vpack.c.bf16 %v1672, %v1671
      %v1679 = vpack.c.bf16 %v1674, %v1673
      %v1680 = vpack.c.bf16 %v1676, %v1675
      %1685 = vrot.lane.b32.xlu0 %v1677, 32
      %v1686 = vpop.permute.xlu0 %1685
      %1687 = vrot.lane.b32.xlu0 %v1678, 32
      %v1688 = vpop.permute.xlu0 %1687
      %1689 = vrot.lane.b32.xlu0 %v1679, 32
      %v1690 = vpop.permute.xlu0 %1689
      %1691 = vrot.lane.b32.xlu0 %v1680, 32
      %v1692 = vpop.permute.xlu0 %1691
      %v1694 = vsel %vm1115, %v1686, 0
      %v1697 = vsel %vm1115, %v1688, 0
      %v1700 = vsel %vm1115, %v1690, 0
      %v1703 = vsel %vm1115, %v1692, 0
      %1705 = vmatprep.subr.bf16.mxu0 0
      %1706 = vmatpush1.bf16.msra.mxu0 0
      %1707 = vmatprep.subr.bf16.mxu0 0
      %1708 = vmatpush1.bf16.msra.mxu0 0
      %1709 = vmatprep.subr.bf16.mxu0 0
      %1710 = vmatpush1.bf16.msra.mxu0 0
      %1711 = vmatprep.subr.bf16.mxu0 0
      %1712 = vmatpush1.bf16.msra.mxu0 0
      %1713 = vmatprep.subr.bf16.mxu0 0
      %1714 = vmatpush1.bf16.msra.mxu0 0
      %1715 = vmatprep.subr.bf16.mxu0 0
      %1716 = vmatpush1.bf16.msra.mxu0 0
      %1717 = vmatprep.subr.bf16.mxu0 0
      %1718 = vmatpush1.bf16.msra.mxu0 %v271
      %1719 = vmatprep.subr.bf16.mxu0 0
      %1720 = vmatpush1.bf16.msra.mxu0 %v270
      %1721 = vmatprep.subr.bf16.mxu0 0
      %1722 = vmatpush2.bf16.msra.mxu0 0
      %1723 = vmatprep.subr.bf16.mxu0 0
      %1724 = vmatpush2.bf16.msra.mxu0 0
      %1725 = vmatprep.subr.bf16.mxu0 0
      %1726 = vmatpush2.bf16.msra.mxu0 0
      %1727 = vmatprep.subr.bf16.mxu0 0
      %1728 = vmatpush2.bf16.msra.mxu0 0
      %1729 = vmatprep.subr.bf16.mxu0 0
      %1730 = vmatpush2.bf16.msra.mxu0 0
      %1731 = vmatprep.subr.bf16.mxu0 0
      %1732 = vmatpush2.bf16.msra.mxu0 0
      %1733 = vmatprep.subr.bf16.mxu0 0
      %1734 = vmatpush2.bf16.msra.mxu0 0
      %1735 = vmatprep.subr.bf16.mxu0 0
      %1736 = vmatpush2.bf16.msra.mxu0 0
      %1737 = vmatprep.mubr.bf16.mxu0 0
      %1738 = vmatmul.mubr.bf16.gmra.mxu0 %v1694
      %v1739 = vpop.f32.mrf.mxu0
      %v1740 = vadd.f32 0.0, %v1739
      %v1741 = vpop.f32.mrf.mxu0
      %v1742 = vpop.f32.mrf.mxu0
      %v1743 = vadd.f32 0.0, %v1742
      %v1744 = vpop.f32.mrf.mxu0
      %1745 = vmatprep.mubr.bf16.mxu0 0
      %1746 = vmatmul.mubr.bf16.gmra.mxu0 %v1697
      %v1747 = vpop.f32.mrf.mxu0
      %v1748 = vadd.f32 0.0, %v1747
      %v1749 = vpop.f32.mrf.mxu0
      %v1750 = vpop.f32.mrf.mxu0
      %v1751 = vadd.f32 0.0, %v1750
      %v1752 = vpop.f32.mrf.mxu0
      %1753 = vmatprep.mubr.bf16.mxu0 0
      %1754 = vmatmul.mubr.bf16.gmra.mxu0 %v1700
      %v1755 = vpop.f32.mrf.mxu0
      %v1756 = vadd.f32 0.0, %v1755
      %v1757 = vpop.f32.mrf.mxu0
      %v1758 = vpop.f32.mrf.mxu0
      %v1759 = vadd.f32 0.0, %v1758
      %v1760 = vpop.f32.mrf.mxu0
      %1761 = vmatprep.mubr.bf16.mxu0 0
      %1762 = vmatmul.mubr.bf16.gmra.mxu0 %v1703
      %v1763 = vpop.f32.mrf.mxu0
      %v1764 = vadd.f32 0.0, %v1763
      %v1765 = vpop.f32.mrf.mxu0
      %v1766 = vpop.f32.mrf.mxu0
      %v1767 = vadd.f32 0.0, %v1766
      %v1768 = vpop.f32.mrf.mxu0
      %1769 = vdwg.mxu0
      %v1770 = vadd.f32 %v617, %v1740
      %v1771 = vadd.f32 %v622, %v1743
      %v1772 = vadd.f32 %v627, %v1748
      %v1773 = vadd.f32 %v632, %v1751
      %v1774 = vadd.f32 %v637, %v1756
      %v1775 = vadd.f32 %v642, %v1759
      %v1776 = vadd.f32 %v647, %v1764
      %v1777 = vadd.f32 %v652, %v1767
      %v1778 = vxor.u32 %v1770, 2147483648
      %v1779 = vxor.u32 %v1771, 2147483648
      %v1780 = vxor.u32 %v1772, 2147483648
      %v1781 = vxor.u32 %v1773, 2147483648
      %v1782 = vxor.u32 %v1774, 2147483648
      %v1783 = vxor.u32 %v1775, 2147483648
      %v1784 = vxor.u32 %v1776, 2147483648
      %v1785 = vxor.u32 %v1777, 2147483648
      %v1786 = vmul.f32 %v1778, 1.442695
      %v1787 = vpow.pop %v1786
      %v1788 = vmul.f32 %v1779, 1.442695
      %v1789 = vpow.pop %v1788
      %v1790 = vmul.f32 %v1780, 1.442695
      %v1791 = vpow.pop %v1790
      %v1792 = vmul.f32 %v1781, 1.442695
      %v1793 = vpow.pop %v1792
      %v1794 = vmul.f32 %v1782, 1.442695
      %v1795 = vpow.pop %v1794
      %v1796 = vmul.f32 %v1783, 1.442695
      %v1797 = vpow.pop %v1796
      %v1798 = vmul.f32 %v1784, 1.442695
      %v1799 = vpow.pop %v1798
      %v1800 = vmul.f32 %v1785, 1.442695
      %v1801 = vpow.pop %v1800
      %v1802 = vadd.f32 %v1787, 1.0
      %v1803 = vadd.f32 %v1789, 1.0
      %v1804 = vadd.f32 %v1791, 1.0
      %v1805 = vadd.f32 %v1793, 1.0
      %v1806 = vadd.f32 %v1795, 1.0
      %v1807 = vadd.f32 %v1797, 1.0
      %v1808 = vadd.f32 %v1799, 1.0
      %v1809 = vadd.f32 %v1801, 1.0
      %v1810 = vrcp.pop %v1802
      %v1811 = vmul.f32 1.0, %v1810
      %v1812 = vrcp.pop %v1803
      %v1813 = vmul.f32 1.0, %v1812
      %v1814 = vrcp.pop %v1804
      %v1815 = vmul.f32 1.0, %v1814
      %v1816 = vrcp.pop %v1805
      %v1817 = vmul.f32 1.0, %v1816
      %v1818 = vrcp.pop %v1806
      %v1819 = vmul.f32 1.0, %v1818
      %v1820 = vrcp.pop %v1807
      %v1821 = vmul.f32 1.0, %v1820
      %v1822 = vrcp.pop %v1808
      %v1823 = vmul.f32 1.0, %v1822
      %v1824 = vrcp.pop %v1809
      %v1825 = vmul.f32 1.0, %v1824
      %v1826 = vtanh.pop %v1770
      %v1827 = vtanh.pop %v1771
      %v1828 = vtanh.pop %v1772
      %v1829 = vtanh.pop %v1773
      %v1830 = vtanh.pop %v1774
      %v1831 = vtanh.pop %v1775
      %v1832 = vtanh.pop %v1776
      %v1833 = vtanh.pop %v1777
      %v1834 = vmul.f32 %v1811, %v1621
      %v1835 = vmul.f32 %v1813, %v1622
      %v1836 = vmul.f32 %v1815, %v1623
      %v1837 = vmul.f32 %v1817, %v1624
      %v1838 = vmul.f32 %v1819, %v1625
      %v1839 = vmul.f32 %v1821, %v1626
      %v1840 = vmul.f32 %v1823, %v1627
      %v1841 = vmul.f32 %v1825, %v1628
      %1850 = vrot.lane.b32.xlu0 %v1826, 64
      %v1851 = vpop.permute.xlu0 %1850
      %1852 = vrot.lane.b32.xlu0 %v1827, 64
      %v1853 = vpop.permute.xlu0 %1852
      %1854 = vrot.lane.b32.xlu0 %v1828, 64
      %v1855 = vpop.permute.xlu0 %1854
      %1856 = vrot.lane.b32.xlu0 %v1829, 64
      %v1857 = vpop.permute.xlu0 %1856
      %1858 = vrot.lane.b32.xlu0 %v1830, 64
      %v1859 = vpop.permute.xlu0 %1858
      %1860 = vrot.lane.b32.xlu0 %v1831, 64
      %v1861 = vpop.permute.xlu0 %1860
      %1862 = vrot.lane.b32.xlu0 %v1832, 64
      %v1863 = vpop.permute.xlu0 %1862
      %1864 = vrot.lane.b32.xlu0 %v1833, 64
      %v1865 = vpop.permute.xlu0 %1864
      %v1874 = vmul.f32 %v1811, %v1851
      %v1875 = vmul.f32 %v1813, %v1853
      %v1876 = vmul.f32 %v1815, %v1855
      %v1877 = vmul.f32 %v1817, %v1857
      %v1878 = vmul.f32 %v1819, %v1859
      %v1879 = vmul.f32 %v1821, %v1861
      %v1880 = vmul.f32 %v1823, %v1863
      %v1881 = vmul.f32 %v1825, %v1865
      %1890 = vrot.lane.b32.xlu0 %v1874, 32
      %v1891 = vpop.permute.xlu0 %1890
      %1892 = vrot.lane.b32.xlu0 %v1875, 32
      %v1893 = vpop.permute.xlu0 %1892
      %1894 = vrot.lane.b32.xlu0 %v1876, 32
      %v1895 = vpop.permute.xlu0 %1894
      %1896 = vrot.lane.b32.xlu0 %v1877, 32
      %v1897 = vpop.permute.xlu0 %1896
      %1898 = vrot.lane.b32.xlu0 %v1878, 32
      %v1899 = vpop.permute.xlu0 %1898
      %1900 = vrot.lane.b32.xlu0 %v1879, 32
      %v1901 = vpop.permute.xlu0 %1900
      %1902 = vrot.lane.b32.xlu0 %v1880, 32
      %v1903 = vpop.permute.xlu0 %1902
      %1904 = vrot.lane.b32.xlu0 %v1881, 32
      %v1905 = vpop.permute.xlu0 %1904
      %v1914 = vadd.f32 %v1834, %v1891
      %v1915 = vadd.f32 %v1835, %v1893
      %v1916 = vadd.f32 %v1836, %v1895
      %v1917 = vadd.f32 %v1837, %v1897
      %v1918 = vadd.f32 %v1838, %v1899
      %v1919 = vadd.f32 %v1839, %v1901
      %v1920 = vadd.f32 %v1840, %v1903
      %v1921 = vadd.f32 %v1841, %v1905
      %v1922 = vtanh.pop %v1914
      %v1923 = vtanh.pop %v1915
      %v1924 = vtanh.pop %v1916
      %v1925 = vtanh.pop %v1917
      %v1926 = vtanh.pop %v1918
      %v1927 = vtanh.pop %v1919
      %v1928 = vtanh.pop %v1920
      %v1929 = vtanh.pop %v1921
      %1938 = vrot.lane.b32.xlu0 %v1922, 64
      %v1939 = vpop.permute.xlu0 %1938
      %1940 = vrot.lane.b32.xlu0 %v1923, 64
      %v1941 = vpop.permute.xlu0 %1940
      %1942 = vrot.lane.b32.xlu0 %v1924, 64
      %v1943 = vpop.permute.xlu0 %1942
      %1944 = vrot.lane.b32.xlu0 %v1925, 64
      %v1945 = vpop.permute.xlu0 %1944
      %1946 = vrot.lane.b32.xlu0 %v1926, 64
      %v1947 = vpop.permute.xlu0 %1946
      %1948 = vrot.lane.b32.xlu0 %v1927, 64
      %v1949 = vpop.permute.xlu0 %1948
      %1950 = vrot.lane.b32.xlu0 %v1928, 64
      %v1951 = vpop.permute.xlu0 %1950
      %1952 = vrot.lane.b32.xlu0 %v1929, 64
      %v1953 = vpop.permute.xlu0 %1952
      %v1962 = vmul.f32 %v1811, %v1939
      %v1963 = vmul.f32 %v1813, %v1941
      %v1964 = vmul.f32 %v1815, %v1943
      %v1965 = vmul.f32 %v1817, %v1945
      %v1966 = vmul.f32 %v1819, %v1947
      %v1967 = vmul.f32 %v1821, %v1949
      %v1968 = vmul.f32 %v1823, %v1951
      %v1969 = vmul.f32 %v1825, %v1953
      %v1970 = vpack.c.bf16 %v1963, %v1962
      %v1971 = vpack.c.bf16 %v1965, %v1964
      %v1972 = vpack.c.bf16 %v1967, %v1966
      %v1973 = vpack.c.bf16 %v1969, %v1968
      %1978 = vrot.lane.b32.xlu0 %v1970, 32
      %v1979 = vpop.permute.xlu0 %1978
      %1980 = vrot.lane.b32.xlu0 %v1971, 32
      %v1981 = vpop.permute.xlu0 %1980
      %1982 = vrot.lane.b32.xlu0 %v1972, 32
      %v1983 = vpop.permute.xlu0 %1982
      %1984 = vrot.lane.b32.xlu0 %v1973, 32
      %v1985 = vpop.permute.xlu0 %1984
      %v1987 = vsel %vm1115, %v1979, 0
      %v1990 = vsel %vm1115, %v1981, 0
      %v1993 = vsel %vm1115, %v1983, 0
      %v1996 = vsel %vm1115, %v1985, 0
      %1998 = vmatprep.subr.bf16.mxu0 0
      %1999 = vmatpush1.bf16.msra.mxu0 0
      %2000 = vmatprep.subr.bf16.mxu0 0
      %2001 = vmatpush1.bf16.msra.mxu0 0
      %2002 = vmatprep.subr.bf16.mxu0 0
      %2003 = vmatpush1.bf16.msra.mxu0 0
      %2004 = vmatprep.subr.bf16.mxu0 0
      %2005 = vmatpush1.bf16.msra.mxu0 0
      %2006 = vmatprep.subr.bf16.mxu0 0
      %2007 = vmatpush1.bf16.msra.mxu0 0
      %2008 = vmatprep.subr.bf16.mxu0 0
      %2009 = vmatpush1.bf16.msra.mxu0 0
      %2010 = vmatprep.subr.bf16.mxu0 0
      %2011 = vmatpush1.bf16.msra.mxu0 %v271
      %2012 = vmatprep.subr.bf16.mxu0 0
      %2013 = vmatpush1.bf16.msra.mxu0 %v270
      %2014 = vmatprep.subr.bf16.mxu0 0
      %2015 = vmatpush2.bf16.msra.mxu0 0
      %2016 = vmatprep.subr.bf16.mxu0 0
      %2017 = vmatpush2.bf16.msra.mxu0 0
      %2018 = vmatprep.subr.bf16.mxu0 0
      %2019 = vmatpush2.bf16.msra.mxu0 0
      %2020 = vmatprep.subr.bf16.mxu0 0
      %2021 = vmatpush2.bf16.msra.mxu0 0
      %2022 = vmatprep.subr.bf16.mxu0 0
      %2023 = vmatpush2.bf16.msra.mxu0 0
      %2024 = vmatprep.subr.bf16.mxu0 0
      %2025 = vmatpush2.bf16.msra.mxu0 0
      %2026 = vmatprep.subr.bf16.mxu0 0
      %2027 = vmatpush2.bf16.msra.mxu0 0
      %2028 = vmatprep.subr.bf16.mxu0 0
      %2029 = vmatpush2.bf16.msra.mxu0 0
      %2030 = vmatprep.mubr.bf16.mxu0 0
      %2031 = vmatmul.mubr.bf16.gmra.mxu0 %v1987
      %v2032 = vpop.f32.mrf.mxu0
      %v2033 = vadd.f32 0.0, %v2032
      %v2034 = vpop.f32.mrf.mxu0
      %v2035 = vpop.f32.mrf.mxu0
      %v2036 = vadd.f32 0.0, %v2035
      %v2037 = vpop.f32.mrf.mxu0
      %2038 = vmatprep.mubr.bf16.mxu0 0
      %2039 = vmatmul.mubr.bf16.gmra.mxu0 %v1990
      %v2040 = vpop.f32.mrf.mxu0
      %v2041 = vadd.f32 0.0, %v2040
      %v2042 = vpop.f32.mrf.mxu0
      %v2043 = vpop.f32.mrf.mxu0
      %v2044 = vadd.f32 0.0, %v2043
      %v2045 = vpop.f32.mrf.mxu0
      %2046 = vmatprep.mubr.bf16.mxu0 0
      %2047 = vmatmul.mubr.bf16.gmra.mxu0 %v1993
      %v2048 = vpop.f32.mrf.mxu0
      %v2049 = vadd.f32 0.0, %v2048
      %v2050 = vpop.f32.mrf.mxu0
      %v2051 = vpop.f32.mrf.mxu0
      %v2052 = vadd.f32 0.0, %v2051
      %v2053 = vpop.f32.mrf.mxu0
      %2054 = vmatprep.mubr.bf16.mxu0 0
      %2055 = vmatmul.mubr.bf16.gmra.mxu0 %v1996
      %v2056 = vpop.f32.mrf.mxu0
      %v2057 = vadd.f32 0.0, %v2056
      %v2058 = vpop.f32.mrf.mxu0
      %v2059 = vpop.f32.mrf.mxu0
      %v2060 = vadd.f32 0.0, %v2059
      %v2061 = vpop.f32.mrf.mxu0
      %2062 = vdwg.mxu0
      %v2063 = vadd.f32 %v657, %v2033
      %v2064 = vadd.f32 %v662, %v2036
      %v2065 = vadd.f32 %v667, %v2041
      %v2066 = vadd.f32 %v672, %v2044
      %v2067 = vadd.f32 %v677, %v2049
      %v2068 = vadd.f32 %v682, %v2052
      %v2069 = vadd.f32 %v687, %v2057
      %v2070 = vadd.f32 %v692, %v2060
      %v2071 = vxor.u32 %v2063, 2147483648
      %v2072 = vxor.u32 %v2064, 2147483648
      %v2073 = vxor.u32 %v2065, 2147483648
      %v2074 = vxor.u32 %v2066, 2147483648
      %v2075 = vxor.u32 %v2067, 2147483648
      %v2076 = vxor.u32 %v2068, 2147483648
      %v2077 = vxor.u32 %v2069, 2147483648
      %v2078 = vxor.u32 %v2070, 2147483648
      %v2079 = vmul.f32 %v2071, 1.442695
      %v2080 = vpow.pop %v2079
      %v2081 = vmul.f32 %v2072, 1.442695
      %v2082 = vpow.pop %v2081
      %v2083 = vmul.f32 %v2073, 1.442695
      %v2084 = vpow.pop %v2083
      %v2085 = vmul.f32 %v2074, 1.442695
      %v2086 = vpow.pop %v2085
      %v2087 = vmul.f32 %v2075, 1.442695
      %v2088 = vpow.pop %v2087
      %v2089 = vmul.f32 %v2076, 1.442695
      %v2090 = vpow.pop %v2089
      %v2091 = vmul.f32 %v2077, 1.442695
      %v2092 = vpow.pop %v2091
      %v2093 = vmul.f32 %v2078, 1.442695
      %v2094 = vpow.pop %v2093
      %v2095 = vadd.f32 %v2080, 1.0
      %v2096 = vadd.f32 %v2082, 1.0
      %v2097 = vadd.f32 %v2084, 1.0
      %v2098 = vadd.f32 %v2086, 1.0
      %v2099 = vadd.f32 %v2088, 1.0
      %v2100 = vadd.f32 %v2090, 1.0
      %v2101 = vadd.f32 %v2092, 1.0
      %v2102 = vadd.f32 %v2094, 1.0
      %v2103 = vrcp.pop %v2095
      %v2104 = vmul.f32 1.0, %v2103
      %v2105 = vrcp.pop %v2096
      %v2106 = vmul.f32 1.0, %v2105
      %v2107 = vrcp.pop %v2097
      %v2108 = vmul.f32 1.0, %v2107
      %v2109 = vrcp.pop %v2098
      %v2110 = vmul.f32 1.0, %v2109
      %v2111 = vrcp.pop %v2099
      %v2112 = vmul.f32 1.0, %v2111
      %v2113 = vrcp.pop %v2100
      %v2114 = vmul.f32 1.0, %v2113
      %v2115 = vrcp.pop %v2101
      %v2116 = vmul.f32 1.0, %v2115
      %v2117 = vrcp.pop %v2102
      %v2118 = vmul.f32 1.0, %v2117
      %v2119 = vtanh.pop %v2063
      %v2120 = vtanh.pop %v2064
      %v2121 = vtanh.pop %v2065
      %v2122 = vtanh.pop %v2066
      %v2123 = vtanh.pop %v2067
      %v2124 = vtanh.pop %v2068
      %v2125 = vtanh.pop %v2069
      %v2126 = vtanh.pop %v2070
      %v2127 = vmul.f32 %v2104, %v1914
      %v2128 = vmul.f32 %v2106, %v1915
      %v2129 = vmul.f32 %v2108, %v1916
      %v2130 = vmul.f32 %v2110, %v1917
      %v2131 = vmul.f32 %v2112, %v1918
      %v2132 = vmul.f32 %v2114, %v1919
      %v2133 = vmul.f32 %v2116, %v1920
      %v2134 = vmul.f32 %v2118, %v1921
      %2143 = vrot.lane.b32.xlu0 %v2119, 64
      %v2144 = vpop.permute.xlu0 %2143
      %2145 = vrot.lane.b32.xlu0 %v2120, 64
      %v2146 = vpop.permute.xlu0 %2145
      %2147 = vrot.lane.b32.xlu0 %v2121, 64
      %v2148 = vpop.permute.xlu0 %2147
      %2149 = vrot.lane.b32.xlu0 %v2122, 64
      %v2150 = vpop.permute.xlu0 %2149
      %2151 = vrot.lane.b32.xlu0 %v2123, 64
      %v2152 = vpop.permute.xlu0 %2151
      %2153 = vrot.lane.b32.xlu0 %v2124, 64
      %v2154 = vpop.permute.xlu0 %2153
      %2155 = vrot.lane.b32.xlu0 %v2125, 64
      %v2156 = vpop.permute.xlu0 %2155
      %2157 = vrot.lane.b32.xlu0 %v2126, 64
      %v2158 = vpop.permute.xlu0 %2157
      %v2167 = vmul.f32 %v2104, %v2144
      %v2168 = vmul.f32 %v2106, %v2146
      %v2169 = vmul.f32 %v2108, %v2148
      %v2170 = vmul.f32 %v2110, %v2150
      %v2171 = vmul.f32 %v2112, %v2152
      %v2172 = vmul.f32 %v2114, %v2154
      %v2173 = vmul.f32 %v2116, %v2156
      %v2174 = vmul.f32 %v2118, %v2158
      %2183 = vrot.lane.b32.xlu0 %v2167, 32
      %v2184 = vpop.permute.xlu0 %2183
      %2185 = vrot.lane.b32.xlu0 %v2168, 32
      %v2186 = vpop.permute.xlu0 %2185
      %2187 = vrot.lane.b32.xlu0 %v2169, 32
      %v2188 = vpop.permute.xlu0 %2187
      %2189 = vrot.lane.b32.xlu0 %v2170, 32
      %v2190 = vpop.permute.xlu0 %2189
      %2191 = vrot.lane.b32.xlu0 %v2171, 32
      %v2192 = vpop.permute.xlu0 %2191
      %2193 = vrot.lane.b32.xlu0 %v2172, 32
      %v2194 = vpop.permute.xlu0 %2193
      %2195 = vrot.lane.b32.xlu0 %v2173, 32
      %v2196 = vpop.permute.xlu0 %2195
      %2197 = vrot.lane.b32.xlu0 %v2174, 32
      %v2198 = vpop.permute.xlu0 %2197
      %v2207 = vadd.f32 %v2127, %v2184
      %v2208 = vadd.f32 %v2128, %v2186
      %v2209 = vadd.f32 %v2129, %v2188
      %v2210 = vadd.f32 %v2130, %v2190
      %v2211 = vadd.f32 %v2131, %v2192
      %v2212 = vadd.f32 %v2132, %v2194
      %v2213 = vadd.f32 %v2133, %v2196
      %v2214 = vadd.f32 %v2134, %v2198
      %v2215 = vtanh.pop %v2207
      %v2216 = vtanh.pop %v2208
      %v2217 = vtanh.pop %v2209
      %v2218 = vtanh.pop %v2210
      %v2219 = vtanh.pop %v2211
      %v2220 = vtanh.pop %v2212
      %v2221 = vtanh.pop %v2213
      %v2222 = vtanh.pop %v2214
      %2231 = vrot.lane.b32.xlu0 %v2215, 64
      %v2232 = vpop.permute.xlu0 %2231
      %2233 = vrot.lane.b32.xlu0 %v2216, 64
      %v2234 = vpop.permute.xlu0 %2233
      %2235 = vrot.lane.b32.xlu0 %v2217, 64
      %v2236 = vpop.permute.xlu0 %2235
      %2237 = vrot.lane.b32.xlu0 %v2218, 64
      %v2238 = vpop.permute.xlu0 %2237
      %2239 = vrot.lane.b32.xlu0 %v2219, 64
      %v2240 = vpop.permute.xlu0 %2239
      %2241 = vrot.lane.b32.xlu0 %v2220, 64
      %v2242 = vpop.permute.xlu0 %2241
      %2243 = vrot.lane.b32.xlu0 %v2221, 64
      %v2244 = vpop.permute.xlu0 %2243
      %2245 = vrot.lane.b32.xlu0 %v2222, 64
      %v2246 = vpop.permute.xlu0 %2245
      %v2255 = vmul.f32 %v2104, %v2232
      %v2256 = vmul.f32 %v2106, %v2234
      %v2257 = vmul.f32 %v2108, %v2236
      %v2258 = vmul.f32 %v2110, %v2238
      %v2259 = vmul.f32 %v2112, %v2240
      %v2260 = vmul.f32 %v2114, %v2242
      %v2261 = vmul.f32 %v2116, %v2244
      %v2262 = vmul.f32 %v2118, %v2246
      %v2263 = vpack.c.bf16 %v2256, %v2255
      %v2264 = vpack.c.bf16 %v2258, %v2257
      %v2265 = vpack.c.bf16 %v2260, %v2259
      %v2266 = vpack.c.bf16 %v2262, %v2261
      %2271 = vrot.lane.b32.xlu0 %v2263, 32
      %v2272 = vpop.permute.xlu0 %2271
      %2273 = vrot.lane.b32.xlu0 %v2264, 32
      %v2274 = vpop.permute.xlu0 %2273
      %2275 = vrot.lane.b32.xlu0 %v2265, 32
      %v2276 = vpop.permute.xlu0 %2275
      %2277 = vrot.lane.b32.xlu0 %v2266, 32
      %v2278 = vpop.permute.xlu0 %2277
      %v2280 = vsel %vm1115, %v2272, 0
      %v2283 = vsel %vm1115, %v2274, 0
      %v2286 = vsel %vm1115, %v2276, 0
      %v2289 = vsel %vm1115, %v2278, 0
      %2291 = vmatprep.subr.bf16.mxu0 0
      %2292 = vmatpush1.bf16.msra.mxu0 0
      %2293 = vmatprep.subr.bf16.mxu0 0
      %2294 = vmatpush1.bf16.msra.mxu0 0
      %2295 = vmatprep.subr.bf16.mxu0 0
      %2296 = vmatpush1.bf16.msra.mxu0 0
      %2297 = vmatprep.subr.bf16.mxu0 0
      %2298 = vmatpush1.bf16.msra.mxu0 0
      %2299 = vmatprep.subr.bf16.mxu0 0
      %2300 = vmatpush1.bf16.msra.mxu0 0
      %2301 = vmatprep.subr.bf16.mxu0 0
      %2302 = vmatpush1.bf16.msra.mxu0 0
      %2303 = vmatprep.subr.bf16.mxu0 0
      %2304 = vmatpush1.bf16.msra.mxu0 %v271
      %2305 = vmatprep.subr.bf16.mxu0 0
      %2306 = vmatpush1.bf16.msra.mxu0 %v270
      %2307 = vmatprep.subr.bf16.mxu0 0
      %2308 = vmatpush2.bf16.msra.mxu0 0
      %2309 = vmatprep.subr.bf16.mxu0 0
      %2310 = vmatpush2.bf16.msra.mxu0 0
      %2311 = vmatprep.subr.bf16.mxu0 0
      %2312 = vmatpush2.bf16.msra.mxu0 0
      %2313 = vmatprep.subr.bf16.mxu0 0
      %2314 = vmatpush2.bf16.msra.mxu0 0
      %2315 = vmatprep.subr.bf16.mxu0 0
      %2316 = vmatpush2.bf16.msra.mxu0 0
      %2317 = vmatprep.subr.bf16.mxu0 0
      %2318 = vmatpush2.bf16.msra.mxu0 0
      %2319 = vmatprep.subr.bf16.mxu0 0
      %2320 = vmatpush2.bf16.msra.mxu0 0
      %2321 = vmatprep.subr.bf16.mxu0 0
      %2322 = vmatpush2.bf16.msra.mxu0 0
      %2323 = vmatprep.mubr.bf16.mxu0 0
      %2324 = vmatmul.mubr.bf16.gmra.mxu0 %v2280
      %v2325 = vpop.f32.mrf.mxu0
      %v2326 = vadd.f32 0.0, %v2325
      %v2327 = vpop.f32.mrf.mxu0
      %v2328 = vpop.f32.mrf.mxu0
      %v2329 = vadd.f32 0.0, %v2328
      %v2330 = vpop.f32.mrf.mxu0
      %2331 = vmatprep.mubr.bf16.mxu0 0
      %2332 = vmatmul.mubr.bf16.gmra.mxu0 %v2283
      %v2333 = vpop.f32.mrf.mxu0
      %v2334 = vadd.f32 0.0, %v2333
      %v2335 = vpop.f32.mrf.mxu0
      %v2336 = vpop.f32.mrf.mxu0
      %v2337 = vadd.f32 0.0, %v2336
      %v2338 = vpop.f32.mrf.mxu0
      %2339 = vmatprep.mubr.bf16.mxu0 0
      %2340 = vmatmul.mubr.bf16.gmra.mxu0 %v2286
      %v2341 = vpop.f32.mrf.mxu0
      %v2342 = vadd.f32 0.0, %v2341
      %v2343 = vpop.f32.mrf.mxu0
      %v2344 = vpop.f32.mrf.mxu0
      %v2345 = vadd.f32 0.0, %v2344
      %v2346 = vpop.f32.mrf.mxu0
      %2347 = vmatprep.mubr.bf16.mxu0 0
      %2348 = vmatmul.mubr.bf16.gmra.mxu0 %v2289
      %v2349 = vpop.f32.mrf.mxu0
      %v2350 = vadd.f32 0.0, %v2349
      %v2351 = vpop.f32.mrf.mxu0
      %v2352 = vpop.f32.mrf.mxu0
      %v2353 = vadd.f32 0.0, %v2352
      %v2354 = vpop.f32.mrf.mxu0
      %2355 = vdwg.mxu0
      %v2356 = vadd.f32 %v697, %v2326
      %v2357 = vadd.f32 %v702, %v2329
      %v2358 = vadd.f32 %v707, %v2334
      %v2359 = vadd.f32 %v712, %v2337
      %v2360 = vadd.f32 %v717, %v2342
      %v2361 = vadd.f32 %v722, %v2345
      %v2362 = vadd.f32 %v727, %v2350
      %v2363 = vadd.f32 %v732, %v2353
      %v2364 = vxor.u32 %v2356, 2147483648
      %v2365 = vxor.u32 %v2357, 2147483648
      %v2366 = vxor.u32 %v2358, 2147483648
      %v2367 = vxor.u32 %v2359, 2147483648
      %v2368 = vxor.u32 %v2360, 2147483648
      %v2369 = vxor.u32 %v2361, 2147483648
      %v2370 = vxor.u32 %v2362, 2147483648
      %v2371 = vxor.u32 %v2363, 2147483648
      %v2372 = vmul.f32 %v2364, 1.442695
      %v2373 = vpow.pop %v2372
      %v2374 = vmul.f32 %v2365, 1.442695
      %v2375 = vpow.pop %v2374
      %v2376 = vmul.f32 %v2366, 1.442695
      %v2377 = vpow.pop %v2376
      %v2378 = vmul.f32 %v2367, 1.442695
      %v2379 = vpow.pop %v2378
      %v2380 = vmul.f32 %v2368, 1.442695
      %v2381 = vpow.pop %v2380
      %v2382 = vmul.f32 %v2369, 1.442695
      %v2383 = vpow.pop %v2382
      %v2384 = vmul.f32 %v2370, 1.442695
      %v2385 = vpow.pop %v2384
      %v2386 = vmul.f32 %v2371, 1.442695
      %v2387 = vpow.pop %v2386
      %v2388 = vadd.f32 %v2373, 1.0
      %v2389 = vadd.f32 %v2375, 1.0
      %v2390 = vadd.f32 %v2377, 1.0
      %v2391 = vadd.f32 %v2379, 1.0
      %v2392 = vadd.f32 %v2381, 1.0
      %v2393 = vadd.f32 %v2383, 1.0
      %v2394 = vadd.f32 %v2385, 1.0
      %v2395 = vadd.f32 %v2387, 1.0
      %v2396 = vrcp.pop %v2388
      %v2397 = vmul.f32 1.0, %v2396
      %v2398 = vrcp.pop %v2389
      %v2399 = vmul.f32 1.0, %v2398
      %v2400 = vrcp.pop %v2390
      %v2401 = vmul.f32 1.0, %v2400
      %v2402 = vrcp.pop %v2391
      %v2403 = vmul.f32 1.0, %v2402
      %v2404 = vrcp.pop %v2392
      %v2405 = vmul.f32 1.0, %v2404
      %v2406 = vrcp.pop %v2393
      %v2407 = vmul.f32 1.0, %v2406
      %v2408 = vrcp.pop %v2394
      %v2409 = vmul.f32 1.0, %v2408
      %v2410 = vrcp.pop %v2395
      %v2411 = vmul.f32 1.0, %v2410
      %v2412 = vtanh.pop %v2356
      %v2413 = vtanh.pop %v2357
      %v2414 = vtanh.pop %v2358
      %v2415 = vtanh.pop %v2359
      %v2416 = vtanh.pop %v2360
      %v2417 = vtanh.pop %v2361
      %v2418 = vtanh.pop %v2362
      %v2419 = vtanh.pop %v2363
      %v2420 = vmul.f32 %v2397, %v2207
      %v2421 = vmul.f32 %v2399, %v2208
      %v2422 = vmul.f32 %v2401, %v2209
      %v2423 = vmul.f32 %v2403, %v2210
      %v2424 = vmul.f32 %v2405, %v2211
      %v2425 = vmul.f32 %v2407, %v2212
      %v2426 = vmul.f32 %v2409, %v2213
      %v2427 = vmul.f32 %v2411, %v2214
      %2436 = vrot.lane.b32.xlu0 %v2412, 64
      %v2437 = vpop.permute.xlu0 %2436
      %2438 = vrot.lane.b32.xlu0 %v2413, 64
      %v2439 = vpop.permute.xlu0 %2438
      %2440 = vrot.lane.b32.xlu0 %v2414, 64
      %v2441 = vpop.permute.xlu0 %2440
      %2442 = vrot.lane.b32.xlu0 %v2415, 64
      %v2443 = vpop.permute.xlu0 %2442
      %2444 = vrot.lane.b32.xlu0 %v2416, 64
      %v2445 = vpop.permute.xlu0 %2444
      %2446 = vrot.lane.b32.xlu0 %v2417, 64
      %v2447 = vpop.permute.xlu0 %2446
      %2448 = vrot.lane.b32.xlu0 %v2418, 64
      %v2449 = vpop.permute.xlu0 %2448
      %2450 = vrot.lane.b32.xlu0 %v2419, 64
      %v2451 = vpop.permute.xlu0 %2450
      %v2460 = vmul.f32 %v2397, %v2437
      %v2461 = vmul.f32 %v2399, %v2439
      %v2462 = vmul.f32 %v2401, %v2441
      %v2463 = vmul.f32 %v2403, %v2443
      %v2464 = vmul.f32 %v2405, %v2445
      %v2465 = vmul.f32 %v2407, %v2447
      %v2466 = vmul.f32 %v2409, %v2449
      %v2467 = vmul.f32 %v2411, %v2451
      %2476 = vrot.lane.b32.xlu0 %v2460, 32
      %v2477 = vpop.permute.xlu0 %2476
      %2478 = vrot.lane.b32.xlu0 %v2461, 32
      %v2479 = vpop.permute.xlu0 %2478
      %2480 = vrot.lane.b32.xlu0 %v2462, 32
      %v2481 = vpop.permute.xlu0 %2480
      %2482 = vrot.lane.b32.xlu0 %v2463, 32
      %v2483 = vpop.permute.xlu0 %2482
      %2484 = vrot.lane.b32.xlu0 %v2464, 32
      %v2485 = vpop.permute.xlu0 %2484
      %2486 = vrot.lane.b32.xlu0 %v2465, 32
      %v2487 = vpop.permute.xlu0 %2486
      %2488 = vrot.lane.b32.xlu0 %v2466, 32
      %v2489 = vpop.permute.xlu0 %2488
      %2490 = vrot.lane.b32.xlu0 %v2467, 32
      %v2491 = vpop.permute.xlu0 %2490
      %v2500 = vadd.f32 %v2420, %v2477
      %v2501 = vadd.f32 %v2421, %v2479
      %v2502 = vadd.f32 %v2422, %v2481
      %v2503 = vadd.f32 %v2423, %v2483
      %v2504 = vadd.f32 %v2424, %v2485
      %v2505 = vadd.f32 %v2425, %v2487
      %v2506 = vadd.f32 %v2426, %v2489
      %v2507 = vadd.f32 %v2427, %v2491
      %v2508 = vtanh.pop %v2500
      %v2509 = vtanh.pop %v2501
      %v2510 = vtanh.pop %v2502
      %v2511 = vtanh.pop %v2503
      %v2512 = vtanh.pop %v2504
      %v2513 = vtanh.pop %v2505
      %v2514 = vtanh.pop %v2506
      %v2515 = vtanh.pop %v2507
      %2524 = vrot.lane.b32.xlu0 %v2508, 64
      %v2525 = vpop.permute.xlu0 %2524
      %2526 = vrot.lane.b32.xlu0 %v2509, 64
      %v2527 = vpop.permute.xlu0 %2526
      %2528 = vrot.lane.b32.xlu0 %v2510, 64
      %v2529 = vpop.permute.xlu0 %2528
      %2530 = vrot.lane.b32.xlu0 %v2511, 64
      %v2531 = vpop.permute.xlu0 %2530
      %2532 = vrot.lane.b32.xlu0 %v2512, 64
      %v2533 = vpop.permute.xlu0 %2532
      %2534 = vrot.lane.b32.xlu0 %v2513, 64
      %v2535 = vpop.permute.xlu0 %2534
      %2536 = vrot.lane.b32.xlu0 %v2514, 64
      %v2537 = vpop.permute.xlu0 %2536
      %2538 = vrot.lane.b32.xlu0 %v2515, 64
      %v2539 = vpop.permute.xlu0 %2538
      %v2548 = vmul.f32 %v2397, %v2525
      %v2549 = vmul.f32 %v2399, %v2527
      %v2550 = vmul.f32 %v2401, %v2529
      %v2551 = vmul.f32 %v2403, %v2531
      %v2552 = vmul.f32 %v2405, %v2533
      %v2553 = vmul.f32 %v2407, %v2535
      %v2554 = vmul.f32 %v2409, %v2537
      %v2555 = vmul.f32 %v2411, %v2539
      %v2556 = vpack.c.bf16 %v2549, %v2548
      %v2557 = vpack.c.bf16 %v2551, %v2550
      %v2558 = vpack.c.bf16 %v2553, %v2552
      %v2559 = vpack.c.bf16 %v2555, %v2554
      %2564 = vrot.lane.b32.xlu0 %v2556, 32
      %v2565 = vpop.permute.xlu0 %2564
      %2566 = vrot.lane.b32.xlu0 %v2557, 32
      %v2567 = vpop.permute.xlu0 %2566
      %2568 = vrot.lane.b32.xlu0 %v2558, 32
      %v2569 = vpop.permute.xlu0 %2568
      %2570 = vrot.lane.b32.xlu0 %v2559, 32
      %v2571 = vpop.permute.xlu0 %2570
      %v2573 = vsel %vm1115, %v2565, 0
      %v2576 = vsel %vm1115, %v2567, 0
      %v2579 = vsel %vm1115, %v2569, 0
      %v2582 = vsel %vm1115, %v2571, 0
      %2584 = vmatprep.subr.bf16.mxu0 0
      %2585 = vmatpush1.bf16.msra.mxu0 0
      %2586 = vmatprep.subr.bf16.mxu0 0
      %2587 = vmatpush1.bf16.msra.mxu0 0
      %2588 = vmatprep.subr.bf16.mxu0 0
      %2589 = vmatpush1.bf16.msra.mxu0 0
      %2590 = vmatprep.subr.bf16.mxu0 0
      %2591 = vmatpush1.bf16.msra.mxu0 0
      %2592 = vmatprep.subr.bf16.mxu0 0
      %2593 = vmatpush1.bf16.msra.mxu0 0
      %2594 = vmatprep.subr.bf16.mxu0 0
      %2595 = vmatpush1.bf16.msra.mxu0 0
      %2596 = vmatprep.subr.bf16.mxu0 0
      %2597 = vmatpush1.bf16.msra.mxu0 %v271
      %2598 = vmatprep.subr.bf16.mxu0 0
      %2599 = vmatpush1.bf16.msra.mxu0 %v270
      %2600 = vmatprep.subr.bf16.mxu0 0
      %2601 = vmatpush2.bf16.msra.mxu0 0
      %2602 = vmatprep.subr.bf16.mxu0 0
      %2603 = vmatpush2.bf16.msra.mxu0 0
      %2604 = vmatprep.subr.bf16.mxu0 0
      %2605 = vmatpush2.bf16.msra.mxu0 0
      %2606 = vmatprep.subr.bf16.mxu0 0
      %2607 = vmatpush2.bf16.msra.mxu0 0
      %2608 = vmatprep.subr.bf16.mxu0 0
      %2609 = vmatpush2.bf16.msra.mxu0 0
      %2610 = vmatprep.subr.bf16.mxu0 0
      %2611 = vmatpush2.bf16.msra.mxu0 0
      %2612 = vmatprep.subr.bf16.mxu0 0
      %2613 = vmatpush2.bf16.msra.mxu0 0
      %2614 = vmatprep.subr.bf16.mxu0 0
      %2615 = vmatpush2.bf16.msra.mxu0 0
      %2616 = vmatprep.mubr.bf16.mxu0 0
      %2617 = vmatmul.mubr.bf16.gmra.mxu0 %v2573
      %v2618 = vpop.f32.mrf.mxu0
      %v2619 = vadd.f32 0.0, %v2618
      %v2620 = vpop.f32.mrf.mxu0
      %v2621 = vpop.f32.mrf.mxu0
      %v2622 = vadd.f32 0.0, %v2621
      %v2623 = vpop.f32.mrf.mxu0
      %2624 = vmatprep.mubr.bf16.mxu0 0
      %2625 = vmatmul.mubr.bf16.gmra.mxu0 %v2576
      %v2626 = vpop.f32.mrf.mxu0
      %v2627 = vadd.f32 0.0, %v2626
      %v2628 = vpop.f32.mrf.mxu0
      %v2629 = vpop.f32.mrf.mxu0
      %v2630 = vadd.f32 0.0, %v2629
      %v2631 = vpop.f32.mrf.mxu0
      %2632 = vmatprep.mubr.bf16.mxu0 0
      %2633 = vmatmul.mubr.bf16.gmra.mxu0 %v2579
      %v2634 = vpop.f32.mrf.mxu0
      %v2635 = vadd.f32 0.0, %v2634
      %v2636 = vpop.f32.mrf.mxu0
      %v2637 = vpop.f32.mrf.mxu0
      %v2638 = vadd.f32 0.0, %v2637
      %v2639 = vpop.f32.mrf.mxu0
      %2640 = vmatprep.mubr.bf16.mxu0 0
      %2641 = vmatmul.mubr.bf16.gmra.mxu0 %v2582
      %v2642 = vpop.f32.mrf.mxu0
      %v2643 = vadd.f32 0.0, %v2642
      %v2644 = vpop.f32.mrf.mxu0
      %v2645 = vpop.f32.mrf.mxu0
      %v2646 = vadd.f32 0.0, %v2645
      %v2647 = vpop.f32.mrf.mxu0
      %2648 = vdwg.mxu0
      %v2649 = vadd.f32 %v737, %v2619
      %v2650 = vadd.f32 %v742, %v2622
      %v2651 = vadd.f32 %v747, %v2627
      %v2652 = vadd.f32 %v752, %v2630
      %v2653 = vadd.f32 %v757, %v2635
      %v2654 = vadd.f32 %v762, %v2638
      %v2655 = vadd.f32 %v767, %v2643
      %v2656 = vadd.f32 %v772, %v2646
      %v2657 = vxor.u32 %v2649, 2147483648
      %v2658 = vxor.u32 %v2650, 2147483648
      %v2659 = vxor.u32 %v2651, 2147483648
      %v2660 = vxor.u32 %v2652, 2147483648
      %v2661 = vxor.u32 %v2653, 2147483648
      %v2662 = vxor.u32 %v2654, 2147483648
      %v2663 = vxor.u32 %v2655, 2147483648
      %v2664 = vxor.u32 %v2656, 2147483648
      %v2665 = vmul.f32 %v2657, 1.442695
      %v2666 = vpow.pop %v2665
      %v2667 = vmul.f32 %v2658, 1.442695
      %v2668 = vpow.pop %v2667
      %v2669 = vmul.f32 %v2659, 1.442695
      %v2670 = vpow.pop %v2669
      %v2671 = vmul.f32 %v2660, 1.442695
      %v2672 = vpow.pop %v2671
      %v2673 = vmul.f32 %v2661, 1.442695
      %v2674 = vpow.pop %v2673
      %v2675 = vmul.f32 %v2662, 1.442695
      %v2676 = vpow.pop %v2675
      %v2677 = vmul.f32 %v2663, 1.442695
      %v2678 = vpow.pop %v2677
      %v2679 = vmul.f32 %v2664, 1.442695
      %v2680 = vpow.pop %v2679
      %v2681 = vadd.f32 %v2666, 1.0
      %v2682 = vadd.f32 %v2668, 1.0
      %v2683 = vadd.f32 %v2670, 1.0
      %v2684 = vadd.f32 %v2672, 1.0
      %v2685 = vadd.f32 %v2674, 1.0
      %v2686 = vadd.f32 %v2676, 1.0
      %v2687 = vadd.f32 %v2678, 1.0
      %v2688 = vadd.f32 %v2680, 1.0
      %v2689 = vrcp.pop %v2681
      %v2690 = vmul.f32 1.0, %v2689
      %v2691 = vrcp.pop %v2682
      %v2692 = vmul.f32 1.0, %v2691
      %v2693 = vrcp.pop %v2683
      %v2694 = vmul.f32 1.0, %v2693
      %v2695 = vrcp.pop %v2684
      %v2696 = vmul.f32 1.0, %v2695
      %v2697 = vrcp.pop %v2685
      %v2698 = vmul.f32 1.0, %v2697
      %v2699 = vrcp.pop %v2686
      %v2700 = vmul.f32 1.0, %v2699
      %v2701 = vrcp.pop %v2687
      %v2702 = vmul.f32 1.0, %v2701
      %v2703 = vrcp.pop %v2688
      %v2704 = vmul.f32 1.0, %v2703
      %v2705 = vtanh.pop %v2649
      %v2706 = vtanh.pop %v2650
      %v2707 = vtanh.pop %v2651
      %v2708 = vtanh.pop %v2652
      %v2709 = vtanh.pop %v2653
      %v2710 = vtanh.pop %v2654
      %v2711 = vtanh.pop %v2655
      %v2712 = vtanh.pop %v2656
      %v2713 = vmul.f32 %v2690, %v2500
      %v2714 = vmul.f32 %v2692, %v2501
      %v2715 = vmul.f32 %v2694, %v2502
      %v2716 = vmul.f32 %v2696, %v2503
      %v2717 = vmul.f32 %v2698, %v2504
      %v2718 = vmul.f32 %v2700, %v2505
      %v2719 = vmul.f32 %v2702, %v2506
      %v2720 = vmul.f32 %v2704, %v2507
      %2729 = vrot.lane.b32.xlu0 %v2705, 64
      %v2730 = vpop.permute.xlu0 %2729
      %2731 = vrot.lane.b32.xlu0 %v2706, 64
      %v2732 = vpop.permute.xlu0 %2731
      %2733 = vrot.lane.b32.xlu0 %v2707, 64
      %v2734 = vpop.permute.xlu0 %2733
      %2735 = vrot.lane.b32.xlu0 %v2708, 64
      %v2736 = vpop.permute.xlu0 %2735
      %2737 = vrot.lane.b32.xlu0 %v2709, 64
      %v2738 = vpop.permute.xlu0 %2737
      %2739 = vrot.lane.b32.xlu0 %v2710, 64
      %v2740 = vpop.permute.xlu0 %2739
      %2741 = vrot.lane.b32.xlu0 %v2711, 64
      %v2742 = vpop.permute.xlu0 %2741
      %2743 = vrot.lane.b32.xlu0 %v2712, 64
      %v2744 = vpop.permute.xlu0 %2743
      %v2753 = vmul.f32 %v2690, %v2730
      %v2754 = vmul.f32 %v2692, %v2732
      %v2755 = vmul.f32 %v2694, %v2734
      %v2756 = vmul.f32 %v2696, %v2736
      %v2757 = vmul.f32 %v2698, %v2738
      %v2758 = vmul.f32 %v2700, %v2740
      %v2759 = vmul.f32 %v2702, %v2742
      %v2760 = vmul.f32 %v2704, %v2744
      %2769 = vrot.lane.b32.xlu0 %v2753, 32
      %v2770 = vpop.permute.xlu0 %2769
      %2771 = vrot.lane.b32.xlu0 %v2754, 32
      %v2772 = vpop.permute.xlu0 %2771
      %2773 = vrot.lane.b32.xlu0 %v2755, 32
      %v2774 = vpop.permute.xlu0 %2773
      %2775 = vrot.lane.b32.xlu0 %v2756, 32
      %v2776 = vpop.permute.xlu0 %2775
      %2777 = vrot.lane.b32.xlu0 %v2757, 32
      %v2778 = vpop.permute.xlu0 %2777
      %2779 = vrot.lane.b32.xlu0 %v2758, 32
      %v2780 = vpop.permute.xlu0 %2779
      %2781 = vrot.lane.b32.xlu0 %v2759, 32
      %v2782 = vpop.permute.xlu0 %2781
      %2783 = vrot.lane.b32.xlu0 %v2760, 32
      %v2784 = vpop.permute.xlu0 %2783
      %v2793 = vadd.f32 %v2713, %v2770
      %v2794 = vadd.f32 %v2714, %v2772
      %v2795 = vadd.f32 %v2715, %v2774
      %v2796 = vadd.f32 %v2716, %v2776
      %v2797 = vadd.f32 %v2717, %v2778
      %v2798 = vadd.f32 %v2718, %v2780
      %v2799 = vadd.f32 %v2719, %v2782
      %v2800 = vadd.f32 %v2720, %v2784
      %v2801 = vtanh.pop %v2793
      %v2802 = vtanh.pop %v2794
      %v2803 = vtanh.pop %v2795
      %v2804 = vtanh.pop %v2796
      %v2805 = vtanh.pop %v2797
      %v2806 = vtanh.pop %v2798
      %v2807 = vtanh.pop %v2799
      %v2808 = vtanh.pop %v2800
      %2817 = vrot.lane.b32.xlu0 %v2801, 64
      %v2818 = vpop.permute.xlu0 %2817
      %2819 = vrot.lane.b32.xlu0 %v2802, 64
      %v2820 = vpop.permute.xlu0 %2819
      %2821 = vrot.lane.b32.xlu0 %v2803, 64
      %v2822 = vpop.permute.xlu0 %2821
      %2823 = vrot.lane.b32.xlu0 %v2804, 64
      %v2824 = vpop.permute.xlu0 %2823
      %2825 = vrot.lane.b32.xlu0 %v2805, 64
      %v2826 = vpop.permute.xlu0 %2825
      %2827 = vrot.lane.b32.xlu0 %v2806, 64
      %v2828 = vpop.permute.xlu0 %2827
      %2829 = vrot.lane.b32.xlu0 %v2807, 64
      %v2830 = vpop.permute.xlu0 %2829
      %2831 = vrot.lane.b32.xlu0 %v2808, 64
      %v2832 = vpop.permute.xlu0 %2831
      %v2841 = vmul.f32 %v2690, %v2818
      %v2842 = vmul.f32 %v2692, %v2820
      %v2843 = vmul.f32 %v2694, %v2822
      %v2844 = vmul.f32 %v2696, %v2824
      %v2845 = vmul.f32 %v2698, %v2826
      %v2846 = vmul.f32 %v2700, %v2828
      %v2847 = vmul.f32 %v2702, %v2830
      %v2848 = vmul.f32 %v2704, %v2832
      %v2849 = vpack.c.bf16 %v2842, %v2841
      %v2850 = vpack.c.bf16 %v2844, %v2843
      %v2851 = vpack.c.bf16 %v2846, %v2845
      %v2852 = vpack.c.bf16 %v2848, %v2847
      %2857 = vrot.lane.b32.xlu0 %v2849, 32
      %v2858 = vpop.permute.xlu0 %2857
      %2859 = vrot.lane.b32.xlu0 %v2850, 32
      %v2860 = vpop.permute.xlu0 %2859
      %2861 = vrot.lane.b32.xlu0 %v2851, 32
      %v2862 = vpop.permute.xlu0 %2861
      %2863 = vrot.lane.b32.xlu0 %v2852, 32
      %v2864 = vpop.permute.xlu0 %2863
      %v2866 = vsel %vm1115, %v2858, 0
      %v2869 = vsel %vm1115, %v2860, 0
      %v2872 = vsel %vm1115, %v2862, 0
      %v2875 = vsel %vm1115, %v2864, 0
      %2877 = vmatprep.subr.bf16.mxu0 0
      %2878 = vmatpush1.bf16.msra.mxu0 0
      %2879 = vmatprep.subr.bf16.mxu0 0
      %2880 = vmatpush1.bf16.msra.mxu0 0
      %2881 = vmatprep.subr.bf16.mxu0 0
      %2882 = vmatpush1.bf16.msra.mxu0 0
      %2883 = vmatprep.subr.bf16.mxu0 0
      %2884 = vmatpush1.bf16.msra.mxu0 0
      %2885 = vmatprep.subr.bf16.mxu0 0
      %2886 = vmatpush1.bf16.msra.mxu0 0
      %2887 = vmatprep.subr.bf16.mxu0 0
      %2888 = vmatpush1.bf16.msra.mxu0 0
      %2889 = vmatprep.subr.bf16.mxu0 0
      %2890 = vmatpush1.bf16.msra.mxu0 %v271
      %2891 = vmatprep.subr.bf16.mxu0 0
      %2892 = vmatpush1.bf16.msra.mxu0 %v270
      %2893 = vmatprep.subr.bf16.mxu0 0
      %2894 = vmatpush2.bf16.msra.mxu0 0
      %2895 = vmatprep.subr.bf16.mxu0 0
      %2896 = vmatpush2.bf16.msra.mxu0 0
      %2897 = vmatprep.subr.bf16.mxu0 0
      %2898 = vmatpush2.bf16.msra.mxu0 0
      %2899 = vmatprep.subr.bf16.mxu0 0
      %2900 = vmatpush2.bf16.msra.mxu0 0
      %2901 = vmatprep.subr.bf16.mxu0 0
      %2902 = vmatpush2.bf16.msra.mxu0 0
      %2903 = vmatprep.subr.bf16.mxu0 0
      %2904 = vmatpush2.bf16.msra.mxu0 0
      %2905 = vmatprep.subr.bf16.mxu0 0
      %2906 = vmatpush2.bf16.msra.mxu0 0
      %2907 = vmatprep.subr.bf16.mxu0 0
      %2908 = vmatpush2.bf16.msra.mxu0 0
      %2909 = vmatprep.mubr.bf16.mxu0 0
      %2910 = vmatmul.mubr.bf16.gmra.mxu0 %v2866
      %v2911 = vpop.f32.mrf.mxu0
      %v2912 = vadd.f32 0.0, %v2911
      %v2913 = vpop.f32.mrf.mxu0
      %v2914 = vpop.f32.mrf.mxu0
      %v2915 = vadd.f32 0.0, %v2914
      %v2916 = vpop.f32.mrf.mxu0
      %2917 = vmatprep.mubr.bf16.mxu0 0
      %2918 = vmatmul.mubr.bf16.gmra.mxu0 %v2869
      %v2919 = vpop.f32.mrf.mxu0
      %v2920 = vadd.f32 0.0, %v2919
      %v2921 = vpop.f32.mrf.mxu0
      %v2922 = vpop.f32.mrf.mxu0
      %v2923 = vadd.f32 0.0, %v2922
      %v2924 = vpop.f32.mrf.mxu0
      %2925 = vmatprep.mubr.bf16.mxu0 0
      %2926 = vmatmul.mubr.bf16.gmra.mxu0 %v2872
      %v2927 = vpop.f32.mrf.mxu0
      %v2928 = vadd.f32 0.0, %v2927
      %v2929 = vpop.f32.mrf.mxu0
      %v2930 = vpop.f32.mrf.mxu0
      %v2931 = vadd.f32 0.0, %v2930
      %v2932 = vpop.f32.mrf.mxu0
      %2933 = vmatprep.mubr.bf16.mxu0 0
      %2934 = vmatmul.mubr.bf16.gmra.mxu0 %v2875
      %v2935 = vpop.f32.mrf.mxu0
      %v2936 = vadd.f32 0.0, %v2935
      %v2937 = vpop.f32.mrf.mxu0
      %v2938 = vpop.f32.mrf.mxu0
      %v2939 = vadd.f32 0.0, %v2938
      %v2940 = vpop.f32.mrf.mxu0
      %2941 = vdwg.mxu0
      %v2942 = vadd.f32 %v777, %v2912
      %v2943 = vadd.f32 %v782, %v2915
      %v2944 = vadd.f32 %v787, %v2920
      %v2945 = vadd.f32 %v792, %v2923
      %v2946 = vadd.f32 %v797, %v2928
      %v2947 = vadd.f32 %v802, %v2931
      %v2948 = vadd.f32 %v807, %v2936
      %v2949 = vadd.f32 %v812, %v2939
      %v2950 = vxor.u32 %v2942, 2147483648
      %v2951 = vxor.u32 %v2943, 2147483648
      %v2952 = vxor.u32 %v2944, 2147483648
      %v2953 = vxor.u32 %v2945, 2147483648
      %v2954 = vxor.u32 %v2946, 2147483648
      %v2955 = vxor.u32 %v2947, 2147483648
      %v2956 = vxor.u32 %v2948, 2147483648
      %v2957 = vxor.u32 %v2949, 2147483648
      %v2958 = vmul.f32 %v2950, 1.442695
      %v2959 = vpow.pop %v2958
      %v2960 = vmul.f32 %v2951, 1.442695
      %v2961 = vpow.pop %v2960
      %v2962 = vmul.f32 %v2952, 1.442695
      %v2963 = vpow.pop %v2962
      %v2964 = vmul.f32 %v2953, 1.442695
      %v2965 = vpow.pop %v2964
      %v2966 = vmul.f32 %v2954, 1.442695
      %v2967 = vpow.pop %v2966
      %v2968 = vmul.f32 %v2955, 1.442695
      %v2969 = vpow.pop %v2968
      %v2970 = vmul.f32 %v2956, 1.442695
      %v2971 = vpow.pop %v2970
      %v2972 = vmul.f32 %v2957, 1.442695
      %v2973 = vpow.pop %v2972
      %v2974 = vadd.f32 %v2959, 1.0
      %v2975 = vadd.f32 %v2961, 1.0
      %v2976 = vadd.f32 %v2963, 1.0
      %v2977 = vadd.f32 %v2965, 1.0
      %v2978 = vadd.f32 %v2967, 1.0
      %v2979 = vadd.f32 %v2969, 1.0
      %v2980 = vadd.f32 %v2971, 1.0
      %v2981 = vadd.f32 %v2973, 1.0
      %v2982 = vrcp.pop %v2974
      %v2983 = vmul.f32 1.0, %v2982
      %v2984 = vrcp.pop %v2975
      %v2985 = vmul.f32 1.0, %v2984
      %v2986 = vrcp.pop %v2976
      %v2987 = vmul.f32 1.0, %v2986
      %v2988 = vrcp.pop %v2977
      %v2989 = vmul.f32 1.0, %v2988
      %v2990 = vrcp.pop %v2978
      %v2991 = vmul.f32 1.0, %v2990
      %v2992 = vrcp.pop %v2979
      %v2993 = vmul.f32 1.0, %v2992
      %v2994 = vrcp.pop %v2980
      %v2995 = vmul.f32 1.0, %v2994
      %v2996 = vrcp.pop %v2981
      %v2997 = vmul.f32 1.0, %v2996
      %v2998 = vtanh.pop %v2942
      %v2999 = vtanh.pop %v2943
      %v3000 = vtanh.pop %v2944
      %v3001 = vtanh.pop %v2945
      %v3002 = vtanh.pop %v2946
      %v3003 = vtanh.pop %v2947
      %v3004 = vtanh.pop %v2948
      %v3005 = vtanh.pop %v2949
      %v3006 = vmul.f32 %v2983, %v2793
      %v3007 = vmul.f32 %v2985, %v2794
      %v3008 = vmul.f32 %v2987, %v2795
      %v3009 = vmul.f32 %v2989, %v2796
      %v3010 = vmul.f32 %v2991, %v2797
      %v3011 = vmul.f32 %v2993, %v2798
      %v3012 = vmul.f32 %v2995, %v2799
      %v3013 = vmul.f32 %v2997, %v2800
      %3022 = vrot.lane.b32.xlu0 %v2998, 64
      %v3023 = vpop.permute.xlu0 %3022
      %3024 = vrot.lane.b32.xlu0 %v2999, 64
      %v3025 = vpop.permute.xlu0 %3024
      %3026 = vrot.lane.b32.xlu0 %v3000, 64
      %v3027 = vpop.permute.xlu0 %3026
      %3028 = vrot.lane.b32.xlu0 %v3001, 64
      %v3029 = vpop.permute.xlu0 %3028
      %3030 = vrot.lane.b32.xlu0 %v3002, 64
      %v3031 = vpop.permute.xlu0 %3030
      %3032 = vrot.lane.b32.xlu0 %v3003, 64
      %v3033 = vpop.permute.xlu0 %3032
      %3034 = vrot.lane.b32.xlu0 %v3004, 64
      %v3035 = vpop.permute.xlu0 %3034
      %3036 = vrot.lane.b32.xlu0 %v3005, 64
      %v3037 = vpop.permute.xlu0 %3036
      %v3046 = vmul.f32 %v2983, %v3023
      %v3047 = vmul.f32 %v2985, %v3025
      %v3048 = vmul.f32 %v2987, %v3027
      %v3049 = vmul.f32 %v2989, %v3029
      %v3050 = vmul.f32 %v2991, %v3031
      %v3051 = vmul.f32 %v2993, %v3033
      %v3052 = vmul.f32 %v2995, %v3035
      %v3053 = vmul.f32 %v2997, %v3037
      %3062 = vrot.lane.b32.xlu0 %v3046, 32
      %v3063 = vpop.permute.xlu0 %3062
      %3064 = vrot.lane.b32.xlu0 %v3047, 32
      %v3065 = vpop.permute.xlu0 %3064
      %3066 = vrot.lane.b32.xlu0 %v3048, 32
      %v3067 = vpop.permute.xlu0 %3066
      %3068 = vrot.lane.b32.xlu0 %v3049, 32
      %v3069 = vpop.permute.xlu0 %3068
      %3070 = vrot.lane.b32.xlu0 %v3050, 32
      %v3071 = vpop.permute.xlu0 %3070
      %3072 = vrot.lane.b32.xlu0 %v3051, 32
      %v3073 = vpop.permute.xlu0 %3072
      %3074 = vrot.lane.b32.xlu0 %v3052, 32
      %v3075 = vpop.permute.xlu0 %3074
      %3076 = vrot.lane.b32.xlu0 %v3053, 32
      %v3077 = vpop.permute.xlu0 %3076
      %v3086 = vadd.f32 %v3006, %v3063
      %v3087 = vadd.f32 %v3007, %v3065
      %v3088 = vadd.f32 %v3008, %v3067
      %v3089 = vadd.f32 %v3009, %v3069
      %v3090 = vadd.f32 %v3010, %v3071
      %v3091 = vadd.f32 %v3011, %v3073
      %v3092 = vadd.f32 %v3012, %v3075
      %v3093 = vadd.f32 %v3013, %v3077
      %v3094 = vtanh.pop %v3086
      %v3095 = vtanh.pop %v3087
      %v3096 = vtanh.pop %v3088
      %v3097 = vtanh.pop %v3089
      %v3098 = vtanh.pop %v3090
      %v3099 = vtanh.pop %v3091
      %v3100 = vtanh.pop %v3092
      %v3101 = vtanh.pop %v3093
      %3110 = vrot.lane.b32.xlu0 %v3094, 64
      %v3111 = vpop.permute.xlu0 %3110
      %3112 = vrot.lane.b32.xlu0 %v3095, 64
      %v3113 = vpop.permute.xlu0 %3112
      %3114 = vrot.lane.b32.xlu0 %v3096, 64
      %v3115 = vpop.permute.xlu0 %3114
      %3116 = vrot.lane.b32.xlu0 %v3097, 64
      %v3117 = vpop.permute.xlu0 %3116
      %3118 = vrot.lane.b32.xlu0 %v3098, 64
      %v3119 = vpop.permute.xlu0 %3118
      %3120 = vrot.lane.b32.xlu0 %v3099, 64
      %v3121 = vpop.permute.xlu0 %3120
      %3122 = vrot.lane.b32.xlu0 %v3100, 64
      %v3123 = vpop.permute.xlu0 %3122
      %3124 = vrot.lane.b32.xlu0 %v3101, 64
      %v3125 = vpop.permute.xlu0 %3124
      %v3134 = vmul.f32 %v2983, %v3111
      %v3135 = vmul.f32 %v2985, %v3113
      %v3136 = vmul.f32 %v2987, %v3115
      %v3137 = vmul.f32 %v2989, %v3117
      %v3138 = vmul.f32 %v2991, %v3119
      %v3139 = vmul.f32 %v2993, %v3121
      %v3140 = vmul.f32 %v2995, %v3123
      %v3141 = vmul.f32 %v2997, %v3125
      %v3142 = vpack.c.bf16 %v3135, %v3134
      %v3143 = vpack.c.bf16 %v3137, %v3136
      %v3144 = vpack.c.bf16 %v3139, %v3138
      %v3145 = vpack.c.bf16 %v3141, %v3140
      %3150 = vrot.lane.b32.xlu0 %v3142, 32
      %v3151 = vpop.permute.xlu0 %3150
      %3152 = vrot.lane.b32.xlu0 %v3143, 32
      %v3153 = vpop.permute.xlu0 %3152
      %3154 = vrot.lane.b32.xlu0 %v3144, 32
      %v3155 = vpop.permute.xlu0 %3154
      %3156 = vrot.lane.b32.xlu0 %v3145, 32
      %v3157 = vpop.permute.xlu0 %3156
      %v3159 = vsel %vm1115, %v3151, 0
      %v3162 = vsel %vm1115, %v3153, 0
      %v3165 = vsel %vm1115, %v3155, 0
      %v3168 = vsel %vm1115, %v3157, 0
      %3170 = vmatprep.subr.bf16.mxu0 0
      %3171 = vmatpush1.bf16.msra.mxu0 0
      %3172 = vmatprep.subr.bf16.mxu0 0
      %3173 = vmatpush1.bf16.msra.mxu0 0
      %3174 = vmatprep.subr.bf16.mxu0 0
      %3175 = vmatpush1.bf16.msra.mxu0 0
      %3176 = vmatprep.subr.bf16.mxu0 0
      %3177 = vmatpush1.bf16.msra.mxu0 0
      %3178 = vmatprep.subr.bf16.mxu0 0
      %3179 = vmatpush1.bf16.msra.mxu0 0
      %3180 = vmatprep.subr.bf16.mxu0 0
      %3181 = vmatpush1.bf16.msra.mxu0 0
      %3182 = vmatprep.subr.bf16.mxu0 0
      %3183 = vmatpush1.bf16.msra.mxu0 %v271
      %3184 = vmatprep.subr.bf16.mxu0 0
      %3185 = vmatpush1.bf16.msra.mxu0 %v270
      %3186 = vmatprep.subr.bf16.mxu0 0
      %3187 = vmatpush2.bf16.msra.mxu0 0
      %3188 = vmatprep.subr.bf16.mxu0 0
      %3189 = vmatpush2.bf16.msra.mxu0 0
      %3190 = vmatprep.subr.bf16.mxu0 0
      %3191 = vmatpush2.bf16.msra.mxu0 0
      %3192 = vmatprep.subr.bf16.mxu0 0
      %3193 = vmatpush2.bf16.msra.mxu0 0
      %3194 = vmatprep.subr.bf16.mxu0 0
      %3195 = vmatpush2.bf16.msra.mxu0 0
      %3196 = vmatprep.subr.bf16.mxu0 0
      %3197 = vmatpush2.bf16.msra.mxu0 0
      %3198 = vmatprep.subr.bf16.mxu0 0
      %3199 = vmatpush2.bf16.msra.mxu0 0
      %3200 = vmatprep.subr.bf16.mxu0 0
      %3201 = vmatpush2.bf16.msra.mxu0 0
      %3202 = vmatprep.mubr.bf16.mxu0 0
      %3203 = vmatmul.mubr.bf16.gmra.mxu0 %v3159
      %v3204 = vpop.f32.mrf.mxu0
      %v3205 = vadd.f32 0.0, %v3204
      %v3206 = vpop.f32.mrf.mxu0
      %v3207 = vpop.f32.mrf.mxu0
      %v3208 = vadd.f32 0.0, %v3207
      %v3209 = vpop.f32.mrf.mxu0
      %3210 = vmatprep.mubr.bf16.mxu0 0
      %3211 = vmatmul.mubr.bf16.gmra.mxu0 %v3162
      %v3212 = vpop.f32.mrf.mxu0
      %v3213 = vadd.f32 0.0, %v3212
      %v3214 = vpop.f32.mrf.mxu0
      %v3215 = vpop.f32.mrf.mxu0
      %v3216 = vadd.f32 0.0, %v3215
      %v3217 = vpop.f32.mrf.mxu0
      %3218 = vmatprep.mubr.bf16.mxu0 0
      %3219 = vmatmul.mubr.bf16.gmra.mxu0 %v3165
      %v3220 = vpop.f32.mrf.mxu0
      %v3221 = vadd.f32 0.0, %v3220
      %v3222 = vpop.f32.mrf.mxu0
      %v3223 = vpop.f32.mrf.mxu0
      %v3224 = vadd.f32 0.0, %v3223
      %v3225 = vpop.f32.mrf.mxu0
      %3226 = vmatprep.mubr.bf16.mxu0 0
      %3227 = vmatmul.mubr.bf16.gmra.mxu0 %v3168
      %v3228 = vpop.f32.mrf.mxu0
      %v3229 = vadd.f32 0.0, %v3228
      %v3230 = vpop.f32.mrf.mxu0
      %v3231 = vpop.f32.mrf.mxu0
      %v3232 = vadd.f32 0.0, %v3231
      %v3233 = vpop.f32.mrf.mxu0
      %3234 = vdwg.mxu0
      %v3235 = vadd.f32 %v817, %v3205
      %v3236 = vadd.f32 %v822, %v3208
      %v3237 = vadd.f32 %v827, %v3213
      %v3238 = vadd.f32 %v832, %v3216
      %v3239 = vadd.f32 %v837, %v3221
      %v3240 = vadd.f32 %v842, %v3224
      %v3241 = vadd.f32 %v847, %v3229
      %v3242 = vadd.f32 %v852, %v3232
      %v3243 = vxor.u32 %v3235, 2147483648
      %v3244 = vxor.u32 %v3236, 2147483648
      %v3245 = vxor.u32 %v3237, 2147483648
      %v3246 = vxor.u32 %v3238, 2147483648
      %v3247 = vxor.u32 %v3239, 2147483648
      %v3248 = vxor.u32 %v3240, 2147483648
      %v3249 = vxor.u32 %v3241, 2147483648
      %v3250 = vxor.u32 %v3242, 2147483648
      %v3251 = vmul.f32 %v3243, 1.442695
      %v3252 = vpow.pop %v3251
      %v3253 = vmul.f32 %v3244, 1.442695
      %v3254 = vpow.pop %v3253
      %v3255 = vmul.f32 %v3245, 1.442695
      %v3256 = vpow.pop %v3255
      %v3257 = vmul.f32 %v3246, 1.442695
      %v3258 = vpow.pop %v3257
      %v3259 = vmul.f32 %v3247, 1.442695
      %v3260 = vpow.pop %v3259
      %v3261 = vmul.f32 %v3248, 1.442695
      %v3262 = vpow.pop %v3261
      %v3263 = vmul.f32 %v3249, 1.442695
      %v3264 = vpow.pop %v3263
      %v3265 = vmul.f32 %v3250, 1.442695
      %v3266 = vpow.pop %v3265
      %v3267 = vadd.f32 %v3252, 1.0
      %v3268 = vadd.f32 %v3254, 1.0
      %v3269 = vadd.f32 %v3256, 1.0
      %v3270 = vadd.f32 %v3258, 1.0
      %v3271 = vadd.f32 %v3260, 1.0
      %v3272 = vadd.f32 %v3262, 1.0
      %v3273 = vadd.f32 %v3264, 1.0
      %v3274 = vadd.f32 %v3266, 1.0
      %v3275 = vrcp.pop %v3267
      %v3276 = vmul.f32 1.0, %v3275
      %v3277 = vrcp.pop %v3268
      %v3278 = vmul.f32 1.0, %v3277
      %v3279 = vrcp.pop %v3269
      %v3280 = vmul.f32 1.0, %v3279
      %v3281 = vrcp.pop %v3270
      %v3282 = vmul.f32 1.0, %v3281
      %v3283 = vrcp.pop %v3271
      %v3284 = vmul.f32 1.0, %v3283
      %v3285 = vrcp.pop %v3272
      %v3286 = vmul.f32 1.0, %v3285
      %v3287 = vrcp.pop %v3273
      %v3288 = vmul.f32 1.0, %v3287
      %v3289 = vrcp.pop %v3274
      %v3290 = vmul.f32 1.0, %v3289
      %v3291 = vtanh.pop %v3235
      %v3292 = vtanh.pop %v3236
      %v3293 = vtanh.pop %v3237
      %v3294 = vtanh.pop %v3238
      %v3295 = vtanh.pop %v3239
      %v3296 = vtanh.pop %v3240
      %v3297 = vtanh.pop %v3241
      %v3298 = vtanh.pop %v3242
      %v3299 = vmul.f32 %v3276, %v3086
      %v3300 = vmul.f32 %v3278, %v3087
      %v3301 = vmul.f32 %v3280, %v3088
      %v3302 = vmul.f32 %v3282, %v3089
      %v3303 = vmul.f32 %v3284, %v3090
      %v3304 = vmul.f32 %v3286, %v3091
      %v3305 = vmul.f32 %v3288, %v3092
      %v3306 = vmul.f32 %v3290, %v3093
      %3315 = vrot.lane.b32.xlu0 %v3291, 64
      %v3316 = vpop.permute.xlu0 %3315
      %3317 = vrot.lane.b32.xlu0 %v3292, 64
      %v3318 = vpop.permute.xlu0 %3317
      %3319 = vrot.lane.b32.xlu0 %v3293, 64
      %v3320 = vpop.permute.xlu0 %3319
      %3321 = vrot.lane.b32.xlu0 %v3294, 64
      %v3322 = vpop.permute.xlu0 %3321
      %3323 = vrot.lane.b32.xlu0 %v3295, 64
      %v3324 = vpop.permute.xlu0 %3323
      %3325 = vrot.lane.b32.xlu0 %v3296, 64
      %v3326 = vpop.permute.xlu0 %3325
      %3327 = vrot.lane.b32.xlu0 %v3297, 64
      %v3328 = vpop.permute.xlu0 %3327
      %3329 = vrot.lane.b32.xlu0 %v3298, 64
      %v3330 = vpop.permute.xlu0 %3329
      %v3339 = vmul.f32 %v3276, %v3316
      %v3340 = vmul.f32 %v3278, %v3318
      %v3341 = vmul.f32 %v3280, %v3320
      %v3342 = vmul.f32 %v3282, %v3322
      %v3343 = vmul.f32 %v3284, %v3324
      %v3344 = vmul.f32 %v3286, %v3326
      %v3345 = vmul.f32 %v3288, %v3328
      %v3346 = vmul.f32 %v3290, %v3330
      %3355 = vrot.lane.b32.xlu0 %v3339, 32
      %v3356 = vpop.permute.xlu0 %3355
      %3357 = vrot.lane.b32.xlu0 %v3340, 32
      %v3358 = vpop.permute.xlu0 %3357
      %3359 = vrot.lane.b32.xlu0 %v3341, 32
      %v3360 = vpop.permute.xlu0 %3359
      %3361 = vrot.lane.b32.xlu0 %v3342, 32
      %v3362 = vpop.permute.xlu0 %3361
      %3363 = vrot.lane.b32.xlu0 %v3343, 32
      %v3364 = vpop.permute.xlu0 %3363
      %3365 = vrot.lane.b32.xlu0 %v3344, 32
      %v3366 = vpop.permute.xlu0 %3365
      %3367 = vrot.lane.b32.xlu0 %v3345, 32
      %v3368 = vpop.permute.xlu0 %3367
      %3369 = vrot.lane.b32.xlu0 %v3346, 32
      %v3370 = vpop.permute.xlu0 %3369
      %v3379 = vadd.f32 %v3299, %v3356
      %v3380 = vadd.f32 %v3300, %v3358
      %v3381 = vadd.f32 %v3301, %v3360
      %v3382 = vadd.f32 %v3302, %v3362
      %v3383 = vadd.f32 %v3303, %v3364
      %v3384 = vadd.f32 %v3304, %v3366
      %v3385 = vadd.f32 %v3305, %v3368
      %v3386 = vadd.f32 %v3306, %v3370
      %v3387 = vtanh.pop %v3379
      %v3388 = vtanh.pop %v3380
      %v3389 = vtanh.pop %v3381
      %v3390 = vtanh.pop %v3382
      %v3391 = vtanh.pop %v3383
      %v3392 = vtanh.pop %v3384
      %v3393 = vtanh.pop %v3385
      %v3394 = vtanh.pop %v3386
      %3403 = vrot.lane.b32.xlu0 %v3387, 64
      %v3404 = vpop.permute.xlu0 %3403
      %3405 = vrot.lane.b32.xlu0 %v3388, 64
      %v3406 = vpop.permute.xlu0 %3405
      %3407 = vrot.lane.b32.xlu0 %v3389, 64
      %v3408 = vpop.permute.xlu0 %3407
      %3409 = vrot.lane.b32.xlu0 %v3390, 64
      %v3410 = vpop.permute.xlu0 %3409
      %3411 = vrot.lane.b32.xlu0 %v3391, 64
      %v3412 = vpop.permute.xlu0 %3411
      %3413 = vrot.lane.b32.xlu0 %v3392, 64
      %v3414 = vpop.permute.xlu0 %3413
      %3415 = vrot.lane.b32.xlu0 %v3393, 64
      %v3416 = vpop.permute.xlu0 %3415
      %3417 = vrot.lane.b32.xlu0 %v3394, 64
      %v3418 = vpop.permute.xlu0 %3417
      %v3427 = vmul.f32 %v3276, %v3404
      %v3428 = vmul.f32 %v3278, %v3406
      %v3429 = vmul.f32 %v3280, %v3408
      %v3430 = vmul.f32 %v3282, %v3410
      %v3431 = vmul.f32 %v3284, %v3412
      %v3432 = vmul.f32 %v3286, %v3414
      %v3433 = vmul.f32 %v3288, %v3416
      %v3434 = vmul.f32 %v3290, %v3418
      %v3435 = vld [vmem:[%s2 + $0xc0] sm:$0xff]
      %v3436 = vld [vmem:[%s2 + $0xc8] sm:$0xff]
      %v3437 = vld [vmem:[%s2 + $0xd0] sm:$0xff]
      %v3438 = vld [vmem:[%s2 + $0xd8] sm:$0xff]
      %3447 = vrot.lane.b32.xlu0 %v3427, 32
      %v3448 = vpop.permute.xlu0 %3447
      %3449 = vrot.lane.b32.xlu0 %v3428, 32
      %v3450 = vpop.permute.xlu0 %3449
      %3451 = vrot.lane.b32.xlu0 %v3429, 32
      %v3452 = vpop.permute.xlu0 %3451
      %3453 = vrot.lane.b32.xlu0 %v3430, 32
      %v3454 = vpop.permute.xlu0 %3453
      %3455 = vrot.lane.b32.xlu0 %v3431, 32
      %v3456 = vpop.permute.xlu0 %3455
      %3457 = vrot.lane.b32.xlu0 %v3432, 32
      %v3458 = vpop.permute.xlu0 %3457
      %3459 = vrot.lane.b32.xlu0 %v3433, 32
      %v3460 = vpop.permute.xlu0 %3459
      %3461 = vrot.lane.b32.xlu0 %v3434, 32
      %v3462 = vpop.permute.xlu0 %3461
      %v3463 = vsel %vm1115, %v3448, 0
      %v3465 = vsel %vm1115, %v3450, 0
      %v3467 = vsel %vm1115, %v3452, 0
      %v3469 = vsel %vm1115, %v3454, 0
      %v3471 = vsel %vm1115, %v3456, 0
      %v3473 = vsel %vm1115, %v3458, 0
      %v3475 = vsel %vm1115, %v3460, 0
      %v3477 = vsel %vm1115, %v3462, 0
      %3479 = vmatprep.subr.mxu0 0.0
      %3480 = vmatpush1.msra.mxu0 0.0
      %3481 = vmatprep.subr.mxu0 0.0
      %3482 = vmatpush1.msra.mxu0 0.0
      %3483 = vmatprep.subr.mxu0 0.0
      %3484 = vmatpush1.msra.mxu0 0.0
      %3485 = vmatprep.subr.mxu0 0.0
      %3486 = vmatpush1.msra.mxu0 0.0
      %3487 = vmatprep.subr.mxu0 0.0
      %3488 = vmatpush1.msra.mxu0 0.0
      %3489 = vmatprep.subr.mxu0 0.0
      %3490 = vmatpush1.msra.mxu0 0.0
      %3491 = vmatprep.subr.mxu0 0.0
      %3492 = vmatpush1.msra.mxu0 0.0
      %3493 = vmatprep.subr.mxu0 0.0
      %3494 = vmatpush1.msra.mxu0 0.0
      %3495 = vmatprep.subr.mxu0 0.0
      %3496 = vmatpush1.msra.mxu0 0.0
      %3497 = vmatprep.subr.mxu0 0.0
      %3498 = vmatpush1.msra.mxu0 0.0
      %3499 = vmatprep.subr.mxu0 0.0
      %3500 = vmatpush1.msra.mxu0 0.0
      %3501 = vmatprep.subr.mxu0 0.0
      %3502 = vmatpush1.msra.mxu0 0.0
      %3503 = vmatprep.subr.mxu0 0.0
      %3504 = vmatpush1.msra.mxu0 %v3438
      %3505 = vmatprep.subr.mxu0 0.0
      %3506 = vmatpush1.msra.mxu0 %v3437
      %3507 = vmatprep.subr.mxu0 0.0
      %3508 = vmatpush1.msra.mxu0 %v3436
      %3509 = vmatprep.subr.mxu0 0.0
      %3510 = vmatpush1.msra.mxu0 %v3435
      %3511 = vmatprep.subr.mxu0 0.0
      %3512 = vmatpush2.msra.mxu0 0.0
      %3513 = vmatprep.subr.mxu0 0.0
      %3514 = vmatpush2.msra.mxu0 0.0
      %3515 = vmatprep.subr.mxu0 0.0
      %3516 = vmatpush2.msra.mxu0 0.0
      %3517 = vmatprep.subr.mxu0 0.0
      %3518 = vmatpush2.msra.mxu0 0.0
      %3519 = vmatprep.subr.mxu0 0.0
      %3520 = vmatpush2.msra.mxu0 0.0
      %3521 = vmatprep.subr.mxu0 0.0
      %3522 = vmatpush2.msra.mxu0 0.0
      %3523 = vmatprep.subr.mxu0 0.0
      %3524 = vmatpush2.msra.mxu0 0.0
      %3525 = vmatprep.subr.mxu0 0.0
      %3526 = vmatpush2.msra.mxu0 0.0
      %3527 = vmatprep.subr.mxu0 0.0
      %3528 = vmatpush2.msra.mxu0 0.0
      %3529 = vmatprep.subr.mxu0 0.0
      %3530 = vmatpush2.msra.mxu0 0.0
      %3531 = vmatprep.subr.mxu0 0.0
      %3532 = vmatpush2.msra.mxu0 0.0
      %3533 = vmatprep.subr.mxu0 0.0
      %3534 = vmatpush2.msra.mxu0 0.0
      %3535 = vmatprep.subr.mxu0 0.0
      %3536 = vmatpush2.msra.mxu0 0.0
      %3537 = vmatprep.subr.mxu0 0.0
      %3538 = vmatpush2.msra.mxu0 0.0
      %3539 = vmatprep.subr.mxu0 0.0
      %3540 = vmatpush2.msra.mxu0 0.0
      %3541 = vmatprep.subr.mxu0 0.0
      %3542 = vmatpush2.msra.mxu0 0.0
      %3543 = vmatprep.mubr.f32.mxu0 0.0
      %3544 = vmatmul.mubr.f32.gmra.mxu0 %v3463
      %v3545 = vpop.f32.mrf.mxu0
      %v3546 = vadd.f32 %v1077, %v3545
      %v3547 = vpop.f32.mrf.mxu0
      %3548 = vmatprep.mubr.f32.mxu0 0.0
      %3549 = vmatmul.mubr.f32.gmra.mxu0 %v3465
      %v3550 = vpop.f32.mrf.mxu0
      %v3551 = vadd.f32 %v1082, %v3550
      %v3552 = vpop.f32.mrf.mxu0
      %3553 = vmatprep.mubr.f32.mxu0 0.0
      %3554 = vmatmul.mubr.f32.gmra.mxu0 %v3467
      %v3555 = vpop.f32.mrf.mxu0
      %v3556 = vadd.f32 %v1087, %v3555
      %v3557 = vpop.f32.mrf.mxu0
      %3558 = vmatprep.mubr.f32.mxu0 0.0
      %3559 = vmatmul.mubr.f32.gmra.mxu0 %v3469
      %v3560 = vpop.f32.mrf.mxu0
      %v3561 = vadd.f32 %v1092, %v3560
      %v3562 = vpop.f32.mrf.mxu0
      %3563 = vmatprep.mubr.f32.mxu0 0.0
      %3564 = vmatmul.mubr.f32.gmra.mxu0 %v3471
      %v3565 = vpop.f32.mrf.mxu0
      %v3566 = vadd.f32 %v1097, %v3565
      %v3567 = vpop.f32.mrf.mxu0
      %3568 = vmatprep.mubr.f32.mxu0 0.0
      %3569 = vmatmul.mubr.f32.gmra.mxu0 %v3473
      %v3570 = vpop.f32.mrf.mxu0
      %v3571 = vadd.f32 %v1102, %v3570
      %v3572 = vpop.f32.mrf.mxu0
      %3573 = vmatprep.mubr.f32.mxu0 0.0
      %3574 = vmatmul.mubr.f32.gmra.mxu0 %v3475
      %v3575 = vpop.f32.mrf.mxu0
      %v3576 = vadd.f32 %v1107, %v3575
      %v3577 = vpop.f32.mrf.mxu0
      %3578 = vmatprep.mubr.f32.mxu0 0.0
      %3579 = vmatmul.mubr.f32.gmra.mxu0 %v3477
      %v3580 = vpop.f32.mrf.mxu0
      %v3581 = vadd.f32 %v1112, %v3580
      %v3582 = vpop.f32.mrf.mxu0
      %3583 = vdwg.mxu0
      %3584 = vst [vmem:[%s190] sm:$0xff] %v3546
      %3585 = vst [vmem:[%s190 + $0x8] sm:$0xff] %v3551
      %3586 = vst [vmem:[%s190 + $0x10] sm:$0xff] %v3556
      %3587 = vst [vmem:[%s190 + $0x18] sm:$0xff] %v3561
      %3588 = vst [vmem:[%s190 + $0x20] sm:$0xff] %v3566
      %3589 = vst [vmem:[%s190 + $0x28] sm:$0xff] %v3571
      %3590 = vst [vmem:[%s190 + $0x30] sm:$0xff] %v3576
      %3591 = vst [vmem:[%s190 + $0x38] sm:$0xff] %v3581
      %p3592 = scmp.lt.s32.totalorder %s14, 3
      %s3593 = scalar_select %p3592, %s14, 3
      %s3594 = smul.addr %s3593, 8
      %s3595 = smul.addr %s3594, 8
      %s3596 = scalar_lea.vmem %s3, %s3595
      // Predicated region
      $region33: #{ensemble_forward.1} parent=31 // pred_check
        %p3597 = pneg %p105
      $region34: #{ensemble_forward.1} parent=31 // pred_check_branch
        %3599 = sbr.rel (%p3597) target = $region36
      $region35: #{ensemble_forward.1} parent=31 // pred_region
        _
      $region36: #{ensemble_forward.1} parent=31 // pred_fallthru
        _
    $region32: #{ensemble_forward.1} parent=5 // pred_fallthru
      _
    %p3600 = scmp.le.s32.totalorder 2, %s9
    // Predicated region
    $region37: #{ensemble_forward.1} parent=5 // pred_check
      %p3601 = pneg %p3600
    $region38: #{ensemble_forward.1} parent=5 // pred_check_branch
      %3603 = sbr.rel (%p3601) target = $region40
    $region39: #{ensemble_forward.1} parent=5 // pred_region
      %s3604 = ssub.s32 %s9, 2
      // Predicated region
      $region41: #{ensemble_forward.1} parent=39 // pred_check
        %p3605 = pneg %p111
      $region42: #{ensemble_forward.1} parent=39 // pred_check_branch
        %3607 = sbr.rel (%p3605) target = $region44
      $region43: #{ensemble_forward.1} parent=39 // pred_region
        %p3608 = scmp.lt.s32.totalorder %s15, 3
        %s3609 = scalar_select %p3608, %s15, 3
        %s3610 = smul.addr %s3609, 8
        %s3611 = smul.addr %s3610, 8
        %s3612 = scalar_lea.vmem %s3, %s3611
      $region44: #{ensemble_forward.1} parent=39 // pred_fallthru
        _
    $region40: #{ensemble_forward.1} parent=5 // pred_fallthru
      _
  $region6: #{ensemble_forward.1} parent=0 // loop_footer
    %s13 = sadd.s32 1, %s9
  $region7: #{ensemble_forward.1} parent=0 // loop_footer_branch
    %8 = sbr.rel target = $region3
  $region8: #{ensemble_forward.1} parent=0 // loop_exit
    _

</llo_original>
